<compile_context>
chip_gen: v6e
topology: v6e:2x2x1
jax: 0.10.0
libtpu: 0.0.40
codegen_flags: <defaults>
</compile_context>

<pallas_src>
import functools
import math

import jax
import jax.numpy as jnp
from jax.experimental import pallas as pl
from jax.experimental.pallas import tpu as pltpu


def _eca_kernel_size(channel, gamma=2, b=1):
    k = int(abs((math.log(channel, 2) + b) / gamma))
    return k if k % 2 else k + 1


def _pick_batch_tile(B, per_batch_bytes, target_bytes=4 << 20):
    """Largest divisor of B whose tile fits target_bytes, keeping >= 2 grid
    steps when B > 1 (so the v7x megacore can split the batch axis)."""
    best = 1
    for d in range(1, B + 1):
        if B % d != 0:
            continue
        if d * per_batch_bytes > target_bytes:
            break
        if B > 1 and B // d < 2:
            continue
        best = d
    return best


def csam_kernel(w_ch_ref, w_sp_ref, bn_bias_ref, x_ref, o_ref, *, k):
    # w_ch_ref : (2*k,)  SMEM f32 -- [avg-branch (already / (H*W)), max-branch]
    # w_sp_ref : (98,)   SMEM f32 -- 7x7 conv weights * bn_scale,
    #                                 [max-branch(49), mean-branch(49)] row-major
    # bn_bias_ref : (1,) SMEM f32 -- beta - bn_scale * running_mean
    # x_ref / o_ref : (Bt, C, H, W) VMEM tiles in the input dtype
    Bt, C, H, W = x_ref.shape
    x = x_ref[...]                                            # native dtype

    # ---------------- ECAAPMP channel gate ----------------
    # spatial sum (f32 accumulation, no f32 copy of the tile) and spatial max
    ssum = jnp.sum(jnp.sum(x, axis=3, dtype=jnp.float32), axis=2)        # (Bt, C)
    smax = jnp.max(jnp.max(x, axis=3), axis=2).astype(jnp.float32)       # (Bt, C)

    pad_c = k // 2
    if pad_c > 0:
        zc = jnp.zeros((Bt, pad_c), jnp.float32)
        ssum_p = jnp.concatenate([zc, ssum, zc], axis=1)      # (Bt, C + 2*pad_c)
        smax_p = jnp.concatenate([zc, smax, zc], axis=1)
    else:
        ssum_p, smax_p = ssum, smax

    conv1 = jnp.zeros((Bt, C), jnp.float32)
    for j in range(k):                                        # static unrolled
        conv1 = conv1 + w_ch_ref[j] * ssum_p[:, j:j + C]          # avg branch
        conv1 = conv1 + w_ch_ref[k + j] * smax_p[:, j:j + C]      # max branch
    ch_scale = jax.nn.sigmoid(conv1).astype(x.dtype)          # (Bt, C)

    x1 = x * ch_scale[:, :, None, None]                       # (Bt, C, H, W), native

    # ---------------- SpatialGate ----------------
    cmax = jnp.max(x1, axis=1).astype(jnp.float32)                        # (Bt, H, W)
    cmean = jnp.sum(x1, axis=1, dtype=jnp.float32) * (1.0 / float(C))     # (Bt, H, W)

    P = 3  # 7 // 2

    def pad2d(a):  # zero pad H and W by P on each side
        zr = jnp.zeros((Bt, P, W), jnp.float32)
        a = jnp.concatenate([zr, a, zr], axis=1)              # (Bt, H+6, W)
        zc2 = jnp.zeros((Bt, H + 2 * P, P), jnp.float32)
        return jnp.concatenate([zc2, a, zc2], axis=2)         # (Bt, H+6, W+6)

    cmax_p = pad2d(cmax)
    cmean_p = pad2d(cmean)

    conv2 = jnp.zeros((Bt, H, W), jnp.float32)
    for di in range(7):                                       # static unrolled 7x7
        for dj in range(7):
            idx = di * 7 + dj
            conv2 = conv2 + w_sp_ref[idx] * cmax_p[:, di:di + H, dj:dj + W]
            conv2 = conv2 + w_sp_ref[49 + idx] * cmean_p[:, di:di + H, dj:dj + W]
    conv2 = conv2 + bn_bias_ref[0]                            # folded BatchNorm
    sp_scale = jax.nn.sigmoid(conv2).astype(x.dtype)          # (Bt, H, W)

    o_ref[...] = (x1 * sp_scale[:, None, :, :]).astype(o_ref.dtype)


def csam_forward(x, w_ch, w_sp, bn_gamma, bn_beta, bn_mean, bn_var, eps=1e-5):
    """x: (B, C, H, W); w_ch: (1, 2, k) Conv1d weight; w_sp: (1, 2, 7, 7) Conv2d
    weight; bn_*: (1,) BatchNorm2d(1) parameters (inference mode)."""
    B, C, H, W = x.shape
    k = w_ch.shape[-1]

    # Fold 1/(H*W) into the avg branch of the channel conv.
    w_avg = (w_ch[0, 0, :] / float(H * W)).astype(jnp.float32)
    w_max = w_ch[0, 1, :].astype(jnp.float32)
    w_ch_flat = jnp.concatenate([w_avg, w_max])                       # (2k,)

    # Fold inference-mode BatchNorm into the 7x7 conv weights + scalar bias.
    bn_scale = bn_gamma / jnp.sqrt(bn_var + eps)                      # (1,)
    w_sp_flat = (w_sp[0] * bn_scale[0]).astype(jnp.float32).reshape(-1)   # (98,)
    bn_bias = (bn_beta - bn_scale * bn_mean).astype(jnp.float32)          # (1,)

    per_batch_bytes = C * H * W * x.dtype.itemsize
    Bt = _pick_batch_tile(B, per_batch_bytes)
    tile_bytes = Bt * per_batch_bytes
    # in + out double-buffered (~4x tile) + native-dtype x1 + small f32 temps.
    vmem_limit = int(min(64 * 1024 * 1024, max(32 * 1024 * 1024, 10 * tile_bytes)))

    cost = pl.CostEstimate(
        flops=int(B * C * H * W * 8 + B * H * W * 196 + B * C * 4 * k),
        transcendentals=int(B * (C + H * W)),
        bytes_accessed=int(2 * B * C * H * W * x.dtype.itemsize),
    )

    return pl.pallas_call(
        functools.partial(csam_kernel, k=k),
        out_shape=jax.ShapeDtypeStruct((B, C, H, W), x.dtype),
        grid=(B // Bt,),
        in_specs=[
            pl.BlockSpec(memory_space=pltpu.MemorySpace.SMEM),   # channel conv weights
            pl.BlockSpec(memory_space=pltpu.MemorySpace.SMEM),   # spatial conv weights
            pl.BlockSpec(memory_space=pltpu.MemorySpace.SMEM),   # folded BN bias
            pl.BlockSpec((Bt, C, H, W), lambda b: (b, 0, 0, 0)),
        ],
        out_specs=pl.BlockSpec((Bt, C, H, W), lambda b: (b, 0, 0, 0)),
        compiler_params=pltpu.CompilerParams(
            dimension_semantics=("parallel",),
            vmem_limit_bytes=vmem_limit,
        ),
        cost_estimate=cost,
    )(w_ch_flat, w_sp_flat, bn_bias, x)


def csam_reference(x, w_ch, w_sp, bn_gamma, bn_beta, bn_mean, bn_var, eps=1e-5):
    """Pure-JAX reference matching the PyTorch CSAM forward (BN in eval mode)."""
    B, C, H, W = x.shape
    k = w_ch.shape[-1]
    pad = k // 2

    # ECAAPMP channel gate
    avg = jnp.mean(x, axis=(2, 3))                                   # (B, C)
    amp = jnp.max(x, axis=(2, 3))                                    # (B, C)
    stacked = jnp.stack([avg, amp], axis=1)                          # (B, 2, C)
    stacked_p = jnp.pad(stacked, ((0, 0), (0, 0), (pad, pad)))
    conv = jnp.zeros((B, C), x.dtype)
    for c2 in range(2):
        for j in range(k):
            conv = conv + w_ch[0, c2, j] * stacked_p[:, c2, j:j + C]
    x1 = jax.nn.sigmoid(conv)[:, :, None, None] * x

    # SpatialGate
    cmax = jnp.max(x1, axis=1)
    cmean = jnp.mean(x1, axis=1)
    pooled = jnp.stack([cmax, cmean], axis=1)                        # (B, 2, H, W)
    pooled_p = jnp.pad(pooled, ((0, 0), (0, 0), (3, 3), (3, 3)))
    conv2 = jnp.zeros((B, H, W), x.dtype)
    for c2 in range(2):
        for di in range(7):
            for dj in range(7):
                conv2 = conv2 + w_sp[0, c2, di, dj] * pooled_p[:, c2, di:di + H, dj:dj + W]
    bn = bn_gamma[0] * (conv2 - bn_mean[0]) / jnp.sqrt(bn_var[0] + eps) + bn_beta[0]
    return jax.nn.sigmoid(bn)[:, None, :, :] * x1


if __name__ == "__main__":
    B, C, H, W = 2, 8, 16, 16
    k = _eca_kernel_size(C)                                   # C=8 -> k=3

    key = jax.random.PRNGKey(0)
    kx, k1, k2 = jax.random.split(key, 3)
    x = jax.random.normal(kx, (B, C, H, W), dtype=jnp.float32)
    # Conv1d(2, 1, k, bias=False) weight: (1, 2, k)
    w_ch = jax.random.normal(k1, (1, 2, k), dtype=jnp.float32) * 0.3
    # Conv2d(2, 1, 7, padding=3, bias=False) weight: (1, 2, 7, 7)
    w_sp = jax.random.normal(k2, (1, 2, 7, 7), dtype=jnp.float32) * 0.1
    # BatchNorm2d(1) inference parameters (non-trivial to exercise the path)
    bn_gamma = jnp.array([1.25], jnp.float32)
    bn_beta = jnp.array([-0.10], jnp.float32)
    bn_mean = jnp.array([0.05], jnp.float32)
    bn_var = jnp.array([0.90], jnp.float32)

    out = csam_forward(x, w_ch, w_sp, bn_gamma, bn_beta, bn_mean, bn_var)
    out = jax.block_until_ready(out)

    ref = csam_reference(x, w_ch, w_sp, bn_gamma, bn_beta, bn_mean, bn_var)
    assert out.shape == (B, C, H, W)
    assert jnp.allclose(out, ref, atol=1e-4, rtol=1e-4), "mismatch vs reference"

    print("KERNEL_OK")
</pallas_src>

<mosaic_0001>
module attributes {stable_mosaic.version = 11 : i64} {
  func.func @csam_kernel(%arg0: i32, %arg1: memref<6xf32, #tpu.memory_space<smem>>, %arg2: memref<98xf32, #tpu.memory_space<smem>>, %arg3: memref<1xf32, #tpu.memory_space<smem>>, %arg4: memref<1x8x16x16xf32, #tpu.memory_space<vmem>>, %arg5: memref<1x8x16x16xf32, #tpu.memory_space<vmem>>) attributes {dimension_semantics = [#tpu.dimension_semantics<parallel>], iteration_bounds = array<i64: 2>, scalar_prefetch = 0 : i64, scratch_operands = 0 : i64, tpu.core_type = #tpu.core_type<tc>, window_params = [{transform_indices = @transform_0, window_bounds = array<i64: 6>}, {transform_indices = @transform_1, window_bounds = array<i64: 98>}, {transform_indices = @transform_2, window_bounds = array<i64: 1>}, {transform_indices = @transform_3, window_bounds = array<i64: 1, 8, 16, 16>}, {transform_indices = @transform_4, window_bounds = array<i64: 1, 8, 16, 16>}]} {
    %c0 = arith.constant 0 : index
    %c0_0 = arith.constant 0 : index
    %c0_1 = arith.constant 0 : index
    %c0_2 = arith.constant 0 : index
    %0 = vector.load %arg4[%c0, %c0_0, %c0_1, %c0_2] : memref<1x8x16x16xf32, #tpu.memory_space<vmem>>, vector<1x8x16x16xf32>
    %cst = arith.constant dense<0.000000e+00> : vector<1x8x16xf32>
    %1 = vector.multi_reduction <add>, %0, %cst [3] : vector<1x8x16x16xf32> to vector<1x8x16xf32>
    %cst_3 = arith.constant dense<0.000000e+00> : vector<1x8xf32>
    %2 = vector.multi_reduction <add>, %1, %cst_3 [2] : vector<1x8x16xf32> to vector<1x8xf32>
    %cst_4 = arith.constant dense<0xFF800000> : vector<1x8x16xf32>
    %3 = vector.multi_reduction <maximumf>, %0, %cst_4 [3] : vector<1x8x16x16xf32> to vector<1x8x16xf32>
    %cst_5 = arith.constant dense<0xFF800000> : vector<1x8xf32>
    %4 = vector.multi_reduction <maximumf>, %3, %cst_5 [2] : vector<1x8x16xf32> to vector<1x8xf32>
    %cst_6 = arith.constant 0.000000e+00 : f32
    %5 = vector.broadcast %cst_6 : f32 to vector<1x1xf32>
    %6 = tpu.concatenate %5, %2, %5 in 1 : vector<1x1xf32>, vector<1x8xf32>, vector<1x1xf32> -> vector<1x10xf32>
    %7 = tpu.concatenate %5, %4, %5 in 1 : vector<1x1xf32>, vector<1x8xf32>, vector<1x1xf32> -> vector<1x10xf32>
    %cst_7 = arith.constant 0.000000e+00 : f32
    %8 = vector.broadcast %cst_7 : f32 to vector<1x8xf32>
    %c0_8 = arith.constant 0 : index
    %9 = memref.load %arg1[%c0_8] : memref<6xf32, #tpu.memory_space<smem>>
    %10 = vector.extract_strided_slice %6 {offsets = [0, 0], sizes = [1, 8], strides = [1, 1]} : vector<1x10xf32> to vector<1x8xf32>
    %11 = vector.broadcast %9 : f32 to vector<1x8xf32>
    %12 = arith.mulf %11, %10 : vector<1x8xf32>
    %13 = arith.addf %8, %12 : vector<1x8xf32>
    %c3 = arith.constant 3 : index
    %14 = memref.load %arg1[%c3] : memref<6xf32, #tpu.memory_space<smem>>
    %15 = vector.extract_strided_slice %7 {offsets = [0, 0], sizes = [1, 8], strides = [1, 1]} : vector<1x10xf32> to vector<1x8xf32>
    %16 = vector.broadcast %14 : f32 to vector<1x8xf32>
    %17 = arith.mulf %16, %15 : vector<1x8xf32>
    %18 = arith.addf %13, %17 : vector<1x8xf32>
    %c1 = arith.constant 1 : index
    %19 = memref.load %arg1[%c1] : memref<6xf32, #tpu.memory_space<smem>>
    %20 = vector.extract_strided_slice %6 {offsets = [0, 1], sizes = [1, 8], strides = [1, 1]} : vector<1x10xf32> to vector<1x8xf32>
    %21 = vector.broadcast %19 : f32 to vector<1x8xf32>
    %22 = arith.mulf %21, %20 : vector<1x8xf32>
    %23 = arith.addf %18, %22 : vector<1x8xf32>
    %c4 = arith.constant 4 : index
    %24 = memref.load %arg1[%c4] : memref<6xf32, #tpu.memory_space<smem>>
    %25 = vector.extract_strided_slice %7 {offsets = [0, 1], sizes = [1, 8], strides = [1, 1]} : vector<1x10xf32> to vector<1x8xf32>
    %26 = vector.broadcast %24 : f32 to vector<1x8xf32>
    %27 = arith.mulf %26, %25 : vector<1x8xf32>
    %28 = arith.addf %23, %27 : vector<1x8xf32>
    %c2 = arith.constant 2 : index
    %29 = memref.load %arg1[%c2] : memref<6xf32, #tpu.memory_space<smem>>
    %30 = vector.extract_strided_slice %6 {offsets = [0, 2], sizes = [1, 8], strides = [1, 1]} : vector<1x10xf32> to vector<1x8xf32>
    %31 = vector.broadcast %29 : f32 to vector<1x8xf32>
    %32 = arith.mulf %31, %30 : vector<1x8xf32>
    %33 = arith.addf %28, %32 : vector<1x8xf32>
    %c5 = arith.constant 5 : index
    %34 = memref.load %arg1[%c5] : memref<6xf32, #tpu.memory_space<smem>>
    %35 = vector.extract_strided_slice %7 {offsets = [0, 2], sizes = [1, 8], strides = [1, 1]} : vector<1x10xf32> to vector<1x8xf32>
    %36 = vector.broadcast %34 : f32 to vector<1x8xf32>
    %37 = arith.mulf %36, %35 : vector<1x8xf32>
    %38 = arith.addf %33, %37 : vector<1x8xf32>
    %39 = arith.negf %38 : vector<1x8xf32>
    %40 = math.exp %39 : vector<1x8xf32>
    %cst_9 = arith.constant 1.000000e+00 : f32
    %41 = vector.broadcast %cst_9 : f32 to vector<1x8xf32>
    %42 = arith.addf %41, %40 : vector<1x8xf32>
    %43 = arith.divf %41, %42 : vector<1x8xf32>
    %44 = vector.shape_cast %43 : vector<1x8xf32> to vector<1x8x1x1xf32>
    %45 = vector.broadcast %44 : vector<1x8x1x1xf32> to vector<1x8x16x16xf32>
    %46 = arith.mulf %0, %45 : vector<1x8x16x16xf32>
    %cst_10 = arith.constant dense<0xFF800000> : vector<1x16x16xf32>
    %47 = vector.multi_reduction <maximumf>, %46, %cst_10 [1] : vector<1x8x16x16xf32> to vector<1x16x16xf32>
    %cst_11 = arith.constant dense<0.000000e+00> : vector<1x16x16xf32>
    %48 = vector.multi_reduction <add>, %46, %cst_11 [1] : vector<1x8x16x16xf32> to vector<1x16x16xf32>
    %cst_12 = arith.constant 1.250000e-01 : f32
    %49 = vector.broadcast %cst_12 : f32 to vector<1x16x16xf32>
    %50 = arith.mulf %48, %49 : vector<1x16x16xf32>
    %cst_13 = arith.constant 0.000000e+00 : f32
    %51 = vector.broadcast %cst_13 : f32 to vector<1x3x16xf32>
    %52 = tpu.concatenate %51, %47, %51 in 1 : vector<1x3x16xf32>, vector<1x16x16xf32>, vector<1x3x16xf32> -> vector<1x22x16xf32>
    %cst_14 = arith.constant 0.000000e+00 : f32
    %53 = vector.broadcast %cst_14 : f32 to vector<1x22x3xf32>
    %54 = tpu.concatenate %53, %52, %53 in 2 : vector<1x22x3xf32>, vector<1x22x16xf32>, vector<1x22x3xf32> -> vector<1x22x22xf32>
    %cst_15 = arith.constant 0.000000e+00 : f32
    %55 = vector.broadcast %cst_15 : f32 to vector<1x3x16xf32>
    %56 = tpu.concatenate %55, %50, %55 in 1 : vector<1x3x16xf32>, vector<1x16x16xf32>, vector<1x3x16xf32> -> vector<1x22x16xf32>
    %cst_16 = arith.constant 0.000000e+00 : f32
    %57 = vector.broadcast %cst_16 : f32 to vector<1x22x3xf32>
    %58 = tpu.concatenate %57, %56, %57 in 2 : vector<1x22x3xf32>, vector<1x22x16xf32>, vector<1x22x3xf32> -> vector<1x22x22xf32>
    %cst_17 = arith.constant 0.000000e+00 : f32
    %59 = vector.broadcast %cst_17 : f32 to vector<1x16x16xf32>
    %c0_18 = arith.constant 0 : index
    %60 = memref.load %arg2[%c0_18] : memref<98xf32, #tpu.memory_space<smem>>
    %61 = vector.extract_strided_slice %54 {offsets = [0, 0, 0], sizes = [1, 16, 16], strides = [1, 1, 1]} : vector<1x22x22xf32> to vector<1x16x16xf32>
    %62 = vector.broadcast %60 : f32 to vector<1x16x16xf32>
    %63 = arith.mulf %62, %61 : vector<1x16x16xf32>
    %64 = arith.addf %59, %63 : vector<1x16x16xf32>
    %c49 = arith.constant 49 : index
    %65 = memref.load %arg2[%c49] : memref<98xf32, #tpu.memory_space<smem>>
    %66 = vector.extract_strided_slice %58 {offsets = [0, 0, 0], sizes = [1, 16, 16], strides = [1, 1, 1]} : vector<1x22x22xf32> to vector<1x16x16xf32>
    %67 = vector.broadcast %65 : f32 to vector<1x16x16xf32>
    %68 = arith.mulf %67, %66 : vector<1x16x16xf32>
    %69 = arith.addf %64, %68 : vector<1x16x16xf32>
    %c1_19 = arith.constant 1 : index
    %70 = memref.load %arg2[%c1_19] : memref<98xf32, #tpu.memory_space<smem>>
    %71 = vector.extract_strided_slice %54 {offsets = [0, 0, 1], sizes = [1, 16, 16], strides = [1, 1, 1]} : vector<1x22x22xf32> to vector<1x16x16xf32>
    %72 = vector.broadcast %70 : f32 to vector<1x16x16xf32>
    %73 = arith.mulf %72, %71 : vector<1x16x16xf32>
    %74 = arith.addf %69, %73 : vector<1x16x16xf32>
    %c50 = arith.constant 50 : index
    %75 = memref.load %arg2[%c50] : memref<98xf32, #tpu.memory_space<smem>>
    %76 = vector.extract_strided_slice %58 {offsets = [0, 0, 1], sizes = [1, 16, 16], strides = [1, 1, 1]} : vector<1x22x22xf32> to vector<1x16x16xf32>
    %77 = vector.broadcast %75 : f32 to vector<1x16x16xf32>
    %78 = arith.mulf %77, %76 : vector<1x16x16xf32>
    %79 = arith.addf %74, %78 : vector<1x16x16xf32>
    %c2_20 = arith.constant 2 : index
    %80 = memref.load %arg2[%c2_20] : memref<98xf32, #tpu.memory_space<smem>>
    %81 = vector.extract_strided_slice %54 {offsets = [0, 0, 2], sizes = [1, 16, 16], strides = [1, 1, 1]} : vector<1x22x22xf32> to vector<1x16x16xf32>
    %82 = vector.broadcast %80 : f32 to vector<1x16x16xf32>
    %83 = arith.mulf %82, %81 : vector<1x16x16xf32>
    %84 = arith.addf %79, %83 : vector<1x16x16xf32>
    %c51 = arith.constant 51 : index
    %85 = memref.load %arg2[%c51] : memref<98xf32, #tpu.memory_space<smem>>
    %86 = vector.extract_strided_slice %58 {offsets = [0, 0, 2], sizes = [1, 16, 16], strides = [1, 1, 1]} : vector<1x22x22xf32> to vector<1x16x16xf32>
    %87 = vector.broadcast %85 : f32 to vector<1x16x16xf32>
    %88 = arith.mulf %87, %86 : vector<1x16x16xf32>
    %89 = arith.addf %84, %88 : vector<1x16x16xf32>
    %c3_21 = arith.constant 3 : index
    %90 = memref.load %arg2[%c3_21] : memref<98xf32, #tpu.memory_space<smem>>
    %91 = vector.extract_strided_slice %54 {offsets = [0, 0, 3], sizes = [1, 16, 16], strides = [1, 1, 1]} : vector<1x22x22xf32> to vector<1x16x16xf32>
    %92 = vector.broadcast %90 : f32 to vector<1x16x16xf32>
    %93 = arith.mulf %92, %91 : vector<1x16x16xf32>
    %94 = arith.addf %89, %93 : vector<1x16x16xf32>
    %c52 = arith.constant 52 : index
    %95 = memref.load %arg2[%c52] : memref<98xf32, #tpu.memory_space<smem>>
    %96 = vector.extract_strided_slice %58 {offsets = [0, 0, 3], sizes = [1, 16, 16], strides = [1, 1, 1]} : vector<1x22x22xf32> to vector<1x16x16xf32>
    %97 = vector.broadcast %95 : f32 to vector<1x16x16xf32>
    %98 = arith.mulf %97, %96 : vector<1x16x16xf32>
    %99 = arith.addf %94, %98 : vector<1x16x16xf32>
    %c4_22 = arith.constant 4 : index
    %100 = memref.load %arg2[%c4_22] : memref<98xf32, #tpu.memory_space<smem>>
    %101 = vector.extract_strided_slice %54 {offsets = [0, 0, 4], sizes = [1, 16, 16], strides = [1, 1, 1]} : vector<1x22x22xf32> to vector<1x16x16xf32>
    %102 = vector.broadcast %100 : f32 to vector<1x16x16xf32>
    %103 = arith.mulf %102, %101 : vector<1x16x16xf32>
    %104 = arith.addf %99, %103 : vector<1x16x16xf32>
    %c53 = arith.constant 53 : index
    %105 = memref.load %arg2[%c53] : memref<98xf32, #tpu.memory_space<smem>>
    %106 = vector.extract_strided_slice %58 {offsets = [0, 0, 4], sizes = [1, 16, 16], strides = [1, 1, 1]} : vector<1x22x22xf32> to vector<1x16x16xf32>
    %107 = vector.broadcast %105 : f32 to vector<1x16x16xf32>
    %108 = arith.mulf %107, %106 : vector<1x16x16xf32>
    %109 = arith.addf %104, %108 : vector<1x16x16xf32>
    %c5_23 = arith.constant 5 : index
    %110 = memref.load %arg2[%c5_23] : memref<98xf32, #tpu.memory_space<smem>>
    %111 = vector.extract_strided_slice %54 {offsets = [0, 0, 5], sizes = [1, 16, 16], strides = [1, 1, 1]} : vector<1x22x22xf32> to vector<1x16x16xf32>
    %112 = vector.broadcast %110 : f32 to vector<1x16x16xf32>
    %113 = arith.mulf %112, %111 : vector<1x16x16xf32>
    %114 = arith.addf %109, %113 : vector<1x16x16xf32>
    %c54 = arith.constant 54 : index
    %115 = memref.load %arg2[%c54] : memref<98xf32, #tpu.memory_space<smem>>
    %116 = vector.extract_strided_slice %58 {offsets = [0, 0, 5], sizes = [1, 16, 16], strides = [1, 1, 1]} : vector<1x22x22xf32> to vector<1x16x16xf32>
    %117 = vector.broadcast %115 : f32 to vector<1x16x16xf32>
    %118 = arith.mulf %117, %116 : vector<1x16x16xf32>
    %119 = arith.addf %114, %118 : vector<1x16x16xf32>
    %c6 = arith.constant 6 : index
    %120 = memref.load %arg2[%c6] : memref<98xf32, #tpu.memory_space<smem>>
    %121 = vector.extract_strided_slice %54 {offsets = [0, 0, 6], sizes = [1, 16, 16], strides = [1, 1, 1]} : vector<1x22x22xf32> to vector<1x16x16xf32>
    %122 = vector.broadcast %120 : f32 to vector<1x16x16xf32>
    %123 = arith.mulf %122, %121 : vector<1x16x16xf32>
    %124 = arith.addf %119, %123 : vector<1x16x16xf32>
    %c55 = arith.constant 55 : index
    %125 = memref.load %arg2[%c55] : memref<98xf32, #tpu.memory_space<smem>>
    %126 = vector.extract_strided_slice %58 {offsets = [0, 0, 6], sizes = [1, 16, 16], strides = [1, 1, 1]} : vector<1x22x22xf32> to vector<1x16x16xf32>
    %127 = vector.broadcast %125 : f32 to vector<1x16x16xf32>
    %128 = arith.mulf %127, %126 : vector<1x16x16xf32>
    %129 = arith.addf %124, %128 : vector<1x16x16xf32>
    %c7 = arith.constant 7 : index
    %130 = memref.load %arg2[%c7] : memref<98xf32, #tpu.memory_space<smem>>
    %131 = vector.extract_strided_slice %54 {offsets = [0, 1, 0], sizes = [1, 16, 16], strides = [1, 1, 1]} : vector<1x22x22xf32> to vector<1x16x16xf32>
    %132 = vector.broadcast %130 : f32 to vector<1x16x16xf32>
    %133 = arith.mulf %132, %131 : vector<1x16x16xf32>
    %134 = arith.addf %129, %133 : vector<1x16x16xf32>
    %c56 = arith.constant 56 : index
    %135 = memref.load %arg2[%c56] : memref<98xf32, #tpu.memory_space<smem>>
    %136 = vector.extract_strided_slice %58 {offsets = [0, 1, 0], sizes = [1, 16, 16], strides = [1, 1, 1]} : vector<1x22x22xf32> to vector<1x16x16xf32>
    %137 = vector.broadcast %135 : f32 to vector<1x16x16xf32>
    %138 = arith.mulf %137, %136 : vector<1x16x16xf32>
    %139 = arith.addf %134, %138 : vector<1x16x16xf32>
    %c8 = arith.constant 8 : index
    %140 = memref.load %arg2[%c8] : memref<98xf32, #tpu.memory_space<smem>>
    %141 = vector.extract_strided_slice %54 {offsets = [0, 1, 1], sizes = [1, 16, 16], strides = [1, 1, 1]} : vector<1x22x22xf32> to vector<1x16x16xf32>
    %142 = vector.broadcast %140 : f32 to vector<1x16x16xf32>
    %143 = arith.mulf %142, %141 : vector<1x16x16xf32>
    %144 = arith.addf %139, %143 : vector<1x16x16xf32>
    %c57 = arith.constant 57 : index
    %145 = memref.load %arg2[%c57] : memref<98xf32, #tpu.memory_space<smem>>
    %146 = vector.extract_strided_slice %58 {offsets = [0, 1, 1], sizes = [1, 16, 16], strides = [1, 1, 1]} : vector<1x22x22xf32> to vector<1x16x16xf32>
    %147 = vector.broadcast %145 : f32 to vector<1x16x16xf32>
    %148 = arith.mulf %147, %146 : vector<1x16x16xf32>
    %149 = arith.addf %144, %148 : vector<1x16x16xf32>
    %c9 = arith.constant 9 : index
    %150 = memref.load %arg2[%c9] : memref<98xf32, #tpu.memory_space<smem>>
    %151 = vector.extract_strided_slice %54 {offsets = [0, 1, 2], sizes = [1, 16, 16], strides = [1, 1, 1]} : vector<1x22x22xf32> to vector<1x16x16xf32>
    %152 = vector.broadcast %150 : f32 to vector<1x16x16xf32>
    %153 = arith.mulf %152, %151 : vector<1x16x16xf32>
    %154 = arith.addf %149, %153 : vector<1x16x16xf32>
    %c58 = arith.constant 58 : index
    %155 = memref.load %arg2[%c58] : memref<98xf32, #tpu.memory_space<smem>>
    %156 = vector.extract_strided_slice %58 {offsets = [0, 1, 2], sizes = [1, 16, 16], strides = [1, 1, 1]} : vector<1x22x22xf32> to vector<1x16x16xf32>
    %157 = vector.broadcast %155 : f32 to vector<1x16x16xf32>
    %158 = arith.mulf %157, %156 : vector<1x16x16xf32>
    %159 = arith.addf %154, %158 : vector<1x16x16xf32>
    %c10 = arith.constant 10 : index
    %160 = memref.load %arg2[%c10] : memref<98xf32, #tpu.memory_space<smem>>
    %161 = vector.extract_strided_slice %54 {offsets = [0, 1, 3], sizes = [1, 16, 16], strides = [1, 1, 1]} : vector<1x22x22xf32> to vector<1x16x16xf32>
    %162 = vector.broadcast %160 : f32 to vector<1x16x16xf32>
    %163 = arith.mulf %162, %161 : vector<1x16x16xf32>
    %164 = arith.addf %159, %163 : vector<1x16x16xf32>
    %c59 = arith.constant 59 : index
    %165 = memref.load %arg2[%c59] : memref<98xf32, #tpu.memory_space<smem>>
    %166 = vector.extract_strided_slice %58 {offsets = [0, 1, 3], sizes = [1, 16, 16], strides = [1, 1, 1]} : vector<1x22x22xf32> to vector<1x16x16xf32>
    %167 = vector.broadcast %165 : f32 to vector<1x16x16xf32>
    %168 = arith.mulf %167, %166 : vector<1x16x16xf32>
    %169 = arith.addf %164, %168 : vector<1x16x16xf32>
    %c11 = arith.constant 11 : index
    %170 = memref.load %arg2[%c11] : memref<98xf32, #tpu.memory_space<smem>>
    %171 = vector.extract_strided_slice %54 {offsets = [0, 1, 4], sizes = [1, 16, 16], strides = [1, 1, 1]} : vector<1x22x22xf32> to vector<1x16x16xf32>
    %172 = vector.broadcast %170 : f32 to vector<1x16x16xf32>
    %173 = arith.mulf %172, %171 : vector<1x16x16xf32>
    %174 = arith.addf %169, %173 : vector<1x16x16xf32>
    %c60 = arith.constant 60 : index
    %175 = memref.load %arg2[%c60] : memref<98xf32, #tpu.memory_space<smem>>
    %176 = vector.extract_strided_slice %58 {offsets = [0, 1, 4], sizes = [1, 16, 16], strides = [1, 1, 1]} : vector<1x22x22xf32> to vector<1x16x16xf32>
    %177 = vector.broadcast %175 : f32 to vector<1x16x16xf32>
    %178 = arith.mulf %177, %176 : vector<1x16x16xf32>
    %179 = arith.addf %174, %178 : vector<1x16x16xf32>
    %c12 = arith.constant 12 : index
    %180 = memref.load %arg2[%c12] : memref<98xf32, #tpu.memory_space<smem>>
    %181 = vector.extract_strided_slice %54 {offsets = [0, 1, 5], sizes = [1, 16, 16], strides = [1, 1, 1]} : vector<1x22x22xf32> to vector<1x16x16xf32>
    %182 = vector.broadcast %180 : f32 to vector<1x16x16xf32>
    %183 = arith.mulf %182, %181 : vector<1x16x16xf32>
    %184 = arith.addf %179, %183 : vector<1x16x16xf32>
    %c61 = arith.constant 61 : index
    %185 = memref.load %arg2[%c61] : memref<98xf32, #tpu.memory_space<smem>>
    %186 = vector.extract_strided_slice %58 {offsets = [0, 1, 5], sizes = [1, 16, 16], strides = [1, 1, 1]} : vector<1x22x22xf32> to vector<1x16x16xf32>
    %187 = vector.broadcast %185 : f32 to vector<1x16x16xf32>
    %188 = arith.mulf %187, %186 : vector<1x16x16xf32>
    %189 = arith.addf %184, %188 : vector<1x16x16xf32>
    %c13 = arith.constant 13 : index
    %190 = memref.load %arg2[%c13] : memref<98xf32, #tpu.memory_space<smem>>
    %191 = vector.extract_strided_slice %54 {offsets = [0, 1, 6], sizes = [1, 16, 16], strides = [1, 1, 1]} : vector<1x22x22xf32> to vector<1x16x16xf32>
    %192 = vector.broadcast %190 : f32 to vector<1x16x16xf32>
    %193 = arith.mulf %192, %191 : vector<1x16x16xf32>
    %194 = arith.addf %189, %193 : vector<1x16x16xf32>
    %c62 = arith.constant 62 : index
    %195 = memref.load %arg2[%c62] : memref<98xf32, #tpu.memory_space<smem>>
    %196 = vector.extract_strided_slice %58 {offsets = [0, 1, 6], sizes = [1, 16, 16], strides = [1, 1, 1]} : vector<1x22x22xf32> to vector<1x16x16xf32>
    %197 = vector.broadcast %195 : f32 to vector<1x16x16xf32>
    %198 = arith.mulf %197, %196 : vector<1x16x16xf32>
    %199 = arith.addf %194, %198 : vector<1x16x16xf32>
    %c14 = arith.constant 14 : index
    %200 = memref.load %arg2[%c14] : memref<98xf32, #tpu.memory_space<smem>>
    %201 = vector.extract_strided_slice %54 {offsets = [0, 2, 0], sizes = [1, 16, 16], strides = [1, 1, 1]} : vector<1x22x22xf32> to vector<1x16x16xf32>
    %202 = vector.broadcast %200 : f32 to vector<1x16x16xf32>
    %203 = arith.mulf %202, %201 : vector<1x16x16xf32>
    %204 = arith.addf %199, %203 : vector<1x16x16xf32>
    %c63 = arith.constant 63 : index
    %205 = memref.load %arg2[%c63] : memref<98xf32, #tpu.memory_space<smem>>
    %206 = vector.extract_strided_slice %58 {offsets = [0, 2, 0], sizes = [1, 16, 16], strides = [1, 1, 1]} : vector<1x22x22xf32> to vector<1x16x16xf32>
    %207 = vector.broadcast %205 : f32 to vector<1x16x16xf32>
    %208 = arith.mulf %207, %206 : vector<1x16x16xf32>
    %209 = arith.addf %204, %208 : vector<1x16x16xf32>
    %c15 = arith.constant 15 : index
    %210 = memref.load %arg2[%c15] : memref<98xf32, #tpu.memory_space<smem>>
    %211 = vector.extract_strided_slice %54 {offsets = [0, 2, 1], sizes = [1, 16, 16], strides = [1, 1, 1]} : vector<1x22x22xf32> to vector<1x16x16xf32>
    %212 = vector.broadcast %210 : f32 to vector<1x16x16xf32>
    %213 = arith.mulf %212, %211 : vector<1x16x16xf32>
    %214 = arith.addf %209, %213 : vector<1x16x16xf32>
    %c64 = arith.constant 64 : index
    %215 = memref.load %arg2[%c64] : memref<98xf32, #tpu.memory_space<smem>>
    %216 = vector.extract_strided_slice %58 {offsets = [0, 2, 1], sizes = [1, 16, 16], strides = [1, 1, 1]} : vector<1x22x22xf32> to vector<1x16x16xf32>
    %217 = vector.broadcast %215 : f32 to vector<1x16x16xf32>
    %218 = arith.mulf %217, %216 : vector<1x16x16xf32>
    %219 = arith.addf %214, %218 : vector<1x16x16xf32>
    %c16 = arith.constant 16 : index
    %220 = memref.load %arg2[%c16] : memref<98xf32, #tpu.memory_space<smem>>
    %221 = vector.extract_strided_slice %54 {offsets = [0, 2, 2], sizes = [1, 16, 16], strides = [1, 1, 1]} : vector<1x22x22xf32> to vector<1x16x16xf32>
    %222 = vector.broadcast %220 : f32 to vector<1x16x16xf32>
    %223 = arith.mulf %222, %221 : vector<1x16x16xf32>
    %224 = arith.addf %219, %223 : vector<1x16x16xf32>
    %c65 = arith.constant 65 : index
    %225 = memref.load %arg2[%c65] : memref<98xf32, #tpu.memory_space<smem>>
    %226 = vector.extract_strided_slice %58 {offsets = [0, 2, 2], sizes = [1, 16, 16], strides = [1, 1, 1]} : vector<1x22x22xf32> to vector<1x16x16xf32>
    %227 = vector.broadcast %225 : f32 to vector<1x16x16xf32>
    %228 = arith.mulf %227, %226 : vector<1x16x16xf32>
    %229 = arith.addf %224, %228 : vector<1x16x16xf32>
    %c17 = arith.constant 17 : index
    %230 = memref.load %arg2[%c17] : memref<98xf32, #tpu.memory_space<smem>>
    %231 = vector.extract_strided_slice %54 {offsets = [0, 2, 3], sizes = [1, 16, 16], strides = [1, 1, 1]} : vector<1x22x22xf32> to vector<1x16x16xf32>
    %232 = vector.broadcast %230 : f32 to vector<1x16x16xf32>
    %233 = arith.mulf %232, %231 : vector<1x16x16xf32>
    %234 = arith.addf %229, %233 : vector<1x16x16xf32>
    %c66 = arith.constant 66 : index
    %235 = memref.load %arg2[%c66] : memref<98xf32, #tpu.memory_space<smem>>
    %236 = vector.extract_strided_slice %58 {offsets = [0, 2, 3], sizes = [1, 16, 16], strides = [1, 1, 1]} : vector<1x22x22xf32> to vector<1x16x16xf32>
    %237 = vector.broadcast %235 : f32 to vector<1x16x16xf32>
    %238 = arith.mulf %237, %236 : vector<1x16x16xf32>
    %239 = arith.addf %234, %238 : vector<1x16x16xf32>
    %c18 = arith.constant 18 : index
    %240 = memref.load %arg2[%c18] : memref<98xf32, #tpu.memory_space<smem>>
    %241 = vector.extract_strided_slice %54 {offsets = [0, 2, 4], sizes = [1, 16, 16], strides = [1, 1, 1]} : vector<1x22x22xf32> to vector<1x16x16xf32>
    %242 = vector.broadcast %240 : f32 to vector<1x16x16xf32>
    %243 = arith.mulf %242, %241 : vector<1x16x16xf32>
    %244 = arith.addf %239, %243 : vector<1x16x16xf32>
    %c67 = arith.constant 67 : index
    %245 = memref.load %arg2[%c67] : memref<98xf32, #tpu.memory_space<smem>>
    %246 = vector.extract_strided_slice %58 {offsets = [0, 2, 4], sizes = [1, 16, 16], strides = [1, 1, 1]} : vector<1x22x22xf32> to vector<1x16x16xf32>
    %247 = vector.broadcast %245 : f32 to vector<1x16x16xf32>
    %248 = arith.mulf %247, %246 : vector<1x16x16xf32>
    %249 = arith.addf %244, %248 : vector<1x16x16xf32>
    %c19 = arith.constant 19 : index
    %250 = memref.load %arg2[%c19] : memref<98xf32, #tpu.memory_space<smem>>
    %251 = vector.extract_strided_slice %54 {offsets = [0, 2, 5], sizes = [1, 16, 16], strides = [1, 1, 1]} : vector<1x22x22xf32> to vector<1x16x16xf32>
    %252 = vector.broadcast %250 : f32 to vector<1x16x16xf32>
    %253 = arith.mulf %252, %251 : vector<1x16x16xf32>
    %254 = arith.addf %249, %253 : vector<1x16x16xf32>
    %c68 = arith.constant 68 : index
    %255 = memref.load %arg2[%c68] : memref<98xf32, #tpu.memory_space<smem>>
    %256 = vector.extract_strided_slice %58 {offsets = [0, 2, 5], sizes = [1, 16, 16], strides = [1, 1, 1]} : vector<1x22x22xf32> to vector<1x16x16xf32>
    %257 = vector.broadcast %255 : f32 to vector<1x16x16xf32>
    %258 = arith.mulf %257, %256 : vector<1x16x16xf32>
    %259 = arith.addf %254, %258 : vector<1x16x16xf32>
    %c20 = arith.constant 20 : index
    %260 = memref.load %arg2[%c20] : memref<98xf32, #tpu.memory_space<smem>>
    %261 = vector.extract_strided_slice %54 {offsets = [0, 2, 6], sizes = [1, 16, 16], strides = [1, 1, 1]} : vector<1x22x22xf32> to vector<1x16x16xf32>
    %262 = vector.broadcast %260 : f32 to vector<1x16x16xf32>
    %263 = arith.mulf %262, %261 : vector<1x16x16xf32>
    %264 = arith.addf %259, %263 : vector<1x16x16xf32>
    %c69 = arith.constant 69 : index
    %265 = memref.load %arg2[%c69] : memref<98xf32, #tpu.memory_space<smem>>
    %266 = vector.extract_strided_slice %58 {offsets = [0, 2, 6], sizes = [1, 16, 16], strides = [1, 1, 1]} : vector<1x22x22xf32> to vector<1x16x16xf32>
    %267 = vector.broadcast %265 : f32 to vector<1x16x16xf32>
    %268 = arith.mulf %267, %266 : vector<1x16x16xf32>
    %269 = arith.addf %264, %268 : vector<1x16x16xf32>
    %c21 = arith.constant 21 : index
    %270 = memref.load %arg2[%c21] : memref<98xf32, #tpu.memory_space<smem>>
    %271 = vector.extract_strided_slice %54 {offsets = [0, 3, 0], sizes = [1, 16, 16], strides = [1, 1, 1]} : vector<1x22x22xf32> to vector<1x16x16xf32>
    %272 = vector.broadcast %270 : f32 to vector<1x16x16xf32>
    %273 = arith.mulf %272, %271 : vector<1x16x16xf32>
    %274 = arith.addf %269, %273 : vector<1x16x16xf32>
    %c70 = arith.constant 70 : index
    %275 = memref.load %arg2[%c70] : memref<98xf32, #tpu.memory_space<smem>>
    %276 = vector.extract_strided_slice %58 {offsets = [0, 3, 0], sizes = [1, 16, 16], strides = [1, 1, 1]} : vector<1x22x22xf32> to vector<1x16x16xf32>
    %277 = vector.broadcast %275 : f32 to vector<1x16x16xf32>
    %278 = arith.mulf %277, %276 : vector<1x16x16xf32>
    %279 = arith.addf %274, %278 : vector<1x16x16xf32>
    %c22 = arith.constant 22 : index
    %280 = memref.load %arg2[%c22] : memref<98xf32, #tpu.memory_space<smem>>
    %281 = vector.extract_strided_slice %54 {offsets = [0, 3, 1], sizes = [1, 16, 16], strides = [1, 1, 1]} : vector<1x22x22xf32> to vector<1x16x16xf32>
    %282 = vector.broadcast %280 : f32 to vector<1x16x16xf32>
    %283 = arith.mulf %282, %281 : vector<1x16x16xf32>
    %284 = arith.addf %279, %283 : vector<1x16x16xf32>
    %c71 = arith.constant 71 : index
    %285 = memref.load %arg2[%c71] : memref<98xf32, #tpu.memory_space<smem>>
    %286 = vector.extract_strided_slice %58 {offsets = [0, 3, 1], sizes = [1, 16, 16], strides = [1, 1, 1]} : vector<1x22x22xf32> to vector<1x16x16xf32>
    %287 = vector.broadcast %285 : f32 to vector<1x16x16xf32>
    %288 = arith.mulf %287, %286 : vector<1x16x16xf32>
    %289 = arith.addf %284, %288 : vector<1x16x16xf32>
    %c23 = arith.constant 23 : index
    %290 = memref.load %arg2[%c23] : memref<98xf32, #tpu.memory_space<smem>>
    %291 = vector.extract_strided_slice %54 {offsets = [0, 3, 2], sizes = [1, 16, 16], strides = [1, 1, 1]} : vector<1x22x22xf32> to vector<1x16x16xf32>
    %292 = vector.broadcast %290 : f32 to vector<1x16x16xf32>
    %293 = arith.mulf %292, %291 : vector<1x16x16xf32>
    %294 = arith.addf %289, %293 : vector<1x16x16xf32>
    %c72 = arith.constant 72 : index
    %295 = memref.load %arg2[%c72] : memref<98xf32, #tpu.memory_space<smem>>
    %296 = vector.extract_strided_slice %58 {offsets = [0, 3, 2], sizes = [1, 16, 16], strides = [1, 1, 1]} : vector<1x22x22xf32> to vector<1x16x16xf32>
    %297 = vector.broadcast %295 : f32 to vector<1x16x16xf32>
    %298 = arith.mulf %297, %296 : vector<1x16x16xf32>
    %299 = arith.addf %294, %298 : vector<1x16x16xf32>
    %c24 = arith.constant 24 : index
    %300 = memref.load %arg2[%c24] : memref<98xf32, #tpu.memory_space<smem>>
    %301 = vector.extract_strided_slice %54 {offsets = [0, 3, 3], sizes = [1, 16, 16], strides = [1, 1, 1]} : vector<1x22x22xf32> to vector<1x16x16xf32>
    %302 = vector.broadcast %300 : f32 to vector<1x16x16xf32>
    %303 = arith.mulf %302, %301 : vector<1x16x16xf32>
    %304 = arith.addf %299, %303 : vector<1x16x16xf32>
    %c73 = arith.constant 73 : index
    %305 = memref.load %arg2[%c73] : memref<98xf32, #tpu.memory_space<smem>>
    %306 = vector.extract_strided_slice %58 {offsets = [0, 3, 3], sizes = [1, 16, 16], strides = [1, 1, 1]} : vector<1x22x22xf32> to vector<1x16x16xf32>
    %307 = vector.broadcast %305 : f32 to vector<1x16x16xf32>
    %308 = arith.mulf %307, %306 : vector<1x16x16xf32>
    %309 = arith.addf %304, %308 : vector<1x16x16xf32>
    %c25 = arith.constant 25 : index
    %310 = memref.load %arg2[%c25] : memref<98xf32, #tpu.memory_space<smem>>
    %311 = vector.extract_strided_slice %54 {offsets = [0, 3, 4], sizes = [1, 16, 16], strides = [1, 1, 1]} : vector<1x22x22xf32> to vector<1x16x16xf32>
    %312 = vector.broadcast %310 : f32 to vector<1x16x16xf32>
    %313 = arith.mulf %312, %311 : vector<1x16x16xf32>
    %314 = arith.addf %309, %313 : vector<1x16x16xf32>
    %c74 = arith.constant 74 : index
    %315 = memref.load %arg2[%c74] : memref<98xf32, #tpu.memory_space<smem>>
    %316 = vector.extract_strided_slice %58 {offsets = [0, 3, 4], sizes = [1, 16, 16], strides = [1, 1, 1]} : vector<1x22x22xf32> to vector<1x16x16xf32>
    %317 = vector.broadcast %315 : f32 to vector<1x16x16xf32>
    %318 = arith.mulf %317, %316 : vector<1x16x16xf32>
    %319 = arith.addf %314, %318 : vector<1x16x16xf32>
    %c26 = arith.constant 26 : index
    %320 = memref.load %arg2[%c26] : memref<98xf32, #tpu.memory_space<smem>>
    %321 = vector.extract_strided_slice %54 {offsets = [0, 3, 5], sizes = [1, 16, 16], strides = [1, 1, 1]} : vector<1x22x22xf32> to vector<1x16x16xf32>
    %322 = vector.broadcast %320 : f32 to vector<1x16x16xf32>
    %323 = arith.mulf %322, %321 : vector<1x16x16xf32>
    %324 = arith.addf %319, %323 : vector<1x16x16xf32>
    %c75 = arith.constant 75 : index
    %325 = memref.load %arg2[%c75] : memref<98xf32, #tpu.memory_space<smem>>
    %326 = vector.extract_strided_slice %58 {offsets = [0, 3, 5], sizes = [1, 16, 16], strides = [1, 1, 1]} : vector<1x22x22xf32> to vector<1x16x16xf32>
    %327 = vector.broadcast %325 : f32 to vector<1x16x16xf32>
    %328 = arith.mulf %327, %326 : vector<1x16x16xf32>
    %329 = arith.addf %324, %328 : vector<1x16x16xf32>
    %c27 = arith.constant 27 : index
    %330 = memref.load %arg2[%c27] : memref<98xf32, #tpu.memory_space<smem>>
    %331 = vector.extract_strided_slice %54 {offsets = [0, 3, 6], sizes = [1, 16, 16], strides = [1, 1, 1]} : vector<1x22x22xf32> to vector<1x16x16xf32>
    %332 = vector.broadcast %330 : f32 to vector<1x16x16xf32>
    %333 = arith.mulf %332, %331 : vector<1x16x16xf32>
    %334 = arith.addf %329, %333 : vector<1x16x16xf32>
    %c76 = arith.constant 76 : index
    %335 = memref.load %arg2[%c76] : memref<98xf32, #tpu.memory_space<smem>>
    %336 = vector.extract_strided_slice %58 {offsets = [0, 3, 6], sizes = [1, 16, 16], strides = [1, 1, 1]} : vector<1x22x22xf32> to vector<1x16x16xf32>
    %337 = vector.broadcast %335 : f32 to vector<1x16x16xf32>
    %338 = arith.mulf %337, %336 : vector<1x16x16xf32>
    %339 = arith.addf %334, %338 : vector<1x16x16xf32>
    %c28 = arith.constant 28 : index
    %340 = memref.load %arg2[%c28] : memref<98xf32, #tpu.memory_space<smem>>
    %341 = vector.extract_strided_slice %54 {offsets = [0, 4, 0], sizes = [1, 16, 16], strides = [1, 1, 1]} : vector<1x22x22xf32> to vector<1x16x16xf32>
    %342 = vector.broadcast %340 : f32 to vector<1x16x16xf32>
    %343 = arith.mulf %342, %341 : vector<1x16x16xf32>
    %344 = arith.addf %339, %343 : vector<1x16x16xf32>
    %c77 = arith.constant 77 : index
    %345 = memref.load %arg2[%c77] : memref<98xf32, #tpu.memory_space<smem>>
    %346 = vector.extract_strided_slice %58 {offsets = [0, 4, 0], sizes = [1, 16, 16], strides = [1, 1, 1]} : vector<1x22x22xf32> to vector<1x16x16xf32>
    %347 = vector.broadcast %345 : f32 to vector<1x16x16xf32>
    %348 = arith.mulf %347, %346 : vector<1x16x16xf32>
    %349 = arith.addf %344, %348 : vector<1x16x16xf32>
    %c29 = arith.constant 29 : index
    %350 = memref.load %arg2[%c29] : memref<98xf32, #tpu.memory_space<smem>>
    %351 = vector.extract_strided_slice %54 {offsets = [0, 4, 1], sizes = [1, 16, 16], strides = [1, 1, 1]} : vector<1x22x22xf32> to vector<1x16x16xf32>
    %352 = vector.broadcast %350 : f32 to vector<1x16x16xf32>
    %353 = arith.mulf %352, %351 : vector<1x16x16xf32>
    %354 = arith.addf %349, %353 : vector<1x16x16xf32>
    %c78 = arith.constant 78 : index
    %355 = memref.load %arg2[%c78] : memref<98xf32, #tpu.memory_space<smem>>
    %356 = vector.extract_strided_slice %58 {offsets = [0, 4, 1], sizes = [1, 16, 16], strides = [1, 1, 1]} : vector<1x22x22xf32> to vector<1x16x16xf32>
    %357 = vector.broadcast %355 : f32 to vector<1x16x16xf32>
    %358 = arith.mulf %357, %356 : vector<1x16x16xf32>
    %359 = arith.addf %354, %358 : vector<1x16x16xf32>
    %c30 = arith.constant 30 : index
    %360 = memref.load %arg2[%c30] : memref<98xf32, #tpu.memory_space<smem>>
    %361 = vector.extract_strided_slice %54 {offsets = [0, 4, 2], sizes = [1, 16, 16], strides = [1, 1, 1]} : vector<1x22x22xf32> to vector<1x16x16xf32>
    %362 = vector.broadcast %360 : f32 to vector<1x16x16xf32>
    %363 = arith.mulf %362, %361 : vector<1x16x16xf32>
    %364 = arith.addf %359, %363 : vector<1x16x16xf32>
    %c79 = arith.constant 79 : index
    %365 = memref.load %arg2[%c79] : memref<98xf32, #tpu.memory_space<smem>>
    %366 = vector.extract_strided_slice %58 {offsets = [0, 4, 2], sizes = [1, 16, 16], strides = [1, 1, 1]} : vector<1x22x22xf32> to vector<1x16x16xf32>
    %367 = vector.broadcast %365 : f32 to vector<1x16x16xf32>
    %368 = arith.mulf %367, %366 : vector<1x16x16xf32>
    %369 = arith.addf %364, %368 : vector<1x16x16xf32>
    %c31 = arith.constant 31 : index
    %370 = memref.load %arg2[%c31] : memref<98xf32, #tpu.memory_space<smem>>
    %371 = vector.extract_strided_slice %54 {offsets = [0, 4, 3], sizes = [1, 16, 16], strides = [1, 1, 1]} : vector<1x22x22xf32> to vector<1x16x16xf32>
    %372 = vector.broadcast %370 : f32 to vector<1x16x16xf32>
    %373 = arith.mulf %372, %371 : vector<1x16x16xf32>
    %374 = arith.addf %369, %373 : vector<1x16x16xf32>
    %c80 = arith.constant 80 : index
    %375 = memref.load %arg2[%c80] : memref<98xf32, #tpu.memory_space<smem>>
    %376 = vector.extract_strided_slice %58 {offsets = [0, 4, 3], sizes = [1, 16, 16], strides = [1, 1, 1]} : vector<1x22x22xf32> to vector<1x16x16xf32>
    %377 = vector.broadcast %375 : f32 to vector<1x16x16xf32>
    %378 = arith.mulf %377, %376 : vector<1x16x16xf32>
    %379 = arith.addf %374, %378 : vector<1x16x16xf32>
    %c32 = arith.constant 32 : index
    %380 = memref.load %arg2[%c32] : memref<98xf32, #tpu.memory_space<smem>>
    %381 = vector.extract_strided_slice %54 {offsets = [0, 4, 4], sizes = [1, 16, 16], strides = [1, 1, 1]} : vector<1x22x22xf32> to vector<1x16x16xf32>
    %382 = vector.broadcast %380 : f32 to vector<1x16x16xf32>
    %383 = arith.mulf %382, %381 : vector<1x16x16xf32>
    %384 = arith.addf %379, %383 : vector<1x16x16xf32>
    %c81 = arith.constant 81 : index
    %385 = memref.load %arg2[%c81] : memref<98xf32, #tpu.memory_space<smem>>
    %386 = vector.extract_strided_slice %58 {offsets = [0, 4, 4], sizes = [1, 16, 16], strides = [1, 1, 1]} : vector<1x22x22xf32> to vector<1x16x16xf32>
    %387 = vector.broadcast %385 : f32 to vector<1x16x16xf32>
    %388 = arith.mulf %387, %386 : vector<1x16x16xf32>
    %389 = arith.addf %384, %388 : vector<1x16x16xf32>
    %c33 = arith.constant 33 : index
    %390 = memref.load %arg2[%c33] : memref<98xf32, #tpu.memory_space<smem>>
    %391 = vector.extract_strided_slice %54 {offsets = [0, 4, 5], sizes = [1, 16, 16], strides = [1, 1, 1]} : vector<1x22x22xf32> to vector<1x16x16xf32>
    %392 = vector.broadcast %390 : f32 to vector<1x16x16xf32>
    %393 = arith.mulf %392, %391 : vector<1x16x16xf32>
    %394 = arith.addf %389, %393 : vector<1x16x16xf32>
    %c82 = arith.constant 82 : index
    %395 = memref.load %arg2[%c82] : memref<98xf32, #tpu.memory_space<smem>>
    %396 = vector.extract_strided_slice %58 {offsets = [0, 4, 5], sizes = [1, 16, 16], strides = [1, 1, 1]} : vector<1x22x22xf32> to vector<1x16x16xf32>
    %397 = vector.broadcast %395 : f32 to vector<1x16x16xf32>
    %398 = arith.mulf %397, %396 : vector<1x16x16xf32>
    %399 = arith.addf %394, %398 : vector<1x16x16xf32>
    %c34 = arith.constant 34 : index
    %400 = memref.load %arg2[%c34] : memref<98xf32, #tpu.memory_space<smem>>
    %401 = vector.extract_strided_slice %54 {offsets = [0, 4, 6], sizes = [1, 16, 16], strides = [1, 1, 1]} : vector<1x22x22xf32> to vector<1x16x16xf32>
    %402 = vector.broadcast %400 : f32 to vector<1x16x16xf32>
    %403 = arith.mulf %402, %401 : vector<1x16x16xf32>
    %404 = arith.addf %399, %403 : vector<1x16x16xf32>
    %c83 = arith.constant 83 : index
    %405 = memref.load %arg2[%c83] : memref<98xf32, #tpu.memory_space<smem>>
    %406 = vector.extract_strided_slice %58 {offsets = [0, 4, 6], sizes = [1, 16, 16], strides = [1, 1, 1]} : vector<1x22x22xf32> to vector<1x16x16xf32>
    %407 = vector.broadcast %405 : f32 to vector<1x16x16xf32>
    %408 = arith.mulf %407, %406 : vector<1x16x16xf32>
    %409 = arith.addf %404, %408 : vector<1x16x16xf32>
    %c35 = arith.constant 35 : index
    %410 = memref.load %arg2[%c35] : memref<98xf32, #tpu.memory_space<smem>>
    %411 = vector.extract_strided_slice %54 {offsets = [0, 5, 0], sizes = [1, 16, 16], strides = [1, 1, 1]} : vector<1x22x22xf32> to vector<1x16x16xf32>
    %412 = vector.broadcast %410 : f32 to vector<1x16x16xf32>
    %413 = arith.mulf %412, %411 : vector<1x16x16xf32>
    %414 = arith.addf %409, %413 : vector<1x16x16xf32>
    %c84 = arith.constant 84 : index
    %415 = memref.load %arg2[%c84] : memref<98xf32, #tpu.memory_space<smem>>
    %416 = vector.extract_strided_slice %58 {offsets = [0, 5, 0], sizes = [1, 16, 16], strides = [1, 1, 1]} : vector<1x22x22xf32> to vector<1x16x16xf32>
    %417 = vector.broadcast %415 : f32 to vector<1x16x16xf32>
    %418 = arith.mulf %417, %416 : vector<1x16x16xf32>
    %419 = arith.addf %414, %418 : vector<1x16x16xf32>
    %c36 = arith.constant 36 : index
    %420 = memref.load %arg2[%c36] : memref<98xf32, #tpu.memory_space<smem>>
    %421 = vector.extract_strided_slice %54 {offsets = [0, 5, 1], sizes = [1, 16, 16], strides = [1, 1, 1]} : vector<1x22x22xf32> to vector<1x16x16xf32>
    %422 = vector.broadcast %420 : f32 to vector<1x16x16xf32>
    %423 = arith.mulf %422, %421 : vector<1x16x16xf32>
    %424 = arith.addf %419, %423 : vector<1x16x16xf32>
    %c85 = arith.constant 85 : index
    %425 = memref.load %arg2[%c85] : memref<98xf32, #tpu.memory_space<smem>>
    %426 = vector.extract_strided_slice %58 {offsets = [0, 5, 1], sizes = [1, 16, 16], strides = [1, 1, 1]} : vector<1x22x22xf32> to vector<1x16x16xf32>
    %427 = vector.broadcast %425 : f32 to vector<1x16x16xf32>
    %428 = arith.mulf %427, %426 : vector<1x16x16xf32>
    %429 = arith.addf %424, %428 : vector<1x16x16xf32>
    %c37 = arith.constant 37 : index
    %430 = memref.load %arg2[%c37] : memref<98xf32, #tpu.memory_space<smem>>
    %431 = vector.extract_strided_slice %54 {offsets = [0, 5, 2], sizes = [1, 16, 16], strides = [1, 1, 1]} : vector<1x22x22xf32> to vector<1x16x16xf32>
    %432 = vector.broadcast %430 : f32 to vector<1x16x16xf32>
    %433 = arith.mulf %432, %431 : vector<1x16x16xf32>
    %434 = arith.addf %429, %433 : vector<1x16x16xf32>
    %c86 = arith.constant 86 : index
    %435 = memref.load %arg2[%c86] : memref<98xf32, #tpu.memory_space<smem>>
    %436 = vector.extract_strided_slice %58 {offsets = [0, 5, 2], sizes = [1, 16, 16], strides = [1, 1, 1]} : vector<1x22x22xf32> to vector<1x16x16xf32>
    %437 = vector.broadcast %435 : f32 to vector<1x16x16xf32>
    %438 = arith.mulf %437, %436 : vector<1x16x16xf32>
    %439 = arith.addf %434, %438 : vector<1x16x16xf32>
    %c38 = arith.constant 38 : index
    %440 = memref.load %arg2[%c38] : memref<98xf32, #tpu.memory_space<smem>>
    %441 = vector.extract_strided_slice %54 {offsets = [0, 5, 3], sizes = [1, 16, 16], strides = [1, 1, 1]} : vector<1x22x22xf32> to vector<1x16x16xf32>
    %442 = vector.broadcast %440 : f32 to vector<1x16x16xf32>
    %443 = arith.mulf %442, %441 : vector<1x16x16xf32>
    %444 = arith.addf %439, %443 : vector<1x16x16xf32>
    %c87 = arith.constant 87 : index
    %445 = memref.load %arg2[%c87] : memref<98xf32, #tpu.memory_space<smem>>
    %446 = vector.extract_strided_slice %58 {offsets = [0, 5, 3], sizes = [1, 16, 16], strides = [1, 1, 1]} : vector<1x22x22xf32> to vector<1x16x16xf32>
    %447 = vector.broadcast %445 : f32 to vector<1x16x16xf32>
    %448 = arith.mulf %447, %446 : vector<1x16x16xf32>
    %449 = arith.addf %444, %448 : vector<1x16x16xf32>
    %c39 = arith.constant 39 : index
    %450 = memref.load %arg2[%c39] : memref<98xf32, #tpu.memory_space<smem>>
    %451 = vector.extract_strided_slice %54 {offsets = [0, 5, 4], sizes = [1, 16, 16], strides = [1, 1, 1]} : vector<1x22x22xf32> to vector<1x16x16xf32>
    %452 = vector.broadcast %450 : f32 to vector<1x16x16xf32>
    %453 = arith.mulf %452, %451 : vector<1x16x16xf32>
    %454 = arith.addf %449, %453 : vector<1x16x16xf32>
    %c88 = arith.constant 88 : index
    %455 = memref.load %arg2[%c88] : memref<98xf32, #tpu.memory_space<smem>>
    %456 = vector.extract_strided_slice %58 {offsets = [0, 5, 4], sizes = [1, 16, 16], strides = [1, 1, 1]} : vector<1x22x22xf32> to vector<1x16x16xf32>
    %457 = vector.broadcast %455 : f32 to vector<1x16x16xf32>
    %458 = arith.mulf %457, %456 : vector<1x16x16xf32>
    %459 = arith.addf %454, %458 : vector<1x16x16xf32>
    %c40 = arith.constant 40 : index
    %460 = memref.load %arg2[%c40] : memref<98xf32, #tpu.memory_space<smem>>
    %461 = vector.extract_strided_slice %54 {offsets = [0, 5, 5], sizes = [1, 16, 16], strides = [1, 1, 1]} : vector<1x22x22xf32> to vector<1x16x16xf32>
    %462 = vector.broadcast %460 : f32 to vector<1x16x16xf32>
    %463 = arith.mulf %462, %461 : vector<1x16x16xf32>
    %464 = arith.addf %459, %463 : vector<1x16x16xf32>
    %c89 = arith.constant 89 : index
    %465 = memref.load %arg2[%c89] : memref<98xf32, #tpu.memory_space<smem>>
    %466 = vector.extract_strided_slice %58 {offsets = [0, 5, 5], sizes = [1, 16, 16], strides = [1, 1, 1]} : vector<1x22x22xf32> to vector<1x16x16xf32>
    %467 = vector.broadcast %465 : f32 to vector<1x16x16xf32>
    %468 = arith.mulf %467, %466 : vector<1x16x16xf32>
    %469 = arith.addf %464, %468 : vector<1x16x16xf32>
    %c41 = arith.constant 41 : index
    %470 = memref.load %arg2[%c41] : memref<98xf32, #tpu.memory_space<smem>>
    %471 = vector.extract_strided_slice %54 {offsets = [0, 5, 6], sizes = [1, 16, 16], strides = [1, 1, 1]} : vector<1x22x22xf32> to vector<1x16x16xf32>
    %472 = vector.broadcast %470 : f32 to vector<1x16x16xf32>
    %473 = arith.mulf %472, %471 : vector<1x16x16xf32>
    %474 = arith.addf %469, %473 : vector<1x16x16xf32>
    %c90 = arith.constant 90 : index
    %475 = memref.load %arg2[%c90] : memref<98xf32, #tpu.memory_space<smem>>
    %476 = vector.extract_strided_slice %58 {offsets = [0, 5, 6], sizes = [1, 16, 16], strides = [1, 1, 1]} : vector<1x22x22xf32> to vector<1x16x16xf32>
    %477 = vector.broadcast %475 : f32 to vector<1x16x16xf32>
    %478 = arith.mulf %477, %476 : vector<1x16x16xf32>
    %479 = arith.addf %474, %478 : vector<1x16x16xf32>
    %c42 = arith.constant 42 : index
    %480 = memref.load %arg2[%c42] : memref<98xf32, #tpu.memory_space<smem>>
    %481 = vector.extract_strided_slice %54 {offsets = [0, 6, 0], sizes = [1, 16, 16], strides = [1, 1, 1]} : vector<1x22x22xf32> to vector<1x16x16xf32>
    %482 = vector.broadcast %480 : f32 to vector<1x16x16xf32>
    %483 = arith.mulf %482, %481 : vector<1x16x16xf32>
    %484 = arith.addf %479, %483 : vector<1x16x16xf32>
    %c91 = arith.constant 91 : index
    %485 = memref.load %arg2[%c91] : memref<98xf32, #tpu.memory_space<smem>>
    %486 = vector.extract_strided_slice %58 {offsets = [0, 6, 0], sizes = [1, 16, 16], strides = [1, 1, 1]} : vector<1x22x22xf32> to vector<1x16x16xf32>
    %487 = vector.broadcast %485 : f32 to vector<1x16x16xf32>
    %488 = arith.mulf %487, %486 : vector<1x16x16xf32>
    %489 = arith.addf %484, %488 : vector<1x16x16xf32>
    %c43 = arith.constant 43 : index
    %490 = memref.load %arg2[%c43] : memref<98xf32, #tpu.memory_space<smem>>
    %491 = vector.extract_strided_slice %54 {offsets = [0, 6, 1], sizes = [1, 16, 16], strides = [1, 1, 1]} : vector<1x22x22xf32> to vector<1x16x16xf32>
    %492 = vector.broadcast %490 : f32 to vector<1x16x16xf32>
    %493 = arith.mulf %492, %491 : vector<1x16x16xf32>
    %494 = arith.addf %489, %493 : vector<1x16x16xf32>
    %c92 = arith.constant 92 : index
    %495 = memref.load %arg2[%c92] : memref<98xf32, #tpu.memory_space<smem>>
    %496 = vector.extract_strided_slice %58 {offsets = [0, 6, 1], sizes = [1, 16, 16], strides = [1, 1, 1]} : vector<1x22x22xf32> to vector<1x16x16xf32>
    %497 = vector.broadcast %495 : f32 to vector<1x16x16xf32>
    %498 = arith.mulf %497, %496 : vector<1x16x16xf32>
    %499 = arith.addf %494, %498 : vector<1x16x16xf32>
    %c44 = arith.constant 44 : index
    %500 = memref.load %arg2[%c44] : memref<98xf32, #tpu.memory_space<smem>>
    %501 = vector.extract_strided_slice %54 {offsets = [0, 6, 2], sizes = [1, 16, 16], strides = [1, 1, 1]} : vector<1x22x22xf32> to vector<1x16x16xf32>
    %502 = vector.broadcast %500 : f32 to vector<1x16x16xf32>
    %503 = arith.mulf %502, %501 : vector<1x16x16xf32>
    %504 = arith.addf %499, %503 : vector<1x16x16xf32>
    %c93 = arith.constant 93 : index
    %505 = memref.load %arg2[%c93] : memref<98xf32, #tpu.memory_space<smem>>
    %506 = vector.extract_strided_slice %58 {offsets = [0, 6, 2], sizes = [1, 16, 16], strides = [1, 1, 1]} : vector<1x22x22xf32> to vector<1x16x16xf32>
    %507 = vector.broadcast %505 : f32 to vector<1x16x16xf32>
    %508 = arith.mulf %507, %506 : vector<1x16x16xf32>
    %509 = arith.addf %504, %508 : vector<1x16x16xf32>
    %c45 = arith.constant 45 : index
    %510 = memref.load %arg2[%c45] : memref<98xf32, #tpu.memory_space<smem>>
    %511 = vector.extract_strided_slice %54 {offsets = [0, 6, 3], sizes = [1, 16, 16], strides = [1, 1, 1]} : vector<1x22x22xf32> to vector<1x16x16xf32>
    %512 = vector.broadcast %510 : f32 to vector<1x16x16xf32>
    %513 = arith.mulf %512, %511 : vector<1x16x16xf32>
    %514 = arith.addf %509, %513 : vector<1x16x16xf32>
    %c94 = arith.constant 94 : index
    %515 = memref.load %arg2[%c94] : memref<98xf32, #tpu.memory_space<smem>>
    %516 = vector.extract_strided_slice %58 {offsets = [0, 6, 3], sizes = [1, 16, 16], strides = [1, 1, 1]} : vector<1x22x22xf32> to vector<1x16x16xf32>
    %517 = vector.broadcast %515 : f32 to vector<1x16x16xf32>
    %518 = arith.mulf %517, %516 : vector<1x16x16xf32>
    %519 = arith.addf %514, %518 : vector<1x16x16xf32>
    %c46 = arith.constant 46 : index
    %520 = memref.load %arg2[%c46] : memref<98xf32, #tpu.memory_space<smem>>
    %521 = vector.extract_strided_slice %54 {offsets = [0, 6, 4], sizes = [1, 16, 16], strides = [1, 1, 1]} : vector<1x22x22xf32> to vector<1x16x16xf32>
    %522 = vector.broadcast %520 : f32 to vector<1x16x16xf32>
    %523 = arith.mulf %522, %521 : vector<1x16x16xf32>
    %524 = arith.addf %519, %523 : vector<1x16x16xf32>
    %c95 = arith.constant 95 : index
    %525 = memref.load %arg2[%c95] : memref<98xf32, #tpu.memory_space<smem>>
    %526 = vector.extract_strided_slice %58 {offsets = [0, 6, 4], sizes = [1, 16, 16], strides = [1, 1, 1]} : vector<1x22x22xf32> to vector<1x16x16xf32>
    %527 = vector.broadcast %525 : f32 to vector<1x16x16xf32>
    %528 = arith.mulf %527, %526 : vector<1x16x16xf32>
    %529 = arith.addf %524, %528 : vector<1x16x16xf32>
    %c47 = arith.constant 47 : index
    %530 = memref.load %arg2[%c47] : memref<98xf32, #tpu.memory_space<smem>>
    %531 = vector.extract_strided_slice %54 {offsets = [0, 6, 5], sizes = [1, 16, 16], strides = [1, 1, 1]} : vector<1x22x22xf32> to vector<1x16x16xf32>
    %532 = vector.broadcast %530 : f32 to vector<1x16x16xf32>
    %533 = arith.mulf %532, %531 : vector<1x16x16xf32>
    %534 = arith.addf %529, %533 : vector<1x16x16xf32>
    %c96 = arith.constant 96 : index
    %535 = memref.load %arg2[%c96] : memref<98xf32, #tpu.memory_space<smem>>
    %536 = vector.extract_strided_slice %58 {offsets = [0, 6, 5], sizes = [1, 16, 16], strides = [1, 1, 1]} : vector<1x22x22xf32> to vector<1x16x16xf32>
    %537 = vector.broadcast %535 : f32 to vector<1x16x16xf32>
    %538 = arith.mulf %537, %536 : vector<1x16x16xf32>
    %539 = arith.addf %534, %538 : vector<1x16x16xf32>
    %c48 = arith.constant 48 : index
    %540 = memref.load %arg2[%c48] : memref<98xf32, #tpu.memory_space<smem>>
    %541 = vector.extract_strided_slice %54 {offsets = [0, 6, 6], sizes = [1, 16, 16], strides = [1, 1, 1]} : vector<1x22x22xf32> to vector<1x16x16xf32>
    %542 = vector.broadcast %540 : f32 to vector<1x16x16xf32>
    %543 = arith.mulf %542, %541 : vector<1x16x16xf32>
    %544 = arith.addf %539, %543 : vector<1x16x16xf32>
    %c97 = arith.constant 97 : index
    %545 = memref.load %arg2[%c97] : memref<98xf32, #tpu.memory_space<smem>>
    %546 = vector.extract_strided_slice %58 {offsets = [0, 6, 6], sizes = [1, 16, 16], strides = [1, 1, 1]} : vector<1x22x22xf32> to vector<1x16x16xf32>
    %547 = vector.broadcast %545 : f32 to vector<1x16x16xf32>
    %548 = arith.mulf %547, %546 : vector<1x16x16xf32>
    %549 = arith.addf %544, %548 : vector<1x16x16xf32>
    %c0_24 = arith.constant 0 : index
    %550 = memref.load %arg3[%c0_24] : memref<1xf32, #tpu.memory_space<smem>>
    %551 = vector.broadcast %550 : f32 to vector<1x16x16xf32>
    %552 = arith.addf %549, %551 : vector<1x16x16xf32>
    %553 = arith.negf %552 : vector<1x16x16xf32>
    %554 = math.exp %553 : vector<1x16x16xf32>
    %cst_25 = arith.constant 1.000000e+00 : f32
    %555 = vector.broadcast %cst_25 : f32 to vector<1x16x16xf32>
    %556 = arith.addf %555, %554 : vector<1x16x16xf32>
    %557 = arith.divf %555, %556 : vector<1x16x16xf32>
    %558 = vector.shape_cast %557 : vector<1x16x16xf32> to vector<1x1x16x16xf32>
    %559 = vector.broadcast %558 : vector<1x1x16x16xf32> to vector<1x8x16x16xf32>
    %560 = arith.mulf %46, %559 : vector<1x8x16x16xf32>
    %c0_26 = arith.constant 0 : index
    %c0_27 = arith.constant 0 : index
    %c0_28 = arith.constant 0 : index
    %c0_29 = arith.constant 0 : index
    %561 = vector.load %arg5[%c0_26, %c0_27, %c0_28, %c0_29] : memref<1x8x16x16xf32, #tpu.memory_space<vmem>>, vector<1x8x16x16xf32>
    tpu.vector_store %arg5[%c0_26, %c0_27, %c0_28, %c0_29], %560 {strides = array<i32>} : memref<1x8x16x16xf32, #tpu.memory_space<vmem>>, vector<1x8x16x16xf32>,
    return
  }
  func.func @transform_0(%arg0: i32) -> i32 {
    %c0_i32 = arith.constant 0 : i32
    %c0_i32_0 = arith.constant 0 : i32
    return %c0_i32 : i32
  }
  func.func @transform_1(%arg0: i32) -> i32 {
    %c0_i32 = arith.constant 0 : i32
    %c0_i32_0 = arith.constant 0 : i32
    return %c0_i32 : i32
  }
  func.func @transform_2(%arg0: i32) -> i32 {
    %c0_i32 = arith.constant 0 : i32
    %c0_i32_0 = arith.constant 0 : i32
    return %c0_i32 : i32
  }
  func.func @transform_3(%arg0: i32) -> (i32, i32, i32, i32) {
    %c0_i32 = arith.constant 0 : i32
    %c0_i32_0 = arith.constant 0 : i32
    %c0_i32_1 = arith.constant 0 : i32
    %c0_i32_2 = arith.constant 0 : i32
    return %arg0, %c0_i32, %c0_i32_0, %c0_i32_1 : i32, i32, i32, i32
  }
  func.func @transform_4(%arg0: i32) -> (i32, i32, i32, i32) {
    %c0_i32 = arith.constant 0 : i32
    %c0_i32_0 = arith.constant 0 : i32
    %c0_i32_1 = arith.constant 0 : i32
    %c0_i32_2 = arith.constant 0 : i32
    return %arg0, %c0_i32, %c0_i32_0, %c0_i32_1 : i32, i32, i32, i32
  }
}

</mosaic_0001>

<llo_original>
// kernel: tpu_custom_call.1
$region0: #{tpu_custom_call.1}
  #allocation0 [shape = 'u32[]', space=smem, size = 0x4, offset = 0x4, fixed_abs, tag = 'smem constant byte address 0x4 - core index']
  #allocation1 [shape = 'u32[144,128]{1,0:T(1,128)}', space=vmem, size = 0x12000, scoped, tag = 'internal scratch']
  #allocation2 [shape = 'f32[1]{0:T(128)S(6)}', space=smem, size = 0x200, scoped, tag = 'scoped memory for tpu_custom_call.1']
  %s0 = inlined_call_operand.vmem [shape: f32[6], index: 0, kind: input, shape index: {}]
  %s1 = inlined_call_operand.vmem [shape: f32[98], index: 1, kind: input, shape index: {}]
  %s2 = inlined_call_operand.<no memory space> [shape: f32[1], index: 2, kind: input, shape index: {}]
  %s3 = inlined_call_operand.hbm [shape: f32[2,8,16,16], index: 3, kind: input, shape index: {}]
  %s4 = inlined_call_operand.hbm [shape: f32[2,8,16,16], index: 4, kind: output, shape index: {}]
  %s5 = sld [smem:[#allocation0]]
  $region61: #{tpu_custom_call.1} parent=0
    _
  %s7 = ssub.s32 1, %s5
  %s8 = scalar_select 0, %s7, %s5
  %9 = sst [smem:[#allocation2]] %s2
  $region1: #{tpu_custom_call.1} parent=0
    #allocation3 [shape = 'u8[512]{0}', space=smem, size = 0x200, scoped, tag = 'input window, operand 0, single buffered']
    #allocation4 [shape = 's32[2]{0}', space=sflag, size = 0x8, scoped, tag = 'scoped memory for tpu_custom_call.1']
    #allocation5 [shape = 's32[2]{0}', space=sflag, size = 0x8, scoped, tag = 'scoped memory for tpu_custom_call.1']
    #allocation6 [shape = 's32[2]{0}', space=sflag, size = 0x8, scoped, tag = 'scoped memory for tpu_custom_call.1']
    #allocation7 [shape = 'u8[512]{0}', space=smem, size = 0x200, scoped, tag = 'input window, operand 1, single buffered']
    #allocation8 [shape = 's32[1]{0}', space=sflag, size = 0x4, scoped, tag = 'scoped memory for tpu_custom_call.1']
    #allocation9 [shape = 'u8[131072]{0}', space=vmem, size = 0x20000, scoped, tag = 'input window, operand 3']
    #allocation10 [shape = 'u8[131072]{0}', space=vmem, size = 0x20000, scoped, tag = 'output window, operand 0']
    %10 = vsyncpa [#allocation6], 0
    %11 = vsyncpa [#allocation8], 0
    %12 = vsyncpa [#allocation4], 0
    %s13 = scalar_lea.sflag [#allocation4], 1
    %14 = vsyncpa %s13, 0
    %15 = vsyncpa [#allocation5], 0
    %s16 = scalar_lea.sflag [#allocation5], 1
    %17 = vsyncpa %s16, 0
    loop: start=0, step=1, limit=4
    $region2: #{tpu_custom_call.1} parent=1 // loop_pre_header
      _
    $region3: #{tpu_custom_call.1} parent=1 // loop_header
      %s19 = sphi 0, %s23
      %p20 = scmp.ge.s32.totalorder %s19, 4
      %s27 = sphi 0, %s27
      %s29 = sphi 0, %s27
      %s30 = sphi 0, %s29
      %s44 = sphi 0, %s30
      %s48 = sphi 0, %s48
      %s50 = sphi 0, %s48
      %s51 = sphi 0, %s50
      %s65 = sphi 0, %s51
      %s69 = sphi 0, %s69
      %s71 = sphi 0, %s69
      %s72 = sphi 0, %s71
      %s86 = sphi 0, %s72
      %s92 = sphi 0, %s94
      %s95 = sphi 0, %s92
      %s96 = sphi 0, %s95
      %s112 = sphi 0, %s96
      %s118 = sphi 0, %s120
      %s121 = sphi 0, %s118
      %s122 = sphi 0, %s121
      %s138 = sphi 0, %s122
    $region4: #{tpu_custom_call.1} parent=1 // loop_header_branch
      %22 = sbr.rel (%p20) target = $region8
    $region5: #{tpu_custom_call.1} parent=1 // loop_body
      %s24 = ssub.s32 %s19, 1
      %s25 = ssub.s32 %s19, 2
      %s26 = sadd.s32 %s19, 1
      %s28 = sadd.s32 %s27, 1
      %p31 = scmp.eq.s32.totalorder %s19, 1
      %p32 = scmp.ne.s32.totalorder %s27, %s29
      %p33 = scmp.eq.s32.totalorder %s19, 0
      %p34 = por %p32, %p33
      %p35 = scmp.ne.s32.totalorder %s27, %s29
      %p36 = scmp.eq.s32.totalorder %s24, 1
      %p37 = por %p35, %p36
      %p38 = scmp.ne.s32.totalorder %s29, %s30
      %p39 = scmp.eq.s32.totalorder %s24, 0
      %p40 = por %p38, %p39
      %p41 = scmp.ne.s32.totalorder %s29, %s30
      %p42 = scmp.eq.s32.totalorder %s25, 1
      %p43 = por %p41, %p42
      %p45 = scmp.ne.s32.totalorder %s30, %s44
      %p46 = scmp.eq.s32.totalorder %s25, 0
      %p47 = por %p45, %p46
      %s49 = sadd.s32 %s48, 1
      %p52 = scmp.eq.s32.totalorder %s19, 1
      %p53 = scmp.ne.s32.totalorder %s48, %s50
      %p54 = scmp.eq.s32.totalorder %s19, 0
      %p55 = por %p53, %p54
      %p56 = scmp.ne.s32.totalorder %s48, %s50
      %p57 = scmp.eq.s32.totalorder %s24, 1
      %p58 = por %p56, %p57
      %p59 = scmp.ne.s32.totalorder %s50, %s51
      %p60 = scmp.eq.s32.totalorder %s24, 0
      %p61 = por %p59, %p60
      %p62 = scmp.ne.s32.totalorder %s50, %s51
      %p63 = scmp.eq.s32.totalorder %s25, 1
      %p64 = por %p62, %p63
      %p66 = scmp.ne.s32.totalorder %s51, %s65
      %p67 = scmp.eq.s32.totalorder %s25, 0
      %p68 = por %p66, %p67
      %s70 = sadd.s32 %s69, 1
      %p73 = scmp.eq.s32.totalorder %s19, 1
      %p74 = scmp.ne.s32.totalorder %s69, %s71
      %p75 = scmp.eq.s32.totalorder %s19, 0
      %p76 = por %p74, %p75
      %p77 = scmp.ne.s32.totalorder %s69, %s71
      %p78 = scmp.eq.s32.totalorder %s24, 1
      %p79 = por %p77, %p78
      %p80 = scmp.ne.s32.totalorder %s71, %s72
      %p81 = scmp.eq.s32.totalorder %s24, 0
      %p82 = por %p80, %p81
      %p83 = scmp.ne.s32.totalorder %s71, %s72
      %p84 = scmp.eq.s32.totalorder %s25, 1
      %p85 = por %p83, %p84
      %p87 = scmp.ne.s32.totalorder %s72, %s86
      %p88 = scmp.eq.s32.totalorder %s25, 0
      %p89 = por %p87, %p88
      %s90 = ssub.s32 %s19, %s26
      %p91 = scmp.eq.s32.totalorder %s90, 0
      %s93 = sadd.s32 %s92, 1
      %s94 = scalar_select %p91, %s92, %s93
      %p97 = pneg %p91
      %p98 = scmp.eq.s32.totalorder %s19, 1
      %p99 = por %p97, %p98
      %p100 = scmp.ne.s32.totalorder %s92, %s95
      %p101 = scmp.eq.s32.totalorder %s19, 0
      %p102 = por %p100, %p101
      %p103 = scmp.ne.s32.totalorder %s92, %s95
      %p104 = scmp.eq.s32.totalorder %s24, 1
      %p105 = por %p103, %p104
      %p106 = scmp.ne.s32.totalorder %s95, %s96
      %p107 = scmp.eq.s32.totalorder %s24, 0
      %p108 = por %p106, %p107
      %p109 = scmp.ne.s32.totalorder %s95, %s96
      %p110 = scmp.eq.s32.totalorder %s25, 1
      %p111 = por %p109, %p110
      %p113 = scmp.ne.s32.totalorder %s96, %s112
      %p114 = scmp.eq.s32.totalorder %s25, 0
      %p115 = por %p113, %p114
      %s116 = ssub.s32 %s19, %s26
      %p117 = scmp.eq.s32.totalorder %s116, 0
      %s119 = sadd.s32 %s118, 1
      %s120 = scalar_select %p117, %s118, %s119
      %p123 = pneg %p117
      %p124 = scmp.eq.s32.totalorder %s19, 1
      %p125 = por %p123, %p124
      %p126 = scmp.ne.s32.totalorder %s118, %s121
      %p127 = scmp.eq.s32.totalorder %s19, 0
      %p128 = por %p126, %p127
      %p129 = scmp.ne.s32.totalorder %s118, %s121
      %p130 = scmp.eq.s32.totalorder %s24, 1
      %p131 = por %p129, %p130
      %p132 = scmp.ne.s32.totalorder %s121, %s122
      %p133 = scmp.eq.s32.totalorder %s24, 0
      %p134 = por %p132, %p133
      %p135 = scmp.ne.s32.totalorder %s121, %s122
      %p136 = scmp.eq.s32.totalorder %s25, 1
      %p137 = por %p135, %p136
      %p139 = scmp.ne.s32.totalorder %s122, %s138
      %p140 = scmp.eq.s32.totalorder %s25, 0
      %p141 = por %p139, %p140
      %p142 = scmp.le.s32.totalorder 1, %s19
      %p143 = scmp.lt.s32.totalorder %s19, 3
      %p144 = pnand %p142, %p143
      %p145 = pneg %p144
      // Predicated region
      $region9: #{tpu_custom_call.1} parent=5 // pred_check
        _
      $region10: #{tpu_custom_call.1} parent=5 // pred_check_branch
        %147 = sbr.rel (%p144) target = $region12
      $region11: #{tpu_custom_call.1} parent=5 // pred_region
        %s148 = ssub.s32 %s19, 1
        // Predicated region
        $region13: #{tpu_custom_call.1} parent=11 // pred_check
          %p149 = pneg %p40
        $region14: #{tpu_custom_call.1} parent=11 // pred_check_branch
          %151 = sbr.rel (%p149) target = $region16
        $region15: #{tpu_custom_call.1} parent=11 // pred_region
          %s153 = ssub.s32 16, 16
          %154 = vsyncadd [#allocation6], %s153
          %s156 = sshll.u32 %s0, 4
          %s157 = int_to_ptr.vmem [resolvable:$true] %s156
          %159 = dma.vmem_to_smem %s157, 16, [#allocation3], [#allocation6]
        $region16: #{tpu_custom_call.1} parent=11 // pred_fallthru
          _
        // Predicated region
        $region17: #{tpu_custom_call.1} parent=11 // pred_check
          %p160 = pneg %p61
        $region18: #{tpu_custom_call.1} parent=11 // pred_check_branch
          %162 = sbr.rel (%p160) target = $region20
        $region19: #{tpu_custom_call.1} parent=11 // pred_region
          %s164 = ssub.s32 16, 16
          %165 = vsyncadd [#allocation8], %s164
          %s167 = sshll.u32 %s1, 4
          %s168 = int_to_ptr.vmem [resolvable:$true] %s167
          %170 = dma.vmem_to_smem %s168, 16, [#allocation7], [#allocation8]
        $region20: #{tpu_custom_call.1} parent=11 // pred_fallthru
          _
        // Predicated region
        $region21: #{tpu_custom_call.1} parent=11 // pred_check
          %p171 = pneg %p82
        $region22: #{tpu_custom_call.1} parent=11 // pred_check_branch
          %173 = sbr.rel (%p171) target = $region24
        $region23: #{tpu_custom_call.1} parent=11 // pred_region
          _
        $region24: #{tpu_custom_call.1} parent=11 // pred_fallthru
          _
      $region12: #{tpu_custom_call.1} parent=5 // pred_fallthru
        _
      %p174 = scmp.lt.s32.totalorder %s19, 2
      // Predicated region
      $region25: #{tpu_custom_call.1} parent=5 // pred_check
        %p175 = pneg %p174
      $region26: #{tpu_custom_call.1} parent=5 // pred_check_branch
        %177 = sbr.rel (%p175) target = $region28
      $region27: #{tpu_custom_call.1} parent=5 // pred_region
        // Predicated region
        $region29: #{tpu_custom_call.1} parent=27 // pred_check
          %p178 = pneg %p102
        $region30: #{tpu_custom_call.1} parent=27 // pred_check_branch
          %180 = sbr.rel (%p178) target = $region32
        $region31: #{tpu_custom_call.1} parent=27 // pred_region
          %s181 = sand.u32 %s92, 1
          %s182 = scalar_lea.sflag [#allocation4], %s181
          %s183 = sand.u32 %s92, 1
          %s184 = smul.addr %s183, 128
          %s185 = scalar_lea.vmem [#allocation9], %s184
          %s187 = ssub.s32 2048, 2048
          %188 = vsyncadd %s182, %s187
          %s189 = smul.addr %s19, 16
          %s190 = smul.addr %s189, 128
          %s191 = scalar_lea.hbm %s3, %s190
          %s192 = sshll.u32 %s185, 4
          %s193 = int_to_ptr.vmem [resolvable:$true] %s192
          %198 = dma.hbm_to_vmem [thread:$0]  %s191, 2048, %s193, %s182, 128, 128, 8
        $region32: #{tpu_custom_call.1} parent=27 // pred_fallthru
          _
      $region28: #{tpu_custom_call.1} parent=5 // pred_fallthru
        _
      %p199 = scmp.le.s32.totalorder 1, %s19
      %p200 = scmp.lt.s32.totalorder %s19, 3
      %p201 = pnand %p199, %p200
      %p202 = pneg %p201
      // Predicated region
      $region33: #{tpu_custom_call.1} parent=5 // pred_check
        _
      $region34: #{tpu_custom_call.1} parent=5 // pred_check_branch
        %204 = sbr.rel (%p201) target = $region36
      $region35: #{tpu_custom_call.1} parent=5 // pred_region
        %s205 = ssub.s32 %s19, 1
        // Predicated region
        $region37: #{tpu_custom_call.1} parent=35 // pred_check
          %p206 = pneg %p40
        $region38: #{tpu_custom_call.1} parent=35 // pred_check_branch
          %208 = sbr.rel (%p206) target = $region40
        $region39: #{tpu_custom_call.1} parent=35 // pred_region
          %209 = dma.done [#allocation6], 16
        $region40: #{tpu_custom_call.1} parent=35 // pred_fallthru
          _
        // Predicated region
        $region41: #{tpu_custom_call.1} parent=35 // pred_check
          %p210 = pneg %p61
        $region42: #{tpu_custom_call.1} parent=35 // pred_check_branch
          %212 = sbr.rel (%p210) target = $region44
        $region43: #{tpu_custom_call.1} parent=35 // pred_region
          %213 = dma.done [#allocation8], 16
        $region44: #{tpu_custom_call.1} parent=35 // pred_fallthru
          _
        %s214 = sand.u32 %s95, 1
        %s215 = scalar_lea.sflag [#allocation4], %s214
        %s216 = sand.u32 %s95, 1
        %s217 = smul.addr %s216, 128
        %s218 = scalar_lea.vmem [#allocation9], %s217
        // Predicated region
        $region45: #{tpu_custom_call.1} parent=35 // pred_check
          %p219 = pneg %p108
        $region46: #{tpu_custom_call.1} parent=35 // pred_check_branch
          %221 = sbr.rel (%p219) target = $region48
        $region47: #{tpu_custom_call.1} parent=35 // pred_region
          %222 = dma.done %s215, 2048
        $region48: #{tpu_custom_call.1} parent=35 // pred_fallthru
          _
        %223 = sfence
        %p224 = pneg %p40
        %p225 = pneg %p37
        %p226 = pneg %p61
        %p227 = pneg %p58
        %p228 = pneg %p82
        %p229 = pneg %p79
        %s230 = sand.u32 %s95, 1
        %s231 = scalar_lea.sflag [#allocation4], %s230
        %s232 = sand.u32 %s95, 1
        %s233 = smul.addr %s232, 128
        %s234 = scalar_lea.vmem [#allocation9], %s233
        %p235 = pneg %p108
        %p236 = pneg %p105
        %p237 = pneg %p134
        %p238 = pneg %p131
        %s239 = sand.u32 %s121, 1
        %s240 = scalar_lea.sflag [#allocation5], %s239
        %s241 = sand.u32 %s121, 1
        %s242 = smul.addr %s241, 128
        %s243 = scalar_lea.vmem [#allocation10], %s242
        %v244 = vld [vmem:[%s218] sm:$0xff]
        %v245 = vld [vmem:[%s218 + $0x8] sm:$0xff]
        %v246 = vld [vmem:[%s218 + $0x10] sm:$0xff]
        %v247 = vld [vmem:[%s218 + $0x18] sm:$0xff]
        %v248 = vld [vmem:[%s218 + $0x20] sm:$0xff]
        %v249 = vld [vmem:[%s218 + $0x28] sm:$0xff]
        %v250 = vld [vmem:[%s218 + $0x30] sm:$0xff]
        %v251 = vld [vmem:[%s218 + $0x38] sm:$0xff]
        %v252 = vld [vmem:[%s218 + $0x40] sm:$0xff]
        %v253 = vld [vmem:[%s218 + $0x48] sm:$0xff]
        %v254 = vld [vmem:[%s218 + $0x50] sm:$0xff]
        %v255 = vld [vmem:[%s218 + $0x58] sm:$0xff]
        %v256 = vld [vmem:[%s218 + $0x60] sm:$0xff]
        %v257 = vld [vmem:[%s218 + $0x68] sm:$0xff]
        %v258 = vld [vmem:[%s218 + $0x70] sm:$0xff]
        %v259 = vld [vmem:[%s218 + $0x78] sm:$0xff]
        %vm260 = vcmask 130048
        %v261 = vsel %vm260, %v244, 0.0
        %262 = vadd.xlane.f32.xlu0 %v261
        %v263 = vpop.xlane.xlu0 %262
        %v264 = vsel %vm260, %v245, 0.0
        %265 = vadd.xlane.f32.xlu0 %v264
        %v266 = vpop.xlane.xlu0 %265
        %v267 = vsel %vm260, %v246, 0.0
        %268 = vadd.xlane.f32.xlu0 %v267
        %v269 = vpop.xlane.xlu0 %268
        %v270 = vsel %vm260, %v247, 0.0
        %271 = vadd.xlane.f32.xlu0 %v270
        %v272 = vpop.xlane.xlu0 %271
        %v273 = vsel %vm260, %v248, 0.0
        %274 = vadd.xlane.f32.xlu0 %v273
        %v275 = vpop.xlane.xlu0 %274
        %v276 = vsel %vm260, %v249, 0.0
        %277 = vadd.xlane.f32.xlu0 %v276
        %v278 = vpop.xlane.xlu0 %277
        %v279 = vsel %vm260, %v250, 0.0
        %280 = vadd.xlane.f32.xlu0 %v279
        %v281 = vpop.xlane.xlu0 %280
        %v282 = vsel %vm260, %v251, 0.0
        %283 = vadd.xlane.f32.xlu0 %v282
        %v284 = vpop.xlane.xlu0 %283
        %v285 = vsel %vm260, %v252, 0.0
        %286 = vadd.xlane.f32.xlu0 %v285
        %v287 = vpop.xlane.xlu0 %286
        %v288 = vsel %vm260, %v253, 0.0
        %289 = vadd.xlane.f32.xlu0 %v288
        %v290 = vpop.xlane.xlu0 %289
        %v291 = vsel %vm260, %v254, 0.0
        %292 = vadd.xlane.f32.xlu0 %v291
        %v293 = vpop.xlane.xlu0 %292
        %v294 = vsel %vm260, %v255, 0.0
        %295 = vadd.xlane.f32.xlu0 %v294
        %v296 = vpop.xlane.xlu0 %295
        %v297 = vsel %vm260, %v256, 0.0
        %298 = vadd.xlane.f32.xlu0 %v297
        %v299 = vpop.xlane.xlu0 %298
        %v300 = vsel %vm260, %v257, 0.0
        %301 = vadd.xlane.f32.xlu0 %v300
        %v302 = vpop.xlane.xlu0 %301
        %v303 = vsel %vm260, %v258, 0.0
        %304 = vadd.xlane.f32.xlu0 %v303
        %v305 = vpop.xlane.xlu0 %304
        %v306 = vsel %vm260, %v259, 0.0
        %307 = vadd.xlane.f32.xlu0 %v306
        %v308 = vpop.xlane.xlu0 %307
        %v325 = vlaneseq
        %v326 = vand.u32 %v325, 127
        %v327 = vlaneseq
        %v328 = vshrl.u32 %v327, 7
        %v329 = vsub.s32 %v326, %v328
        %v330 = vrot.slane %v263, %v329
        %v331 = vadd.s32 %v326, 4294967288
        %v332 = vlaneseq
        %v333 = vshrl.u32 %v332, 7
        %v334 = vsub.s32 %v331, %v333
        %v335 = vrot.slane %v266, %v334
        %vm336 = vcmask 130112
        %v337 = vsel %vm336, %v335, %v330
        %v338 = vlaneseq
        %v339 = vshrl.u32 %v338, 7
        %v340 = vsub.s32 %v326, %v339
        %v341 = vrot.slane %v269, %v340
        %v342 = vlaneseq
        %v343 = vshrl.u32 %v342, 7
        %v344 = vsub.s32 %v331, %v343
        %v345 = vrot.slane %v272, %v344
        %v346 = vsel %vm336, %v345, %v341
        %v347 = vlaneseq
        %v348 = vshrl.u32 %v347, 7
        %v349 = vsub.s32 %v326, %v348
        %v350 = vrot.slane %v275, %v349
        %v351 = vlaneseq
        %v352 = vshrl.u32 %v351, 7
        %v353 = vsub.s32 %v331, %v352
        %v354 = vrot.slane %v278, %v353
        %v355 = vsel %vm336, %v354, %v350
        %v356 = vlaneseq
        %v357 = vshrl.u32 %v356, 7
        %v358 = vsub.s32 %v326, %v357
        %v359 = vrot.slane %v281, %v358
        %v360 = vlaneseq
        %v361 = vshrl.u32 %v360, 7
        %v362 = vsub.s32 %v331, %v361
        %v363 = vrot.slane %v284, %v362
        %v364 = vsel %vm336, %v363, %v359
        %v365 = vlaneseq
        %v366 = vshrl.u32 %v365, 7
        %v367 = vsub.s32 %v326, %v366
        %v368 = vrot.slane %v287, %v367
        %v369 = vlaneseq
        %v370 = vshrl.u32 %v369, 7
        %v371 = vsub.s32 %v331, %v370
        %v372 = vrot.slane %v290, %v371
        %v373 = vsel %vm336, %v372, %v368
        %v374 = vlaneseq
        %v375 = vshrl.u32 %v374, 7
        %v376 = vsub.s32 %v326, %v375
        %v377 = vrot.slane %v293, %v376
        %v378 = vlaneseq
        %v379 = vshrl.u32 %v378, 7
        %v380 = vsub.s32 %v331, %v379
        %v381 = vrot.slane %v296, %v380
        %v382 = vsel %vm336, %v381, %v377
        %v383 = vlaneseq
        %v384 = vshrl.u32 %v383, 7
        %v385 = vsub.s32 %v326, %v384
        %v386 = vrot.slane %v299, %v385
        %v387 = vlaneseq
        %v388 = vshrl.u32 %v387, 7
        %v389 = vsub.s32 %v331, %v388
        %v390 = vrot.slane %v302, %v389
        %v391 = vsel %vm336, %v390, %v386
        %v392 = vlaneseq
        %v393 = vshrl.u32 %v392, 7
        %v394 = vsub.s32 %v326, %v393
        %v395 = vrot.slane %v305, %v394
        %v396 = vlaneseq
        %v397 = vshrl.u32 %v396, 7
        %v398 = vsub.s32 %v331, %v397
        %v399 = vrot.slane %v308, %v398
        %v400 = vsel %vm336, %v399, %v395
        %vm401 = vcmask 1041409
        %v402 = vsel %vm401, %v346, %v337
        %vm403 = vcmask 1042434
        %v404 = vsel %vm403, %v355, %v402
        %vm405 = vcmask 1043459
        %v406 = vsel %vm405, %v364, %v404
        %vm407 = vcmask 1044484
        %v408 = vsel %vm407, %v373, %v406
        %vm409 = vcmask 1045509
        %v410 = vsel %vm409, %v382, %v408
        %vm411 = vcmask 1046534
        %v412 = vsel %vm411, %v391, %v410
        %vm413 = vcmask 1047559
        %v414 = vsel %vm413, %v400, %v412
        %v416 = vsel %vm260, %v414, 0.0
        %417 = vadd.xlane.f32.xlu0 %v416
        %v418 = vpop.xlane.xlu0 %417
        %v419 = vsel %vm260, %v244, -inf
        %420 = vmax.xlane.f32.xlu0 %v419
        %v421 = vpop.xlane.xlu0 %420
        %v422 = vsel %vm260, %v245, -inf
        %423 = vmax.xlane.f32.xlu0 %v422
        %v424 = vpop.xlane.xlu0 %423
        %v425 = vsel %vm260, %v246, -inf
        %426 = vmax.xlane.f32.xlu0 %v425
        %v427 = vpop.xlane.xlu0 %426
        %v428 = vsel %vm260, %v247, -inf
        %429 = vmax.xlane.f32.xlu0 %v428
        %v430 = vpop.xlane.xlu0 %429
        %v431 = vsel %vm260, %v248, -inf
        %432 = vmax.xlane.f32.xlu0 %v431
        %v433 = vpop.xlane.xlu0 %432
        %v434 = vsel %vm260, %v249, -inf
        %435 = vmax.xlane.f32.xlu0 %v434
        %v436 = vpop.xlane.xlu0 %435
        %v437 = vsel %vm260, %v250, -inf
        %438 = vmax.xlane.f32.xlu0 %v437
        %v439 = vpop.xlane.xlu0 %438
        %v440 = vsel %vm260, %v251, -inf
        %441 = vmax.xlane.f32.xlu0 %v440
        %v442 = vpop.xlane.xlu0 %441
        %v443 = vsel %vm260, %v252, -inf
        %444 = vmax.xlane.f32.xlu0 %v443
        %v445 = vpop.xlane.xlu0 %444
        %v446 = vsel %vm260, %v253, -inf
        %447 = vmax.xlane.f32.xlu0 %v446
        %v448 = vpop.xlane.xlu0 %447
        %v449 = vsel %vm260, %v254, -inf
        %450 = vmax.xlane.f32.xlu0 %v449
        %v451 = vpop.xlane.xlu0 %450
        %v452 = vsel %vm260, %v255, -inf
        %453 = vmax.xlane.f32.xlu0 %v452
        %v454 = vpop.xlane.xlu0 %453
        %v455 = vsel %vm260, %v256, -inf
        %456 = vmax.xlane.f32.xlu0 %v455
        %v457 = vpop.xlane.xlu0 %456
        %v458 = vsel %vm260, %v257, -inf
        %459 = vmax.xlane.f32.xlu0 %v458
        %v460 = vpop.xlane.xlu0 %459
        %v461 = vsel %vm260, %v258, -inf
        %462 = vmax.xlane.f32.xlu0 %v461
        %v463 = vpop.xlane.xlu0 %462
        %v464 = vsel %vm260, %v259, -inf
        %465 = vmax.xlane.f32.xlu0 %v464
        %v466 = vpop.xlane.xlu0 %465
        %v483 = vlaneseq
        %v484 = vshrl.u32 %v483, 7
        %v485 = vsub.s32 %v326, %v484
        %v486 = vrot.slane %v421, %v485
        %v487 = vlaneseq
        %v488 = vshrl.u32 %v487, 7
        %v489 = vsub.s32 %v331, %v488
        %v490 = vrot.slane %v424, %v489
        %v491 = vsel %vm336, %v490, %v486
        %v492 = vlaneseq
        %v493 = vshrl.u32 %v492, 7
        %v494 = vsub.s32 %v326, %v493
        %v495 = vrot.slane %v427, %v494
        %v496 = vlaneseq
        %v497 = vshrl.u32 %v496, 7
        %v498 = vsub.s32 %v331, %v497
        %v499 = vrot.slane %v430, %v498
        %v500 = vsel %vm336, %v499, %v495
        %v501 = vlaneseq
        %v502 = vshrl.u32 %v501, 7
        %v503 = vsub.s32 %v326, %v502
        %v504 = vrot.slane %v433, %v503
        %v505 = vlaneseq
        %v506 = vshrl.u32 %v505, 7
        %v507 = vsub.s32 %v331, %v506
        %v508 = vrot.slane %v436, %v507
        %v509 = vsel %vm336, %v508, %v504
        %v510 = vlaneseq
        %v511 = vshrl.u32 %v510, 7
        %v512 = vsub.s32 %v326, %v511
        %v513 = vrot.slane %v439, %v512
        %v514 = vlaneseq
        %v515 = vshrl.u32 %v514, 7
        %v516 = vsub.s32 %v331, %v515
        %v517 = vrot.slane %v442, %v516
        %v518 = vsel %vm336, %v517, %v513
        %v519 = vlaneseq
        %v520 = vshrl.u32 %v519, 7
        %v521 = vsub.s32 %v326, %v520
        %v522 = vrot.slane %v445, %v521
        %v523 = vlaneseq
        %v524 = vshrl.u32 %v523, 7
        %v525 = vsub.s32 %v331, %v524
        %v526 = vrot.slane %v448, %v525
        %v527 = vsel %vm336, %v526, %v522
        %v528 = vlaneseq
        %v529 = vshrl.u32 %v528, 7
        %v530 = vsub.s32 %v326, %v529
        %v531 = vrot.slane %v451, %v530
        %v532 = vlaneseq
        %v533 = vshrl.u32 %v532, 7
        %v534 = vsub.s32 %v331, %v533
        %v535 = vrot.slane %v454, %v534
        %v536 = vsel %vm336, %v535, %v531
        %v537 = vlaneseq
        %v538 = vshrl.u32 %v537, 7
        %v539 = vsub.s32 %v326, %v538
        %v540 = vrot.slane %v457, %v539
        %v541 = vlaneseq
        %v542 = vshrl.u32 %v541, 7
        %v543 = vsub.s32 %v331, %v542
        %v544 = vrot.slane %v460, %v543
        %v545 = vsel %vm336, %v544, %v540
        %v546 = vlaneseq
        %v547 = vshrl.u32 %v546, 7
        %v548 = vsub.s32 %v326, %v547
        %v549 = vrot.slane %v463, %v548
        %v550 = vlaneseq
        %v551 = vshrl.u32 %v550, 7
        %v552 = vsub.s32 %v331, %v551
        %v553 = vrot.slane %v466, %v552
        %v554 = vsel %vm336, %v553, %v549
        %v555 = vsel %vm401, %v500, %v491
        %v556 = vsel %vm403, %v509, %v555
        %v557 = vsel %vm405, %v518, %v556
        %v558 = vsel %vm407, %v527, %v557
        %v559 = vsel %vm409, %v536, %v558
        %v560 = vsel %vm411, %v545, %v559
        %v561 = vsel %vm413, %v554, %v560
        %v563 = vsel %vm260, %v561, -inf
        %564 = vmax.xlane.f32.xlu0 %v563
        %v565 = vpop.xlane.xlu0 %564
        %v567 = vadd.s32 %v326, 4294967295
        %v568 = vlaneseq
        %v569 = vshrl.u32 %v568, 7
        %v570 = vsub.s32 %v567, %v569
        %v571 = vrot.slane %v418, %v570
        %vm573 = vcmask 7168
        %v574 = vsel %vm573, 0.0, %v571
        %vm575 = vcmask 72704
        %v576 = vsel %vm575, %v574, 0.0
        %v578 = vlaneseq
        %v579 = vshrl.u32 %v578, 7
        %v580 = vsub.s32 %v567, %v579
        %v581 = vrot.slane %v565, %v580
        %v583 = vsel %vm573, 0.0, %v581
        %v584 = vsel %vm575, %v583, 0.0
        %s585 = sld [smem:[#allocation3]]
        %v586 = vstv %s585
        %v587 = vmul.f32 %v586, %v576
        %v588 = vadd.f32 %v587, 0.0
        %s589 = sld [smem:[#allocation3 + $0x3]]
        %v590 = vstv %s589
        %v591 = vmul.f32 %v590, %v584
        %v592 = vadd.f32 %v588, %v591
        %s593 = sld [smem:[#allocation3 + $0x1]]
        %v594 = vstv %s593
        %v595 = vmul.f32 %v594, %v576
        %597 = vrot.lane.b32.xlu0 %v595, 127
        %v598 = vpop.permute.xlu0 %597
        %v600 = vadd.f32 %v592, %v598
        %s601 = sld [smem:[#allocation3 + $0x4]]
        %v602 = vstv %s601
        %v603 = vmul.f32 %v602, %v584
        %605 = vrot.lane.b32.xlu0 %v603, 127
        %v606 = vpop.permute.xlu0 %605
        %v608 = vadd.f32 %v600, %v606
        %s609 = sld [smem:[#allocation3 + $0x2]]
        %v610 = vstv %s609
        %v611 = vmul.f32 %v610, %v576
        %613 = vrot.lane.b32.xlu0 %v611, 126
        %v614 = vpop.permute.xlu0 %613
        %v616 = vadd.f32 %v608, %v614
        %s617 = sld [smem:[#allocation3 + $0x5]]
        %v618 = vstv %s617
        %v619 = vmul.f32 %v618, %v584
        %621 = vrot.lane.b32.xlu0 %v619, 126
        %v622 = vpop.permute.xlu0 %621
        %v624 = vadd.f32 %v616, %v622
        %v625 = vxor.u32 %v624, 2147483648
        %v626 = vmul.f32 %v625, 1.442695
        %v627 = vpow.pop %v626
        %v628 = vadd.f32 %v627, 1.0
        %v629 = vrcp.pop %v628
        %v630 = vmul.f32 1.0, %v629
        %v631 = vlaneseq
        %v632 = vshrl.u32 %v631, 7
        %v633 = vsub.s32 0, %v632
        %v634 = vrot.slane %v630, %v633
        %636 = vbcast.lane.b32.xlu0 %v634, 256
        %v637 = vpop.permute.xlu0 %636
        %v638 = vlaneseq
        %v639 = vshrl.u32 %v638, 7
        %v640 = vsub.s32 0, %v639
        %v641 = vrot.slane %v637, %v640
        %v642 = vlaneseq
        %v643 = vshrl.u32 %v642, 7
        %v644 = vsub.s32 1, %v643
        %v645 = vrot.slane %v637, %v644
        %v646 = vlaneseq
        %v647 = vshrl.u32 %v646, 7
        %v648 = vsub.s32 2, %v647
        %v649 = vrot.slane %v637, %v648
        %v650 = vlaneseq
        %v651 = vshrl.u32 %v650, 7
        %v652 = vsub.s32 3, %v651
        %v653 = vrot.slane %v637, %v652
        %v654 = vlaneseq
        %v655 = vshrl.u32 %v654, 7
        %v656 = vsub.s32 4, %v655
        %v657 = vrot.slane %v637, %v656
        %v658 = vlaneseq
        %v659 = vshrl.u32 %v658, 7
        %v660 = vsub.s32 5, %v659
        %v661 = vrot.slane %v637, %v660
        %v662 = vlaneseq
        %v663 = vshrl.u32 %v662, 7
        %v664 = vsub.s32 6, %v663
        %v665 = vrot.slane %v637, %v664
        %v666 = vlaneseq
        %v667 = vshrl.u32 %v666, 7
        %v668 = vsub.s32 7, %v667
        %v669 = vrot.slane %v637, %v668
        %v670 = vmul.f32 %v244, %v641
        %v671 = vmul.f32 %v245, %v641
        %v672 = vmul.f32 %v246, %v645
        %v673 = vmul.f32 %v247, %v645
        %v674 = vmul.f32 %v248, %v649
        %v675 = vmul.f32 %v249, %v649
        %v676 = vmul.f32 %v250, %v653
        %v677 = vmul.f32 %v251, %v653
        %v678 = vmul.f32 %v252, %v657
        %v679 = vmul.f32 %v253, %v657
        %v680 = vmul.f32 %v254, %v661
        %v681 = vmul.f32 %v255, %v661
        %v682 = vmul.f32 %v256, %v665
        %v683 = vmul.f32 %v257, %v665
        %v684 = vmul.f32 %v258, %v669
        %v685 = vmul.f32 %v259, %v669
        %v686 = vsel %vm260, %v670, -inf
        %v687 = vsel %vm260, %v672, -inf
        %v688 = vsel %vm260, %v674, -inf
        %v689 = vmax.f32 %v686, %v688
        %v690 = vsel %vm260, %v676, -inf
        %v691 = vmax.f32 %v687, %v690
        %v692 = vsel %vm260, %v678, -inf
        %v693 = vmax.f32 %v689, %v692
        %v694 = vsel %vm260, %v680, -inf
        %v695 = vmax.f32 %v691, %v694
        %v696 = vsel %vm260, %v682, -inf
        %v697 = vmax.f32 %v693, %v696
        %v698 = vsel %vm260, %v684, -inf
        %v699 = vmax.f32 %v695, %v698
        %v700 = vmax.f32 %v697, %v699
        %v701 = vsel %vm260, %v671, -inf
        %v702 = vsel %vm260, %v673, -inf
        %v703 = vsel %vm260, %v675, -inf
        %v704 = vmax.f32 %v701, %v703
        %v705 = vsel %vm260, %v677, -inf
        %v706 = vmax.f32 %v702, %v705
        %v707 = vsel %vm260, %v679, -inf
        %v708 = vmax.f32 %v704, %v707
        %v709 = vsel %vm260, %v681, -inf
        %v710 = vmax.f32 %v706, %v709
        %v711 = vsel %vm260, %v683, -inf
        %v712 = vmax.f32 %v708, %v711
        %v713 = vsel %vm260, %v685, -inf
        %v714 = vmax.f32 %v710, %v713
        %v715 = vmax.f32 %v712, %v714
        %v716 = vsel %vm260, %v670, 0.0
        %v717 = vsel %vm260, %v672, 0.0
        %v718 = vadd.f32 %v716, %v717
        %v719 = vsel %vm260, %v674, 0.0
        %v720 = vadd.f32 %v718, %v719
        %v721 = vsel %vm260, %v676, 0.0
        %v722 = vadd.f32 %v720, %v721
        %v723 = vsel %vm260, %v678, 0.0
        %v724 = vadd.f32 %v722, %v723
        %v725 = vsel %vm260, %v680, 0.0
        %v726 = vadd.f32 %v724, %v725
        %v727 = vsel %vm260, %v682, 0.0
        %v728 = vadd.f32 %v726, %v727
        %v729 = vsel %vm260, %v684, 0.0
        %v730 = vadd.f32 %v728, %v729
        %v731 = vsel %vm260, %v671, 0.0
        %v732 = vsel %vm260, %v673, 0.0
        %v733 = vadd.f32 %v731, %v732
        %v734 = vsel %vm260, %v675, 0.0
        %v735 = vadd.f32 %v733, %v734
        %v736 = vsel %vm260, %v677, 0.0
        %v737 = vadd.f32 %v735, %v736
        %v738 = vsel %vm260, %v679, 0.0
        %v739 = vadd.f32 %v737, %v738
        %v740 = vsel %vm260, %v681, 0.0
        %v741 = vadd.f32 %v739, %v740
        %v742 = vsel %vm260, %v683, 0.0
        %v743 = vadd.f32 %v741, %v742
        %v744 = vsel %vm260, %v685, 0.0
        %v745 = vadd.f32 %v743, %v744
        %v746 = vmul.f32 %v730, 0.125
        %v747 = vmul.f32 %v745, 0.125
        %vm750 = vcmask 1042432
        %v751 = vrot.slane %v700, 5
        %v752 = vrot.slane %v715, 5
        %v753 = vsel %vm750, %v751, %v752
        %v756 = vsel %vm750, 0.0, %v751
        %v757 = vsel %vm750, %v752, 0.0
        %760 = vrot.lane.b32.xlu0 %v756, 3
        %v761 = vpop.permute.xlu0 %760
        %762 = vrot.lane.b32.xlu0 %v753, 3
        %v763 = vpop.permute.xlu0 %762
        %764 = vrot.lane.b32.xlu0 %v757, 3
        %v765 = vpop.permute.xlu0 %764
        %vm769 = vcmask 23552
        %v770 = vsel %vm769, 0.0, %v761
        %v771 = vsel %vm769, 0.0, %v763
        %v772 = vsel %vm769, 0.0, %v765
        %vm773 = vcmask 154624
        %v774 = vsel %vm773, %v770, 0.0
        %v775 = vsel %vm773, %v771, 0.0
        %v776 = vsel %vm773, %v772, 0.0
        %v779 = vrot.slane %v746, 5
        %v780 = vrot.slane %v747, 5
        %v781 = vsel %vm750, %v779, %v780
        %v784 = vsel %vm750, 0.0, %v779
        %v785 = vsel %vm750, %v780, 0.0
        %788 = vrot.lane.b32.xlu0 %v784, 3
        %v789 = vpop.permute.xlu0 %788
        %790 = vrot.lane.b32.xlu0 %v781, 3
        %v791 = vpop.permute.xlu0 %790
        %792 = vrot.lane.b32.xlu0 %v785, 3
        %v793 = vpop.permute.xlu0 %792
        %v797 = vsel %vm769, 0.0, %v789
        %v798 = vsel %vm769, 0.0, %v791
        %v799 = vsel %vm769, 0.0, %v793
        %v800 = vsel %vm773, %v797, 0.0
        %v801 = vsel %vm773, %v798, 0.0
        %v802 = vsel %vm773, %v799, 0.0
        %s803 = sld [smem:[#allocation7]]
        %v804 = vstv %s803
        %v805 = vmul.f32 %v804, %v774
        %v806 = vmul.f32 %v804, %v775
        %v807 = vadd.f32 %v805, 0.0
        %v808 = vadd.f32 %v806, 0.0
        %s809 = sld [smem:[#allocation7 + $0x31]]
        %v810 = vstv %s809
        %v811 = vmul.f32 %v810, %v800
        %v812 = vmul.f32 %v810, %v801
        %v813 = vadd.f32 %v807, %v811
        %v814 = vadd.f32 %v808, %v812
        %s815 = sld [smem:[#allocation7 + $0x1]]
        %v816 = vstv %s815
        %v817 = vmul.f32 %v816, %v774
        %v818 = vmul.f32 %v816, %v775
        %821 = vrot.lane.b32.xlu0 %v817, 127
        %v822 = vpop.permute.xlu0 %821
        %823 = vrot.lane.b32.xlu0 %v818, 127
        %v824 = vpop.permute.xlu0 %823
        %v827 = vadd.f32 %v813, %v822
        %v828 = vadd.f32 %v814, %v824
        %s829 = sld [smem:[#allocation7 + $0x32]]
        %v830 = vstv %s829
        %v831 = vmul.f32 %v830, %v800
        %v832 = vmul.f32 %v830, %v801
        %835 = vrot.lane.b32.xlu0 %v831, 127
        %v836 = vpop.permute.xlu0 %835
        %837 = vrot.lane.b32.xlu0 %v832, 127
        %v838 = vpop.permute.xlu0 %837
        %v841 = vadd.f32 %v827, %v836
        %v842 = vadd.f32 %v828, %v838
        %s843 = sld [smem:[#allocation7 + $0x2]]
        %v844 = vstv %s843
        %v845 = vmul.f32 %v844, %v774
        %v846 = vmul.f32 %v844, %v775
        %849 = vrot.lane.b32.xlu0 %v845, 126
        %v850 = vpop.permute.xlu0 %849
        %851 = vrot.lane.b32.xlu0 %v846, 126
        %v852 = vpop.permute.xlu0 %851
        %v855 = vadd.f32 %v841, %v850
        %v856 = vadd.f32 %v842, %v852
        %s857 = sld [smem:[#allocation7 + $0x33]]
        %v858 = vstv %s857
        %v859 = vmul.f32 %v858, %v800
        %v860 = vmul.f32 %v858, %v801
        %863 = vrot.lane.b32.xlu0 %v859, 126
        %v864 = vpop.permute.xlu0 %863
        %865 = vrot.lane.b32.xlu0 %v860, 126
        %v866 = vpop.permute.xlu0 %865
        %v869 = vadd.f32 %v855, %v864
        %v870 = vadd.f32 %v856, %v866
        %s871 = sld [smem:[#allocation7 + $0x3]]
        %v872 = vstv %s871
        %v873 = vmul.f32 %v872, %v774
        %v874 = vmul.f32 %v872, %v775
        %877 = vrot.lane.b32.xlu0 %v873, 125
        %v878 = vpop.permute.xlu0 %877
        %879 = vrot.lane.b32.xlu0 %v874, 125
        %v880 = vpop.permute.xlu0 %879
        %v883 = vadd.f32 %v869, %v878
        %v884 = vadd.f32 %v870, %v880
        %s885 = sld [smem:[#allocation7 + $0x34]]
        %v886 = vstv %s885
        %v887 = vmul.f32 %v886, %v800
        %v888 = vmul.f32 %v886, %v801
        %891 = vrot.lane.b32.xlu0 %v887, 125
        %v892 = vpop.permute.xlu0 %891
        %893 = vrot.lane.b32.xlu0 %v888, 125
        %v894 = vpop.permute.xlu0 %893
        %v897 = vadd.f32 %v883, %v892
        %v898 = vadd.f32 %v884, %v894
        %s899 = sld [smem:[#allocation7 + $0x4]]
        %v900 = vstv %s899
        %v901 = vmul.f32 %v900, %v774
        %v902 = vmul.f32 %v900, %v775
        %905 = vrot.lane.b32.xlu0 %v901, 124
        %v906 = vpop.permute.xlu0 %905
        %907 = vrot.lane.b32.xlu0 %v902, 124
        %v908 = vpop.permute.xlu0 %907
        %v911 = vadd.f32 %v897, %v906
        %v912 = vadd.f32 %v898, %v908
        %s913 = sld [smem:[#allocation7 + $0x35]]
        %v914 = vstv %s913
        %v915 = vmul.f32 %v914, %v800
        %v916 = vmul.f32 %v914, %v801
        %919 = vrot.lane.b32.xlu0 %v915, 124
        %v920 = vpop.permute.xlu0 %919
        %921 = vrot.lane.b32.xlu0 %v916, 124
        %v922 = vpop.permute.xlu0 %921
        %v925 = vadd.f32 %v911, %v920
        %v926 = vadd.f32 %v912, %v922
        %s927 = sld [smem:[#allocation7 + $0x5]]
        %v928 = vstv %s927
        %v929 = vmul.f32 %v928, %v774
        %v930 = vmul.f32 %v928, %v775
        %933 = vrot.lane.b32.xlu0 %v929, 123
        %v934 = vpop.permute.xlu0 %933
        %935 = vrot.lane.b32.xlu0 %v930, 123
        %v936 = vpop.permute.xlu0 %935
        %v939 = vadd.f32 %v925, %v934
        %v940 = vadd.f32 %v926, %v936
        %s941 = sld [smem:[#allocation7 + $0x36]]
        %v942 = vstv %s941
        %v943 = vmul.f32 %v942, %v800
        %v944 = vmul.f32 %v942, %v801
        %947 = vrot.lane.b32.xlu0 %v943, 123
        %v948 = vpop.permute.xlu0 %947
        %949 = vrot.lane.b32.xlu0 %v944, 123
        %v950 = vpop.permute.xlu0 %949
        %v953 = vadd.f32 %v939, %v948
        %v954 = vadd.f32 %v940, %v950
        %s955 = sld [smem:[#allocation7 + $0x6]]
        %v956 = vstv %s955
        %v957 = vmul.f32 %v956, %v774
        %v958 = vmul.f32 %v956, %v775
        %961 = vrot.lane.b32.xlu0 %v957, 122
        %v962 = vpop.permute.xlu0 %961
        %963 = vrot.lane.b32.xlu0 %v958, 122
        %v964 = vpop.permute.xlu0 %963
        %v967 = vadd.f32 %v953, %v962
        %v968 = vadd.f32 %v954, %v964
        %s969 = sld [smem:[#allocation7 + $0x37]]
        %v970 = vstv %s969
        %v971 = vmul.f32 %v970, %v800
        %v972 = vmul.f32 %v970, %v801
        %975 = vrot.lane.b32.xlu0 %v971, 122
        %v976 = vpop.permute.xlu0 %975
        %977 = vrot.lane.b32.xlu0 %v972, 122
        %v978 = vpop.permute.xlu0 %977
        %v981 = vadd.f32 %v967, %v976
        %v982 = vadd.f32 %v968, %v978
        %s983 = sld [smem:[#allocation7 + $0x7]]
        %v984 = vstv %s983
        %v985 = vmul.f32 %v984, %v774
        %v986 = vmul.f32 %v984, %v775
        %v987 = vmul.f32 %v984, %v776
        %vm991 = vcmask 1046528
        %v992 = vrot.slane %v985, 1
        %v993 = vrot.slane %v986, 1
        %v994 = vsel %vm991, %v992, %v993
        %v995 = vrot.slane %v987, 1
        %v996 = vsel %vm991, %v993, %v995
        %v999 = vadd.f32 %v981, %v994
        %v1000 = vadd.f32 %v982, %v996
        %s1001 = sld [smem:[#allocation7 + $0x38]]
        %v1002 = vstv %s1001
        %v1003 = vmul.f32 %v1002, %v800
        %v1004 = vmul.f32 %v1002, %v801
        %v1005 = vmul.f32 %v1002, %v802
        %v1009 = vrot.slane %v1003, 1
        %v1010 = vrot.slane %v1004, 1
        %v1011 = vsel %vm991, %v1009, %v1010
        %v1012 = vrot.slane %v1005, 1
        %v1013 = vsel %vm991, %v1010, %v1012
        %v1016 = vadd.f32 %v999, %v1011
        %v1017 = vadd.f32 %v1000, %v1013
        %s1018 = sld [smem:[#allocation7 + $0x8]]
        %v1019 = vstv %s1018
        %v1020 = vmul.f32 %v1019, %v774
        %v1021 = vmul.f32 %v1019, %v775
        %v1022 = vmul.f32 %v1019, %v776
        %v1026 = vrot.slane %v1020, 1
        %v1027 = vrot.slane %v1021, 1
        %v1028 = vsel %vm991, %v1026, %v1027
        %v1029 = vrot.slane %v1022, 1
        %v1030 = vsel %vm991, %v1027, %v1029
        %1031 = vrot.lane.b32.xlu0 %v1028, 127
        %v1032 = vpop.permute.xlu0 %1031
        %1033 = vrot.lane.b32.xlu0 %v1030, 127
        %v1034 = vpop.permute.xlu0 %1033
        %v1037 = vadd.f32 %v1016, %v1032
        %v1038 = vadd.f32 %v1017, %v1034
        %s1039 = sld [smem:[#allocation7 + $0x39]]
        %v1040 = vstv %s1039
        %v1041 = vmul.f32 %v1040, %v800
        %v1042 = vmul.f32 %v1040, %v801
        %v1043 = vmul.f32 %v1040, %v802
        %v1047 = vrot.slane %v1041, 1
        %v1048 = vrot.slane %v1042, 1
        %v1049 = vsel %vm991, %v1047, %v1048
        %v1050 = vrot.slane %v1043, 1
        %v1051 = vsel %vm991, %v1048, %v1050
        %1052 = vrot.lane.b32.xlu0 %v1049, 127
        %v1053 = vpop.permute.xlu0 %1052
        %1054 = vrot.lane.b32.xlu0 %v1051, 127
        %v1055 = vpop.permute.xlu0 %1054
        %v1058 = vadd.f32 %v1037, %v1053
        %v1059 = vadd.f32 %v1038, %v1055
        %s1060 = sld [smem:[#allocation7 + $0x9]]
        %v1061 = vstv %s1060
        %v1062 = vmul.f32 %v1061, %v774
        %v1063 = vmul.f32 %v1061, %v775
        %v1064 = vmul.f32 %v1061, %v776
        %v1068 = vrot.slane %v1062, 1
        %v1069 = vrot.slane %v1063, 1
        %v1070 = vsel %vm991, %v1068, %v1069
        %v1071 = vrot.slane %v1064, 1
        %v1072 = vsel %vm991, %v1069, %v1071
        %1073 = vrot.lane.b32.xlu0 %v1070, 126
        %v1074 = vpop.permute.xlu0 %1073
        %1075 = vrot.lane.b32.xlu0 %v1072, 126
        %v1076 = vpop.permute.xlu0 %1075
        %v1079 = vadd.f32 %v1058, %v1074
        %v1080 = vadd.f32 %v1059, %v1076
        %s1081 = sld [smem:[#allocation7 + $0x3a]]
        %v1082 = vstv %s1081
        %v1083 = vmul.f32 %v1082, %v800
        %v1084 = vmul.f32 %v1082, %v801
        %v1085 = vmul.f32 %v1082, %v802
        %v1089 = vrot.slane %v1083, 1
        %v1090 = vrot.slane %v1084, 1
        %v1091 = vsel %vm991, %v1089, %v1090
        %v1092 = vrot.slane %v1085, 1
        %v1093 = vsel %vm991, %v1090, %v1092
        %1094 = vrot.lane.b32.xlu0 %v1091, 126
        %v1095 = vpop.permute.xlu0 %1094
        %1096 = vrot.lane.b32.xlu0 %v1093, 126
        %v1097 = vpop.permute.xlu0 %1096
        %v1100 = vadd.f32 %v1079, %v1095
        %v1101 = vadd.f32 %v1080, %v1097
        %s1102 = sld [smem:[#allocation7 + $0xa]]
        %v1103 = vstv %s1102
        %v1104 = vmul.f32 %v1103, %v774
        %v1105 = vmul.f32 %v1103, %v775
        %v1106 = vmul.f32 %v1103, %v776
        %v1110 = vrot.slane %v1104, 1
        %v1111 = vrot.slane %v1105, 1
        %v1112 = vsel %vm991, %v1110, %v1111
        %v1113 = vrot.slane %v1106, 1
        %v1114 = vsel %vm991, %v1111, %v1113
        %1115 = vrot.lane.b32.xlu0 %v1112, 125
        %v1116 = vpop.permute.xlu0 %1115
        %1117 = vrot.lane.b32.xlu0 %v1114, 125
        %v1118 = vpop.permute.xlu0 %1117
        %v1121 = vadd.f32 %v1100, %v1116
        %v1122 = vadd.f32 %v1101, %v1118
        %s1123 = sld [smem:[#allocation7 + $0x3b]]
        %v1124 = vstv %s1123
        %v1125 = vmul.f32 %v1124, %v800
        %v1126 = vmul.f32 %v1124, %v801
        %v1127 = vmul.f32 %v1124, %v802
        %v1131 = vrot.slane %v1125, 1
        %v1132 = vrot.slane %v1126, 1
        %v1133 = vsel %vm991, %v1131, %v1132
        %v1134 = vrot.slane %v1127, 1
        %v1135 = vsel %vm991, %v1132, %v1134
        %1136 = vrot.lane.b32.xlu0 %v1133, 125
        %v1137 = vpop.permute.xlu0 %1136
        %1138 = vrot.lane.b32.xlu0 %v1135, 125
        %v1139 = vpop.permute.xlu0 %1138
        %v1142 = vadd.f32 %v1121, %v1137
        %v1143 = vadd.f32 %v1122, %v1139
        %s1144 = sld [smem:[#allocation7 + $0xb]]
        %v1145 = vstv %s1144
        %v1146 = vmul.f32 %v1145, %v774
        %v1147 = vmul.f32 %v1145, %v775
        %v1148 = vmul.f32 %v1145, %v776
        %v1152 = vrot.slane %v1146, 1
        %v1153 = vrot.slane %v1147, 1
        %v1154 = vsel %vm991, %v1152, %v1153
        %v1155 = vrot.slane %v1148, 1
        %v1156 = vsel %vm991, %v1153, %v1155
        %1157 = vrot.lane.b32.xlu0 %v1154, 124
        %v1158 = vpop.permute.xlu0 %1157
        %1159 = vrot.lane.b32.xlu0 %v1156, 124
        %v1160 = vpop.permute.xlu0 %1159
        %v1163 = vadd.f32 %v1142, %v1158
        %v1164 = vadd.f32 %v1143, %v1160
        %s1165 = sld [smem:[#allocation7 + $0x3c]]
        %v1166 = vstv %s1165
        %v1167 = vmul.f32 %v1166, %v800
        %v1168 = vmul.f32 %v1166, %v801
        %v1169 = vmul.f32 %v1166, %v802
        %v1173 = vrot.slane %v1167, 1
        %v1174 = vrot.slane %v1168, 1
        %v1175 = vsel %vm991, %v1173, %v1174
        %v1176 = vrot.slane %v1169, 1
        %v1177 = vsel %vm991, %v1174, %v1176
        %1178 = vrot.lane.b32.xlu0 %v1175, 124
        %v1179 = vpop.permute.xlu0 %1178
        %1180 = vrot.lane.b32.xlu0 %v1177, 124
        %v1181 = vpop.permute.xlu0 %1180
        %v1184 = vadd.f32 %v1163, %v1179
        %v1185 = vadd.f32 %v1164, %v1181
        %s1186 = sld [smem:[#allocation7 + $0xc]]
        %v1187 = vstv %s1186
        %v1188 = vmul.f32 %v1187, %v774
        %v1189 = vmul.f32 %v1187, %v775
        %v1190 = vmul.f32 %v1187, %v776
        %v1194 = vrot.slane %v1188, 1
        %v1195 = vrot.slane %v1189, 1
        %v1196 = vsel %vm991, %v1194, %v1195
        %v1197 = vrot.slane %v1190, 1
        %v1198 = vsel %vm991, %v1195, %v1197
        %1199 = vrot.lane.b32.xlu0 %v1196, 123
        %v1200 = vpop.permute.xlu0 %1199
        %1201 = vrot.lane.b32.xlu0 %v1198, 123
        %v1202 = vpop.permute.xlu0 %1201
        %v1205 = vadd.f32 %v1184, %v1200
        %v1206 = vadd.f32 %v1185, %v1202
        %s1207 = sld [smem:[#allocation7 + $0x3d]]
        %v1208 = vstv %s1207
        %v1209 = vmul.f32 %v1208, %v800
        %v1210 = vmul.f32 %v1208, %v801
        %v1211 = vmul.f32 %v1208, %v802
        %v1215 = vrot.slane %v1209, 1
        %v1216 = vrot.slane %v1210, 1
        %v1217 = vsel %vm991, %v1215, %v1216
        %v1218 = vrot.slane %v1211, 1
        %v1219 = vsel %vm991, %v1216, %v1218
        %1220 = vrot.lane.b32.xlu0 %v1217, 123
        %v1221 = vpop.permute.xlu0 %1220
        %1222 = vrot.lane.b32.xlu0 %v1219, 123
        %v1223 = vpop.permute.xlu0 %1222
        %v1226 = vadd.f32 %v1205, %v1221
        %v1227 = vadd.f32 %v1206, %v1223
        %s1228 = sld [smem:[#allocation7 + $0xd]]
        %v1229 = vstv %s1228
        %v1230 = vmul.f32 %v1229, %v774
        %v1231 = vmul.f32 %v1229, %v775
        %v1232 = vmul.f32 %v1229, %v776
        %v1236 = vrot.slane %v1230, 1
        %v1237 = vrot.slane %v1231, 1
        %v1238 = vsel %vm991, %v1236, %v1237
        %v1239 = vrot.slane %v1232, 1
        %v1240 = vsel %vm991, %v1237, %v1239
        %1241 = vrot.lane.b32.xlu0 %v1238, 122
        %v1242 = vpop.permute.xlu0 %1241
        %1243 = vrot.lane.b32.xlu0 %v1240, 122
        %v1244 = vpop.permute.xlu0 %1243
        %v1247 = vadd.f32 %v1226, %v1242
        %v1248 = vadd.f32 %v1227, %v1244
        %s1249 = sld [smem:[#allocation7 + $0x3e]]
        %v1250 = vstv %s1249
        %v1251 = vmul.f32 %v1250, %v800
        %v1252 = vmul.f32 %v1250, %v801
        %v1253 = vmul.f32 %v1250, %v802
        %v1257 = vrot.slane %v1251, 1
        %v1258 = vrot.slane %v1252, 1
        %v1259 = vsel %vm991, %v1257, %v1258
        %v1260 = vrot.slane %v1253, 1
        %v1261 = vsel %vm991, %v1258, %v1260
        %1262 = vrot.lane.b32.xlu0 %v1259, 122
        %v1263 = vpop.permute.xlu0 %1262
        %1264 = vrot.lane.b32.xlu0 %v1261, 122
        %v1265 = vpop.permute.xlu0 %1264
        %v1268 = vadd.f32 %v1247, %v1263
        %v1269 = vadd.f32 %v1248, %v1265
        %s1270 = sld [smem:[#allocation7 + $0xe]]
        %v1271 = vstv %s1270
        %v1272 = vmul.f32 %v1271, %v774
        %v1273 = vmul.f32 %v1271, %v775
        %v1274 = vmul.f32 %v1271, %v776
        %vm1278 = vcmask 1045504
        %v1279 = vrot.slane %v1272, 2
        %v1280 = vrot.slane %v1273, 2
        %v1281 = vsel %vm1278, %v1279, %v1280
        %v1282 = vrot.slane %v1274, 2
        %v1283 = vsel %vm1278, %v1280, %v1282
        %v1286 = vadd.f32 %v1268, %v1281
        %v1287 = vadd.f32 %v1269, %v1283
        %s1288 = sld [smem:[#allocation7 + $0x3f]]
        %v1289 = vstv %s1288
        %v1290 = vmul.f32 %v1289, %v800
        %v1291 = vmul.f32 %v1289, %v801
        %v1292 = vmul.f32 %v1289, %v802
        %v1296 = vrot.slane %v1290, 2
        %v1297 = vrot.slane %v1291, 2
        %v1298 = vsel %vm1278, %v1296, %v1297
        %v1299 = vrot.slane %v1292, 2
        %v1300 = vsel %vm1278, %v1297, %v1299
        %v1303 = vadd.f32 %v1286, %v1298
        %v1304 = vadd.f32 %v1287, %v1300
        %s1305 = sld [smem:[#allocation7 + $0xf]]
        %v1306 = vstv %s1305
        %v1307 = vmul.f32 %v1306, %v774
        %v1308 = vmul.f32 %v1306, %v775
        %v1309 = vmul.f32 %v1306, %v776
        %v1313 = vrot.slane %v1307, 2
        %v1314 = vrot.slane %v1308, 2
        %v1315 = vsel %vm1278, %v1313, %v1314
        %v1316 = vrot.slane %v1309, 2
        %v1317 = vsel %vm1278, %v1314, %v1316
        %1318 = vrot.lane.b32.xlu0 %v1315, 127
        %v1319 = vpop.permute.xlu0 %1318
        %1320 = vrot.lane.b32.xlu0 %v1317, 127
        %v1321 = vpop.permute.xlu0 %1320
        %v1324 = vadd.f32 %v1303, %v1319
        %v1325 = vadd.f32 %v1304, %v1321
        %s1326 = sld [smem:[#allocation7 + $0x40]]
        %v1327 = vstv %s1326
        %v1328 = vmul.f32 %v1327, %v800
        %v1329 = vmul.f32 %v1327, %v801
        %v1330 = vmul.f32 %v1327, %v802
        %v1334 = vrot.slane %v1328, 2
        %v1335 = vrot.slane %v1329, 2
        %v1336 = vsel %vm1278, %v1334, %v1335
        %v1337 = vrot.slane %v1330, 2
        %v1338 = vsel %vm1278, %v1335, %v1337
        %1339 = vrot.lane.b32.xlu0 %v1336, 127
        %v1340 = vpop.permute.xlu0 %1339
        %1341 = vrot.lane.b32.xlu0 %v1338, 127
        %v1342 = vpop.permute.xlu0 %1341
        %v1345 = vadd.f32 %v1324, %v1340
        %v1346 = vadd.f32 %v1325, %v1342
        %s1347 = sld [smem:[#allocation7 + $0x10]]
        %v1348 = vstv %s1347
        %v1349 = vmul.f32 %v1348, %v774
        %v1350 = vmul.f32 %v1348, %v775
        %v1351 = vmul.f32 %v1348, %v776
        %v1355 = vrot.slane %v1349, 2
        %v1356 = vrot.slane %v1350, 2
        %v1357 = vsel %vm1278, %v1355, %v1356
        %v1358 = vrot.slane %v1351, 2
        %v1359 = vsel %vm1278, %v1356, %v1358
        %1360 = vrot.lane.b32.xlu0 %v1357, 126
        %v1361 = vpop.permute.xlu0 %1360
        %1362 = vrot.lane.b32.xlu0 %v1359, 126
        %v1363 = vpop.permute.xlu0 %1362
        %v1366 = vadd.f32 %v1345, %v1361
        %v1367 = vadd.f32 %v1346, %v1363
        %s1368 = sld [smem:[#allocation7 + $0x41]]
        %v1369 = vstv %s1368
        %v1370 = vmul.f32 %v1369, %v800
        %v1371 = vmul.f32 %v1369, %v801
        %v1372 = vmul.f32 %v1369, %v802
        %v1376 = vrot.slane %v1370, 2
        %v1377 = vrot.slane %v1371, 2
        %v1378 = vsel %vm1278, %v1376, %v1377
        %v1379 = vrot.slane %v1372, 2
        %v1380 = vsel %vm1278, %v1377, %v1379
        %1381 = vrot.lane.b32.xlu0 %v1378, 126
        %v1382 = vpop.permute.xlu0 %1381
        %1383 = vrot.lane.b32.xlu0 %v1380, 126
        %v1384 = vpop.permute.xlu0 %1383
        %v1387 = vadd.f32 %v1366, %v1382
        %v1388 = vadd.f32 %v1367, %v1384
        %s1389 = sld [smem:[#allocation7 + $0x11]]
        %v1390 = vstv %s1389
        %v1391 = vmul.f32 %v1390, %v774
        %v1392 = vmul.f32 %v1390, %v775
        %v1393 = vmul.f32 %v1390, %v776
        %v1397 = vrot.slane %v1391, 2
        %v1398 = vrot.slane %v1392, 2
        %v1399 = vsel %vm1278, %v1397, %v1398
        %v1400 = vrot.slane %v1393, 2
        %v1401 = vsel %vm1278, %v1398, %v1400
        %1402 = vrot.lane.b32.xlu0 %v1399, 125
        %v1403 = vpop.permute.xlu0 %1402
        %1404 = vrot.lane.b32.xlu0 %v1401, 125
        %v1405 = vpop.permute.xlu0 %1404
        %v1408 = vadd.f32 %v1387, %v1403
        %v1409 = vadd.f32 %v1388, %v1405
        %s1410 = sld [smem:[#allocation7 + $0x42]]
        %v1411 = vstv %s1410
        %v1412 = vmul.f32 %v1411, %v800
        %v1413 = vmul.f32 %v1411, %v801
        %v1414 = vmul.f32 %v1411, %v802
        %v1418 = vrot.slane %v1412, 2
        %v1419 = vrot.slane %v1413, 2
        %v1420 = vsel %vm1278, %v1418, %v1419
        %v1421 = vrot.slane %v1414, 2
        %v1422 = vsel %vm1278, %v1419, %v1421
        %1423 = vrot.lane.b32.xlu0 %v1420, 125
        %v1424 = vpop.permute.xlu0 %1423
        %1425 = vrot.lane.b32.xlu0 %v1422, 125
        %v1426 = vpop.permute.xlu0 %1425
        %v1429 = vadd.f32 %v1408, %v1424
        %v1430 = vadd.f32 %v1409, %v1426
        %s1431 = sld [smem:[#allocation7 + $0x12]]
        %v1432 = vstv %s1431
        %v1433 = vmul.f32 %v1432, %v774
        %v1434 = vmul.f32 %v1432, %v775
        %v1435 = vmul.f32 %v1432, %v776
        %v1439 = vrot.slane %v1433, 2
        %v1440 = vrot.slane %v1434, 2
        %v1441 = vsel %vm1278, %v1439, %v1440
        %v1442 = vrot.slane %v1435, 2
        %v1443 = vsel %vm1278, %v1440, %v1442
        %1444 = vrot.lane.b32.xlu0 %v1441, 124
        %v1445 = vpop.permute.xlu0 %1444
        %1446 = vrot.lane.b32.xlu0 %v1443, 124
        %v1447 = vpop.permute.xlu0 %1446
        %v1450 = vadd.f32 %v1429, %v1445
        %v1451 = vadd.f32 %v1430, %v1447
        %s1452 = sld [smem:[#allocation7 + $0x43]]
        %v1453 = vstv %s1452
        %v1454 = vmul.f32 %v1453, %v800
        %v1455 = vmul.f32 %v1453, %v801
        %v1456 = vmul.f32 %v1453, %v802
        %v1460 = vrot.slane %v1454, 2
        %v1461 = vrot.slane %v1455, 2
        %v1462 = vsel %vm1278, %v1460, %v1461
        %v1463 = vrot.slane %v1456, 2
        %v1464 = vsel %vm1278, %v1461, %v1463
        %1465 = vrot.lane.b32.xlu0 %v1462, 124
        %v1466 = vpop.permute.xlu0 %1465
        %1467 = vrot.lane.b32.xlu0 %v1464, 124
        %v1468 = vpop.permute.xlu0 %1467
        %v1471 = vadd.f32 %v1450, %v1466
        %v1472 = vadd.f32 %v1451, %v1468
        %s1473 = sld [smem:[#allocation7 + $0x13]]
        %v1474 = vstv %s1473
        %v1475 = vmul.f32 %v1474, %v774
        %v1476 = vmul.f32 %v1474, %v775
        %v1477 = vmul.f32 %v1474, %v776
        %v1481 = vrot.slane %v1475, 2
        %v1482 = vrot.slane %v1476, 2
        %v1483 = vsel %vm1278, %v1481, %v1482
        %v1484 = vrot.slane %v1477, 2
        %v1485 = vsel %vm1278, %v1482, %v1484
        %1486 = vrot.lane.b32.xlu0 %v1483, 123
        %v1487 = vpop.permute.xlu0 %1486
        %1488 = vrot.lane.b32.xlu0 %v1485, 123
        %v1489 = vpop.permute.xlu0 %1488
        %v1492 = vadd.f32 %v1471, %v1487
        %v1493 = vadd.f32 %v1472, %v1489
        %s1494 = sld [smem:[#allocation7 + $0x44]]
        %v1495 = vstv %s1494
        %v1496 = vmul.f32 %v1495, %v800
        %v1497 = vmul.f32 %v1495, %v801
        %v1498 = vmul.f32 %v1495, %v802
        %v1502 = vrot.slane %v1496, 2
        %v1503 = vrot.slane %v1497, 2
        %v1504 = vsel %vm1278, %v1502, %v1503
        %v1505 = vrot.slane %v1498, 2
        %v1506 = vsel %vm1278, %v1503, %v1505
        %1507 = vrot.lane.b32.xlu0 %v1504, 123
        %v1508 = vpop.permute.xlu0 %1507
        %1509 = vrot.lane.b32.xlu0 %v1506, 123
        %v1510 = vpop.permute.xlu0 %1509
        %v1513 = vadd.f32 %v1492, %v1508
        %v1514 = vadd.f32 %v1493, %v1510
        %s1515 = sld [smem:[#allocation7 + $0x14]]
        %v1516 = vstv %s1515
        %v1517 = vmul.f32 %v1516, %v774
        %v1518 = vmul.f32 %v1516, %v775
        %v1519 = vmul.f32 %v1516, %v776
        %v1523 = vrot.slane %v1517, 2
        %v1524 = vrot.slane %v1518, 2
        %v1525 = vsel %vm1278, %v1523, %v1524
        %v1526 = vrot.slane %v1519, 2
        %v1527 = vsel %vm1278, %v1524, %v1526
        %1528 = vrot.lane.b32.xlu0 %v1525, 122
        %v1529 = vpop.permute.xlu0 %1528
        %1530 = vrot.lane.b32.xlu0 %v1527, 122
        %v1531 = vpop.permute.xlu0 %1530
        %v1534 = vadd.f32 %v1513, %v1529
        %v1535 = vadd.f32 %v1514, %v1531
        %s1536 = sld [smem:[#allocation7 + $0x45]]
        %v1537 = vstv %s1536
        %v1538 = vmul.f32 %v1537, %v800
        %v1539 = vmul.f32 %v1537, %v801
        %v1540 = vmul.f32 %v1537, %v802
        %v1544 = vrot.slane %v1538, 2
        %v1545 = vrot.slane %v1539, 2
        %v1546 = vsel %vm1278, %v1544, %v1545
        %v1547 = vrot.slane %v1540, 2
        %v1548 = vsel %vm1278, %v1545, %v1547
        %1549 = vrot.lane.b32.xlu0 %v1546, 122
        %v1550 = vpop.permute.xlu0 %1549
        %1551 = vrot.lane.b32.xlu0 %v1548, 122
        %v1552 = vpop.permute.xlu0 %1551
        %v1555 = vadd.f32 %v1534, %v1550
        %v1556 = vadd.f32 %v1535, %v1552
        %s1557 = sld [smem:[#allocation7 + $0x15]]
        %v1558 = vstv %s1557
        %v1559 = vmul.f32 %v1558, %v774
        %v1560 = vmul.f32 %v1558, %v775
        %v1561 = vmul.f32 %v1558, %v776
        %vm1565 = vcmask 1044480
        %v1566 = vrot.slane %v1559, 3
        %v1567 = vrot.slane %v1560, 3
        %v1568 = vsel %vm1565, %v1566, %v1567
        %v1569 = vrot.slane %v1561, 3
        %v1570 = vsel %vm1565, %v1567, %v1569
        %v1573 = vadd.f32 %v1555, %v1568
        %v1574 = vadd.f32 %v1556, %v1570
        %s1575 = sld [smem:[#allocation7 + $0x46]]
        %v1576 = vstv %s1575
        %v1577 = vmul.f32 %v1576, %v800
        %v1578 = vmul.f32 %v1576, %v801
        %v1579 = vmul.f32 %v1576, %v802
        %v1583 = vrot.slane %v1577, 3
        %v1584 = vrot.slane %v1578, 3
        %v1585 = vsel %vm1565, %v1583, %v1584
        %v1586 = vrot.slane %v1579, 3
        %v1587 = vsel %vm1565, %v1584, %v1586
        %v1590 = vadd.f32 %v1573, %v1585
        %v1591 = vadd.f32 %v1574, %v1587
        %s1592 = sld [smem:[#allocation7 + $0x16]]
        %v1593 = vstv %s1592
        %v1594 = vmul.f32 %v1593, %v774
        %v1595 = vmul.f32 %v1593, %v775
        %v1596 = vmul.f32 %v1593, %v776
        %v1600 = vrot.slane %v1594, 3
        %v1601 = vrot.slane %v1595, 3
        %v1602 = vsel %vm1565, %v1600, %v1601
        %v1603 = vrot.slane %v1596, 3
        %v1604 = vsel %vm1565, %v1601, %v1603
        %1605 = vrot.lane.b32.xlu0 %v1602, 127
        %v1606 = vpop.permute.xlu0 %1605
        %1607 = vrot.lane.b32.xlu0 %v1604, 127
        %v1608 = vpop.permute.xlu0 %1607
        %v1611 = vadd.f32 %v1590, %v1606
        %v1612 = vadd.f32 %v1591, %v1608
        %s1613 = sld [smem:[#allocation7 + $0x47]]
        %v1614 = vstv %s1613
        %v1615 = vmul.f32 %v1614, %v800
        %v1616 = vmul.f32 %v1614, %v801
        %v1617 = vmul.f32 %v1614, %v802
        %v1621 = vrot.slane %v1615, 3
        %v1622 = vrot.slane %v1616, 3
        %v1623 = vsel %vm1565, %v1621, %v1622
        %v1624 = vrot.slane %v1617, 3
        %v1625 = vsel %vm1565, %v1622, %v1624
        %1626 = vrot.lane.b32.xlu0 %v1623, 127
        %v1627 = vpop.permute.xlu0 %1626
        %1628 = vrot.lane.b32.xlu0 %v1625, 127
        %v1629 = vpop.permute.xlu0 %1628
        %v1632 = vadd.f32 %v1611, %v1627
        %v1633 = vadd.f32 %v1612, %v1629
        %s1634 = sld [smem:[#allocation7 + $0x17]]
        %v1635 = vstv %s1634
        %v1636 = vmul.f32 %v1635, %v774
        %v1637 = vmul.f32 %v1635, %v775
        %v1638 = vmul.f32 %v1635, %v776
        %v1642 = vrot.slane %v1636, 3
        %v1643 = vrot.slane %v1637, 3
        %v1644 = vsel %vm1565, %v1642, %v1643
        %v1645 = vrot.slane %v1638, 3
        %v1646 = vsel %vm1565, %v1643, %v1645
        %1647 = vrot.lane.b32.xlu0 %v1644, 126
        %v1648 = vpop.permute.xlu0 %1647
        %1649 = vrot.lane.b32.xlu0 %v1646, 126
        %v1650 = vpop.permute.xlu0 %1649
        %v1653 = vadd.f32 %v1632, %v1648
        %v1654 = vadd.f32 %v1633, %v1650
        %s1655 = sld [smem:[#allocation7 + $0x48]]
        %v1656 = vstv %s1655
        %v1657 = vmul.f32 %v1656, %v800
        %v1658 = vmul.f32 %v1656, %v801
        %v1659 = vmul.f32 %v1656, %v802
        %v1663 = vrot.slane %v1657, 3
        %v1664 = vrot.slane %v1658, 3
        %v1665 = vsel %vm1565, %v1663, %v1664
        %v1666 = vrot.slane %v1659, 3
        %v1667 = vsel %vm1565, %v1664, %v1666
        %1668 = vrot.lane.b32.xlu0 %v1665, 126
        %v1669 = vpop.permute.xlu0 %1668
        %1670 = vrot.lane.b32.xlu0 %v1667, 126
        %v1671 = vpop.permute.xlu0 %1670
        %v1674 = vadd.f32 %v1653, %v1669
        %v1675 = vadd.f32 %v1654, %v1671
        %s1676 = sld [smem:[#allocation7 + $0x18]]
        %v1677 = vstv %s1676
        %v1678 = vmul.f32 %v1677, %v774
        %v1679 = vmul.f32 %v1677, %v775
        %v1680 = vmul.f32 %v1677, %v776
        %v1684 = vrot.slane %v1678, 3
        %v1685 = vrot.slane %v1679, 3
        %v1686 = vsel %vm1565, %v1684, %v1685
        %v1687 = vrot.slane %v1680, 3
        %v1688 = vsel %vm1565, %v1685, %v1687
        %1689 = vrot.lane.b32.xlu0 %v1686, 125
        %v1690 = vpop.permute.xlu0 %1689
        %1691 = vrot.lane.b32.xlu0 %v1688, 125
        %v1692 = vpop.permute.xlu0 %1691
        %v1695 = vadd.f32 %v1674, %v1690
        %v1696 = vadd.f32 %v1675, %v1692
        %s1697 = sld [smem:[#allocation7 + $0x49]]
        %v1698 = vstv %s1697
        %v1699 = vmul.f32 %v1698, %v800
        %v1700 = vmul.f32 %v1698, %v801
        %v1701 = vmul.f32 %v1698, %v802
        %v1705 = vrot.slane %v1699, 3
        %v1706 = vrot.slane %v1700, 3
        %v1707 = vsel %vm1565, %v1705, %v1706
        %v1708 = vrot.slane %v1701, 3
        %v1709 = vsel %vm1565, %v1706, %v1708
        %1710 = vrot.lane.b32.xlu0 %v1707, 125
        %v1711 = vpop.permute.xlu0 %1710
        %1712 = vrot.lane.b32.xlu0 %v1709, 125
        %v1713 = vpop.permute.xlu0 %1712
        %v1716 = vadd.f32 %v1695, %v1711
        %v1717 = vadd.f32 %v1696, %v1713
        %s1718 = sld [smem:[#allocation7 + $0x19]]
        %v1719 = vstv %s1718
        %v1720 = vmul.f32 %v1719, %v774
        %v1721 = vmul.f32 %v1719, %v775
        %v1722 = vmul.f32 %v1719, %v776
        %v1726 = vrot.slane %v1720, 3
        %v1727 = vrot.slane %v1721, 3
        %v1728 = vsel %vm1565, %v1726, %v1727
        %v1729 = vrot.slane %v1722, 3
        %v1730 = vsel %vm1565, %v1727, %v1729
        %1731 = vrot.lane.b32.xlu0 %v1728, 124
        %v1732 = vpop.permute.xlu0 %1731
        %1733 = vrot.lane.b32.xlu0 %v1730, 124
        %v1734 = vpop.permute.xlu0 %1733
        %v1737 = vadd.f32 %v1716, %v1732
        %v1738 = vadd.f32 %v1717, %v1734
        %s1739 = sld [smem:[#allocation7 + $0x4a]]
        %v1740 = vstv %s1739
        %v1741 = vmul.f32 %v1740, %v800
        %v1742 = vmul.f32 %v1740, %v801
        %v1743 = vmul.f32 %v1740, %v802
        %v1747 = vrot.slane %v1741, 3
        %v1748 = vrot.slane %v1742, 3
        %v1749 = vsel %vm1565, %v1747, %v1748
        %v1750 = vrot.slane %v1743, 3
        %v1751 = vsel %vm1565, %v1748, %v1750
        %1752 = vrot.lane.b32.xlu0 %v1749, 124
        %v1753 = vpop.permute.xlu0 %1752
        %1754 = vrot.lane.b32.xlu0 %v1751, 124
        %v1755 = vpop.permute.xlu0 %1754
        %v1758 = vadd.f32 %v1737, %v1753
        %v1759 = vadd.f32 %v1738, %v1755
        %s1760 = sld [smem:[#allocation7 + $0x1a]]
        %v1761 = vstv %s1760
        %v1762 = vmul.f32 %v1761, %v774
        %v1763 = vmul.f32 %v1761, %v775
        %v1764 = vmul.f32 %v1761, %v776
        %v1768 = vrot.slane %v1762, 3
        %v1769 = vrot.slane %v1763, 3
        %v1770 = vsel %vm1565, %v1768, %v1769
        %v1771 = vrot.slane %v1764, 3
        %v1772 = vsel %vm1565, %v1769, %v1771
        %1773 = vrot.lane.b32.xlu0 %v1770, 123
        %v1774 = vpop.permute.xlu0 %1773
        %1775 = vrot.lane.b32.xlu0 %v1772, 123
        %v1776 = vpop.permute.xlu0 %1775
        %v1779 = vadd.f32 %v1758, %v1774
        %v1780 = vadd.f32 %v1759, %v1776
        %s1781 = sld [smem:[#allocation7 + $0x4b]]
        %v1782 = vstv %s1781
        %v1783 = vmul.f32 %v1782, %v800
        %v1784 = vmul.f32 %v1782, %v801
        %v1785 = vmul.f32 %v1782, %v802
        %v1789 = vrot.slane %v1783, 3
        %v1790 = vrot.slane %v1784, 3
        %v1791 = vsel %vm1565, %v1789, %v1790
        %v1792 = vrot.slane %v1785, 3
        %v1793 = vsel %vm1565, %v1790, %v1792
        %1794 = vrot.lane.b32.xlu0 %v1791, 123
        %v1795 = vpop.permute.xlu0 %1794
        %1796 = vrot.lane.b32.xlu0 %v1793, 123
        %v1797 = vpop.permute.xlu0 %1796
        %v1800 = vadd.f32 %v1779, %v1795
        %v1801 = vadd.f32 %v1780, %v1797
        %s1802 = sld [smem:[#allocation7 + $0x1b]]
        %v1803 = vstv %s1802
        %v1804 = vmul.f32 %v1803, %v774
        %v1805 = vmul.f32 %v1803, %v775
        %v1806 = vmul.f32 %v1803, %v776
        %v1810 = vrot.slane %v1804, 3
        %v1811 = vrot.slane %v1805, 3
        %v1812 = vsel %vm1565, %v1810, %v1811
        %v1813 = vrot.slane %v1806, 3
        %v1814 = vsel %vm1565, %v1811, %v1813
        %1815 = vrot.lane.b32.xlu0 %v1812, 122
        %v1816 = vpop.permute.xlu0 %1815
        %1817 = vrot.lane.b32.xlu0 %v1814, 122
        %v1818 = vpop.permute.xlu0 %1817
        %v1821 = vadd.f32 %v1800, %v1816
        %v1822 = vadd.f32 %v1801, %v1818
        %s1823 = sld [smem:[#allocation7 + $0x4c]]
        %v1824 = vstv %s1823
        %v1825 = vmul.f32 %v1824, %v800
        %v1826 = vmul.f32 %v1824, %v801
        %v1827 = vmul.f32 %v1824, %v802
        %v1831 = vrot.slane %v1825, 3
        %v1832 = vrot.slane %v1826, 3
        %v1833 = vsel %vm1565, %v1831, %v1832
        %v1834 = vrot.slane %v1827, 3
        %v1835 = vsel %vm1565, %v1832, %v1834
        %1836 = vrot.lane.b32.xlu0 %v1833, 122
        %v1837 = vpop.permute.xlu0 %1836
        %1838 = vrot.lane.b32.xlu0 %v1835, 122
        %v1839 = vpop.permute.xlu0 %1838
        %v1842 = vadd.f32 %v1821, %v1837
        %v1843 = vadd.f32 %v1822, %v1839
        %s1844 = sld [smem:[#allocation7 + $0x1c]]
        %v1845 = vstv %s1844
        %v1846 = vmul.f32 %v1845, %v774
        %v1847 = vmul.f32 %v1845, %v775
        %v1848 = vmul.f32 %v1845, %v776
        %vm1852 = vcmask 1043456
        %v1853 = vrot.slane %v1846, 4
        %v1854 = vrot.slane %v1847, 4
        %v1855 = vsel %vm1852, %v1853, %v1854
        %v1856 = vrot.slane %v1848, 4
        %v1857 = vsel %vm1852, %v1854, %v1856
        %v1860 = vadd.f32 %v1842, %v1855
        %v1861 = vadd.f32 %v1843, %v1857
        %s1862 = sld [smem:[#allocation7 + $0x4d]]
        %v1863 = vstv %s1862
        %v1864 = vmul.f32 %v1863, %v800
        %v1865 = vmul.f32 %v1863, %v801
        %v1866 = vmul.f32 %v1863, %v802
        %v1870 = vrot.slane %v1864, 4
        %v1871 = vrot.slane %v1865, 4
        %v1872 = vsel %vm1852, %v1870, %v1871
        %v1873 = vrot.slane %v1866, 4
        %v1874 = vsel %vm1852, %v1871, %v1873
        %v1877 = vadd.f32 %v1860, %v1872
        %v1878 = vadd.f32 %v1861, %v1874
        %s1879 = sld [smem:[#allocation7 + $0x1d]]
        %v1880 = vstv %s1879
        %v1881 = vmul.f32 %v1880, %v774
        %v1882 = vmul.f32 %v1880, %v775
        %v1883 = vmul.f32 %v1880, %v776
        %v1887 = vrot.slane %v1881, 4
        %v1888 = vrot.slane %v1882, 4
        %v1889 = vsel %vm1852, %v1887, %v1888
        %v1890 = vrot.slane %v1883, 4
        %v1891 = vsel %vm1852, %v1888, %v1890
        %1892 = vrot.lane.b32.xlu0 %v1889, 127
        %v1893 = vpop.permute.xlu0 %1892
        %1894 = vrot.lane.b32.xlu0 %v1891, 127
        %v1895 = vpop.permute.xlu0 %1894
        %v1898 = vadd.f32 %v1877, %v1893
        %v1899 = vadd.f32 %v1878, %v1895
        %s1900 = sld [smem:[#allocation7 + $0x4e]]
        %v1901 = vstv %s1900
        %v1902 = vmul.f32 %v1901, %v800
        %v1903 = vmul.f32 %v1901, %v801
        %v1904 = vmul.f32 %v1901, %v802
        %v1908 = vrot.slane %v1902, 4
        %v1909 = vrot.slane %v1903, 4
        %v1910 = vsel %vm1852, %v1908, %v1909
        %v1911 = vrot.slane %v1904, 4
        %v1912 = vsel %vm1852, %v1909, %v1911
        %1913 = vrot.lane.b32.xlu0 %v1910, 127
        %v1914 = vpop.permute.xlu0 %1913
        %1915 = vrot.lane.b32.xlu0 %v1912, 127
        %v1916 = vpop.permute.xlu0 %1915
        %v1919 = vadd.f32 %v1898, %v1914
        %v1920 = vadd.f32 %v1899, %v1916
        %s1921 = sld [smem:[#allocation7 + $0x1e]]
        %v1922 = vstv %s1921
        %v1923 = vmul.f32 %v1922, %v774
        %v1924 = vmul.f32 %v1922, %v775
        %v1925 = vmul.f32 %v1922, %v776
        %v1929 = vrot.slane %v1923, 4
        %v1930 = vrot.slane %v1924, 4
        %v1931 = vsel %vm1852, %v1929, %v1930
        %v1932 = vrot.slane %v1925, 4
        %v1933 = vsel %vm1852, %v1930, %v1932
        %1934 = vrot.lane.b32.xlu0 %v1931, 126
        %v1935 = vpop.permute.xlu0 %1934
        %1936 = vrot.lane.b32.xlu0 %v1933, 126
        %v1937 = vpop.permute.xlu0 %1936
        %v1940 = vadd.f32 %v1919, %v1935
        %v1941 = vadd.f32 %v1920, %v1937
        %s1942 = sld [smem:[#allocation7 + $0x4f]]
        %v1943 = vstv %s1942
        %v1944 = vmul.f32 %v1943, %v800
        %v1945 = vmul.f32 %v1943, %v801
        %v1946 = vmul.f32 %v1943, %v802
        %v1950 = vrot.slane %v1944, 4
        %v1951 = vrot.slane %v1945, 4
        %v1952 = vsel %vm1852, %v1950, %v1951
        %v1953 = vrot.slane %v1946, 4
        %v1954 = vsel %vm1852, %v1951, %v1953
        %1955 = vrot.lane.b32.xlu0 %v1952, 126
        %v1956 = vpop.permute.xlu0 %1955
        %1957 = vrot.lane.b32.xlu0 %v1954, 126
        %v1958 = vpop.permute.xlu0 %1957
        %v1961 = vadd.f32 %v1940, %v1956
        %v1962 = vadd.f32 %v1941, %v1958
        %s1963 = sld [smem:[#allocation7 + $0x1f]]
        %v1964 = vstv %s1963
        %v1965 = vmul.f32 %v1964, %v774
        %v1966 = vmul.f32 %v1964, %v775
        %v1967 = vmul.f32 %v1964, %v776
        %v1971 = vrot.slane %v1965, 4
        %v1972 = vrot.slane %v1966, 4
        %v1973 = vsel %vm1852, %v1971, %v1972
        %v1974 = vrot.slane %v1967, 4
        %v1975 = vsel %vm1852, %v1972, %v1974
        %1976 = vrot.lane.b32.xlu0 %v1973, 125
        %v1977 = vpop.permute.xlu0 %1976
        %1978 = vrot.lane.b32.xlu0 %v1975, 125
        %v1979 = vpop.permute.xlu0 %1978
        %v1982 = vadd.f32 %v1961, %v1977
        %v1983 = vadd.f32 %v1962, %v1979
        %s1984 = sld [smem:[#allocation7 + $0x50]]
        %v1985 = vstv %s1984
        %v1986 = vmul.f32 %v1985, %v800
        %v1987 = vmul.f32 %v1985, %v801
        %v1988 = vmul.f32 %v1985, %v802
        %v1992 = vrot.slane %v1986, 4
        %v1993 = vrot.slane %v1987, 4
        %v1994 = vsel %vm1852, %v1992, %v1993
        %v1995 = vrot.slane %v1988, 4
        %v1996 = vsel %vm1852, %v1993, %v1995
        %1997 = vrot.lane.b32.xlu0 %v1994, 125
        %v1998 = vpop.permute.xlu0 %1997
        %1999 = vrot.lane.b32.xlu0 %v1996, 125
        %v2000 = vpop.permute.xlu0 %1999
        %v2003 = vadd.f32 %v1982, %v1998
        %v2004 = vadd.f32 %v1983, %v2000
        %s2005 = sld [smem:[#allocation7 + $0x20]]
        %v2006 = vstv %s2005
        %v2007 = vmul.f32 %v2006, %v774
        %v2008 = vmul.f32 %v2006, %v775
        %v2009 = vmul.f32 %v2006, %v776
        %v2013 = vrot.slane %v2007, 4
        %v2014 = vrot.slane %v2008, 4
        %v2015 = vsel %vm1852, %v2013, %v2014
        %v2016 = vrot.slane %v2009, 4
        %v2017 = vsel %vm1852, %v2014, %v2016
        %2018 = vrot.lane.b32.xlu0 %v2015, 124
        %v2019 = vpop.permute.xlu0 %2018
        %2020 = vrot.lane.b32.xlu0 %v2017, 124
        %v2021 = vpop.permute.xlu0 %2020
        %v2024 = vadd.f32 %v2003, %v2019
        %v2025 = vadd.f32 %v2004, %v2021
        %s2026 = sld [smem:[#allocation7 + $0x51]]
        %v2027 = vstv %s2026
        %v2028 = vmul.f32 %v2027, %v800
        %v2029 = vmul.f32 %v2027, %v801
        %v2030 = vmul.f32 %v2027, %v802
        %v2034 = vrot.slane %v2028, 4
        %v2035 = vrot.slane %v2029, 4
        %v2036 = vsel %vm1852, %v2034, %v2035
        %v2037 = vrot.slane %v2030, 4
        %v2038 = vsel %vm1852, %v2035, %v2037
        %2039 = vrot.lane.b32.xlu0 %v2036, 124
        %v2040 = vpop.permute.xlu0 %2039
        %2041 = vrot.lane.b32.xlu0 %v2038, 124
        %v2042 = vpop.permute.xlu0 %2041
        %v2045 = vadd.f32 %v2024, %v2040
        %v2046 = vadd.f32 %v2025, %v2042
        %s2047 = sld [smem:[#allocation7 + $0x21]]
        %v2048 = vstv %s2047
        %v2049 = vmul.f32 %v2048, %v774
        %v2050 = vmul.f32 %v2048, %v775
        %v2051 = vmul.f32 %v2048, %v776
        %v2055 = vrot.slane %v2049, 4
        %v2056 = vrot.slane %v2050, 4
        %v2057 = vsel %vm1852, %v2055, %v2056
        %v2058 = vrot.slane %v2051, 4
        %v2059 = vsel %vm1852, %v2056, %v2058
        %2060 = vrot.lane.b32.xlu0 %v2057, 123
        %v2061 = vpop.permute.xlu0 %2060
        %2062 = vrot.lane.b32.xlu0 %v2059, 123
        %v2063 = vpop.permute.xlu0 %2062
        %v2066 = vadd.f32 %v2045, %v2061
        %v2067 = vadd.f32 %v2046, %v2063
        %s2068 = sld [smem:[#allocation7 + $0x52]]
        %v2069 = vstv %s2068
        %v2070 = vmul.f32 %v2069, %v800
        %v2071 = vmul.f32 %v2069, %v801
        %v2072 = vmul.f32 %v2069, %v802
        %v2076 = vrot.slane %v2070, 4
        %v2077 = vrot.slane %v2071, 4
        %v2078 = vsel %vm1852, %v2076, %v2077
        %v2079 = vrot.slane %v2072, 4
        %v2080 = vsel %vm1852, %v2077, %v2079
        %2081 = vrot.lane.b32.xlu0 %v2078, 123
        %v2082 = vpop.permute.xlu0 %2081
        %2083 = vrot.lane.b32.xlu0 %v2080, 123
        %v2084 = vpop.permute.xlu0 %2083
        %v2087 = vadd.f32 %v2066, %v2082
        %v2088 = vadd.f32 %v2067, %v2084
        %s2089 = sld [smem:[#allocation7 + $0x22]]
        %v2090 = vstv %s2089
        %v2091 = vmul.f32 %v2090, %v774
        %v2092 = vmul.f32 %v2090, %v775
        %v2093 = vmul.f32 %v2090, %v776
        %v2097 = vrot.slane %v2091, 4
        %v2098 = vrot.slane %v2092, 4
        %v2099 = vsel %vm1852, %v2097, %v2098
        %v2100 = vrot.slane %v2093, 4
        %v2101 = vsel %vm1852, %v2098, %v2100
        %2102 = vrot.lane.b32.xlu0 %v2099, 122
        %v2103 = vpop.permute.xlu0 %2102
        %2104 = vrot.lane.b32.xlu0 %v2101, 122
        %v2105 = vpop.permute.xlu0 %2104
        %v2108 = vadd.f32 %v2087, %v2103
        %v2109 = vadd.f32 %v2088, %v2105
        %s2110 = sld [smem:[#allocation7 + $0x53]]
        %v2111 = vstv %s2110
        %v2112 = vmul.f32 %v2111, %v800
        %v2113 = vmul.f32 %v2111, %v801
        %v2114 = vmul.f32 %v2111, %v802
        %v2118 = vrot.slane %v2112, 4
        %v2119 = vrot.slane %v2113, 4
        %v2120 = vsel %vm1852, %v2118, %v2119
        %v2121 = vrot.slane %v2114, 4
        %v2122 = vsel %vm1852, %v2119, %v2121
        %2123 = vrot.lane.b32.xlu0 %v2120, 122
        %v2124 = vpop.permute.xlu0 %2123
        %2125 = vrot.lane.b32.xlu0 %v2122, 122
        %v2126 = vpop.permute.xlu0 %2125
        %v2129 = vadd.f32 %v2108, %v2124
        %v2130 = vadd.f32 %v2109, %v2126
        %s2131 = sld [smem:[#allocation7 + $0x23]]
        %v2132 = vstv %s2131
        %v2133 = vmul.f32 %v2132, %v774
        %v2134 = vmul.f32 %v2132, %v775
        %v2135 = vmul.f32 %v2132, %v776
        %v2139 = vrot.slane %v2133, 5
        %v2140 = vrot.slane %v2134, 5
        %v2141 = vsel %vm750, %v2139, %v2140
        %v2142 = vrot.slane %v2135, 5
        %v2143 = vsel %vm750, %v2140, %v2142
        %v2146 = vadd.f32 %v2129, %v2141
        %v2147 = vadd.f32 %v2130, %v2143
        %s2148 = sld [smem:[#allocation7 + $0x54]]
        %v2149 = vstv %s2148
        %v2150 = vmul.f32 %v2149, %v800
        %v2151 = vmul.f32 %v2149, %v801
        %v2152 = vmul.f32 %v2149, %v802
        %v2156 = vrot.slane %v2150, 5
        %v2157 = vrot.slane %v2151, 5
        %v2158 = vsel %vm750, %v2156, %v2157
        %v2159 = vrot.slane %v2152, 5
        %v2160 = vsel %vm750, %v2157, %v2159
        %v2163 = vadd.f32 %v2146, %v2158
        %v2164 = vadd.f32 %v2147, %v2160
        %s2165 = sld [smem:[#allocation7 + $0x24]]
        %v2166 = vstv %s2165
        %v2167 = vmul.f32 %v2166, %v774
        %v2168 = vmul.f32 %v2166, %v775
        %v2169 = vmul.f32 %v2166, %v776
        %v2173 = vrot.slane %v2167, 5
        %v2174 = vrot.slane %v2168, 5
        %v2175 = vsel %vm750, %v2173, %v2174
        %v2176 = vrot.slane %v2169, 5
        %v2177 = vsel %vm750, %v2174, %v2176
        %2178 = vrot.lane.b32.xlu0 %v2175, 127
        %v2179 = vpop.permute.xlu0 %2178
        %2180 = vrot.lane.b32.xlu0 %v2177, 127
        %v2181 = vpop.permute.xlu0 %2180
        %v2184 = vadd.f32 %v2163, %v2179
        %v2185 = vadd.f32 %v2164, %v2181
        %s2186 = sld [smem:[#allocation7 + $0x55]]
        %v2187 = vstv %s2186
        %v2188 = vmul.f32 %v2187, %v800
        %v2189 = vmul.f32 %v2187, %v801
        %v2190 = vmul.f32 %v2187, %v802
        %v2194 = vrot.slane %v2188, 5
        %v2195 = vrot.slane %v2189, 5
        %v2196 = vsel %vm750, %v2194, %v2195
        %v2197 = vrot.slane %v2190, 5
        %v2198 = vsel %vm750, %v2195, %v2197
        %2199 = vrot.lane.b32.xlu0 %v2196, 127
        %v2200 = vpop.permute.xlu0 %2199
        %2201 = vrot.lane.b32.xlu0 %v2198, 127
        %v2202 = vpop.permute.xlu0 %2201
        %v2205 = vadd.f32 %v2184, %v2200
        %v2206 = vadd.f32 %v2185, %v2202
        %s2207 = sld [smem:[#allocation7 + $0x25]]
        %v2208 = vstv %s2207
        %v2209 = vmul.f32 %v2208, %v774
        %v2210 = vmul.f32 %v2208, %v775
        %v2211 = vmul.f32 %v2208, %v776
        %v2215 = vrot.slane %v2209, 5
        %v2216 = vrot.slane %v2210, 5
        %v2217 = vsel %vm750, %v2215, %v2216
        %v2218 = vrot.slane %v2211, 5
        %v2219 = vsel %vm750, %v2216, %v2218
        %2220 = vrot.lane.b32.xlu0 %v2217, 126
        %v2221 = vpop.permute.xlu0 %2220
        %2222 = vrot.lane.b32.xlu0 %v2219, 126
        %v2223 = vpop.permute.xlu0 %2222
        %v2226 = vadd.f32 %v2205, %v2221
        %v2227 = vadd.f32 %v2206, %v2223
        %s2228 = sld [smem:[#allocation7 + $0x56]]
        %v2229 = vstv %s2228
        %v2230 = vmul.f32 %v2229, %v800
        %v2231 = vmul.f32 %v2229, %v801
        %v2232 = vmul.f32 %v2229, %v802
        %v2236 = vrot.slane %v2230, 5
        %v2237 = vrot.slane %v2231, 5
        %v2238 = vsel %vm750, %v2236, %v2237
        %v2239 = vrot.slane %v2232, 5
        %v2240 = vsel %vm750, %v2237, %v2239
        %2241 = vrot.lane.b32.xlu0 %v2238, 126
        %v2242 = vpop.permute.xlu0 %2241
        %2243 = vrot.lane.b32.xlu0 %v2240, 126
        %v2244 = vpop.permute.xlu0 %2243
        %v2247 = vadd.f32 %v2226, %v2242
        %v2248 = vadd.f32 %v2227, %v2244
        %s2249 = sld [smem:[#allocation7 + $0x26]]
        %v2250 = vstv %s2249
        %v2251 = vmul.f32 %v2250, %v774
        %v2252 = vmul.f32 %v2250, %v775
        %v2253 = vmul.f32 %v2250, %v776
        %v2257 = vrot.slane %v2251, 5
        %v2258 = vrot.slane %v2252, 5
        %v2259 = vsel %vm750, %v2257, %v2258
        %v2260 = vrot.slane %v2253, 5
        %v2261 = vsel %vm750, %v2258, %v2260
        %2262 = vrot.lane.b32.xlu0 %v2259, 125
        %v2263 = vpop.permute.xlu0 %2262
        %2264 = vrot.lane.b32.xlu0 %v2261, 125
        %v2265 = vpop.permute.xlu0 %2264
        %v2268 = vadd.f32 %v2247, %v2263
        %v2269 = vadd.f32 %v2248, %v2265
        %s2270 = sld [smem:[#allocation7 + $0x57]]
        %v2271 = vstv %s2270
        %v2272 = vmul.f32 %v2271, %v800
        %v2273 = vmul.f32 %v2271, %v801
        %v2274 = vmul.f32 %v2271, %v802
        %v2278 = vrot.slane %v2272, 5
        %v2279 = vrot.slane %v2273, 5
        %v2280 = vsel %vm750, %v2278, %v2279
        %v2281 = vrot.slane %v2274, 5
        %v2282 = vsel %vm750, %v2279, %v2281
        %2283 = vrot.lane.b32.xlu0 %v2280, 125
        %v2284 = vpop.permute.xlu0 %2283
        %2285 = vrot.lane.b32.xlu0 %v2282, 125
        %v2286 = vpop.permute.xlu0 %2285
        %v2289 = vadd.f32 %v2268, %v2284
        %v2290 = vadd.f32 %v2269, %v2286
        %s2291 = sld [smem:[#allocation7 + $0x27]]
        %v2292 = vstv %s2291
        %v2293 = vmul.f32 %v2292, %v774
        %v2294 = vmul.f32 %v2292, %v775
        %v2295 = vmul.f32 %v2292, %v776
        %v2299 = vrot.slane %v2293, 5
        %v2300 = vrot.slane %v2294, 5
        %v2301 = vsel %vm750, %v2299, %v2300
        %v2302 = vrot.slane %v2295, 5
        %v2303 = vsel %vm750, %v2300, %v2302
        %2304 = vrot.lane.b32.xlu0 %v2301, 124
        %v2305 = vpop.permute.xlu0 %2304
        %2306 = vrot.lane.b32.xlu0 %v2303, 124
        %v2307 = vpop.permute.xlu0 %2306
        %v2310 = vadd.f32 %v2289, %v2305
        %v2311 = vadd.f32 %v2290, %v2307
        %s2312 = sld [smem:[#allocation7 + $0x58]]
        %v2313 = vstv %s2312
        %v2314 = vmul.f32 %v2313, %v800
        %v2315 = vmul.f32 %v2313, %v801
        %v2316 = vmul.f32 %v2313, %v802
        %v2320 = vrot.slane %v2314, 5
        %v2321 = vrot.slane %v2315, 5
        %v2322 = vsel %vm750, %v2320, %v2321
        %v2323 = vrot.slane %v2316, 5
        %v2324 = vsel %vm750, %v2321, %v2323
        %2325 = vrot.lane.b32.xlu0 %v2322, 124
        %v2326 = vpop.permute.xlu0 %2325
        %2327 = vrot.lane.b32.xlu0 %v2324, 124
        %v2328 = vpop.permute.xlu0 %2327
        %v2331 = vadd.f32 %v2310, %v2326
        %v2332 = vadd.f32 %v2311, %v2328
        %s2333 = sld [smem:[#allocation7 + $0x28]]
        %v2334 = vstv %s2333
        %v2335 = vmul.f32 %v2334, %v774
        %v2336 = vmul.f32 %v2334, %v775
        %v2337 = vmul.f32 %v2334, %v776
        %v2341 = vrot.slane %v2335, 5
        %v2342 = vrot.slane %v2336, 5
        %v2343 = vsel %vm750, %v2341, %v2342
        %v2344 = vrot.slane %v2337, 5
        %v2345 = vsel %vm750, %v2342, %v2344
        %2346 = vrot.lane.b32.xlu0 %v2343, 123
        %v2347 = vpop.permute.xlu0 %2346
        %2348 = vrot.lane.b32.xlu0 %v2345, 123
        %v2349 = vpop.permute.xlu0 %2348
        %v2352 = vadd.f32 %v2331, %v2347
        %v2353 = vadd.f32 %v2332, %v2349
        %s2354 = sld [smem:[#allocation7 + $0x59]]
        %v2355 = vstv %s2354
        %v2356 = vmul.f32 %v2355, %v800
        %v2357 = vmul.f32 %v2355, %v801
        %v2358 = vmul.f32 %v2355, %v802
        %v2362 = vrot.slane %v2356, 5
        %v2363 = vrot.slane %v2357, 5
        %v2364 = vsel %vm750, %v2362, %v2363
        %v2365 = vrot.slane %v2358, 5
        %v2366 = vsel %vm750, %v2363, %v2365
        %2367 = vrot.lane.b32.xlu0 %v2364, 123
        %v2368 = vpop.permute.xlu0 %2367
        %2369 = vrot.lane.b32.xlu0 %v2366, 123
        %v2370 = vpop.permute.xlu0 %2369
        %v2373 = vadd.f32 %v2352, %v2368
        %v2374 = vadd.f32 %v2353, %v2370
        %s2375 = sld [smem:[#allocation7 + $0x29]]
        %v2376 = vstv %s2375
        %v2377 = vmul.f32 %v2376, %v774
        %v2378 = vmul.f32 %v2376, %v775
        %v2379 = vmul.f32 %v2376, %v776
        %v2383 = vrot.slane %v2377, 5
        %v2384 = vrot.slane %v2378, 5
        %v2385 = vsel %vm750, %v2383, %v2384
        %v2386 = vrot.slane %v2379, 5
        %v2387 = vsel %vm750, %v2384, %v2386
        %2388 = vrot.lane.b32.xlu0 %v2385, 122
        %v2389 = vpop.permute.xlu0 %2388
        %2390 = vrot.lane.b32.xlu0 %v2387, 122
        %v2391 = vpop.permute.xlu0 %2390
        %v2394 = vadd.f32 %v2373, %v2389
        %v2395 = vadd.f32 %v2374, %v2391
        %s2396 = sld [smem:[#allocation7 + $0x5a]]
        %v2397 = vstv %s2396
        %v2398 = vmul.f32 %v2397, %v800
        %v2399 = vmul.f32 %v2397, %v801
        %v2400 = vmul.f32 %v2397, %v802
        %v2404 = vrot.slane %v2398, 5
        %v2405 = vrot.slane %v2399, 5
        %v2406 = vsel %vm750, %v2404, %v2405
        %v2407 = vrot.slane %v2400, 5
        %v2408 = vsel %vm750, %v2405, %v2407
        %2409 = vrot.lane.b32.xlu0 %v2406, 122
        %v2410 = vpop.permute.xlu0 %2409
        %2411 = vrot.lane.b32.xlu0 %v2408, 122
        %v2412 = vpop.permute.xlu0 %2411
        %v2415 = vadd.f32 %v2394, %v2410
        %v2416 = vadd.f32 %v2395, %v2412
        %s2417 = sld [smem:[#allocation7 + $0x2a]]
        %v2418 = vstv %s2417
        %v2419 = vmul.f32 %v2418, %v774
        %v2420 = vmul.f32 %v2418, %v775
        %v2421 = vmul.f32 %v2418, %v776
        %vm2425 = vcmask 1041408
        %v2426 = vrot.slane %v2419, 6
        %v2427 = vrot.slane %v2420, 6
        %v2428 = vsel %vm2425, %v2426, %v2427
        %v2429 = vrot.slane %v2421, 6
        %v2430 = vsel %vm2425, %v2427, %v2429
        %v2433 = vadd.f32 %v2415, %v2428
        %v2434 = vadd.f32 %v2416, %v2430
        %s2435 = sld [smem:[#allocation7 + $0x5b]]
        %v2436 = vstv %s2435
        %v2437 = vmul.f32 %v2436, %v800
        %v2438 = vmul.f32 %v2436, %v801
        %v2439 = vmul.f32 %v2436, %v802
        %v2443 = vrot.slane %v2437, 6
        %v2444 = vrot.slane %v2438, 6
        %v2445 = vsel %vm2425, %v2443, %v2444
        %v2446 = vrot.slane %v2439, 6
        %v2447 = vsel %vm2425, %v2444, %v2446
        %v2450 = vadd.f32 %v2433, %v2445
        %v2451 = vadd.f32 %v2434, %v2447
        %s2452 = sld [smem:[#allocation7 + $0x2b]]
        %v2453 = vstv %s2452
        %v2454 = vmul.f32 %v2453, %v774
        %v2455 = vmul.f32 %v2453, %v775
        %v2456 = vmul.f32 %v2453, %v776
        %v2460 = vrot.slane %v2454, 6
        %v2461 = vrot.slane %v2455, 6
        %v2462 = vsel %vm2425, %v2460, %v2461
        %v2463 = vrot.slane %v2456, 6
        %v2464 = vsel %vm2425, %v2461, %v2463
        %2465 = vrot.lane.b32.xlu0 %v2462, 127
        %v2466 = vpop.permute.xlu0 %2465
        %2467 = vrot.lane.b32.xlu0 %v2464, 127
        %v2468 = vpop.permute.xlu0 %2467
        %v2471 = vadd.f32 %v2450, %v2466
        %v2472 = vadd.f32 %v2451, %v2468
        %s2473 = sld [smem:[#allocation7 + $0x5c]]
        %v2474 = vstv %s2473
        %v2475 = vmul.f32 %v2474, %v800
        %v2476 = vmul.f32 %v2474, %v801
        %v2477 = vmul.f32 %v2474, %v802
        %v2481 = vrot.slane %v2475, 6
        %v2482 = vrot.slane %v2476, 6
        %v2483 = vsel %vm2425, %v2481, %v2482
        %v2484 = vrot.slane %v2477, 6
        %v2485 = vsel %vm2425, %v2482, %v2484
        %2486 = vrot.lane.b32.xlu0 %v2483, 127
        %v2487 = vpop.permute.xlu0 %2486
        %2488 = vrot.lane.b32.xlu0 %v2485, 127
        %v2489 = vpop.permute.xlu0 %2488
        %v2492 = vadd.f32 %v2471, %v2487
        %v2493 = vadd.f32 %v2472, %v2489
        %s2494 = sld [smem:[#allocation7 + $0x2c]]
        %v2495 = vstv %s2494
        %v2496 = vmul.f32 %v2495, %v774
        %v2497 = vmul.f32 %v2495, %v775
        %v2498 = vmul.f32 %v2495, %v776
        %v2502 = vrot.slane %v2496, 6
        %v2503 = vrot.slane %v2497, 6
        %v2504 = vsel %vm2425, %v2502, %v2503
        %v2505 = vrot.slane %v2498, 6
        %v2506 = vsel %vm2425, %v2503, %v2505
        %2507 = vrot.lane.b32.xlu0 %v2504, 126
        %v2508 = vpop.permute.xlu0 %2507
        %2509 = vrot.lane.b32.xlu0 %v2506, 126
        %v2510 = vpop.permute.xlu0 %2509
        %v2513 = vadd.f32 %v2492, %v2508
        %v2514 = vadd.f32 %v2493, %v2510
        %s2515 = sld [smem:[#allocation7 + $0x5d]]
        %v2516 = vstv %s2515
        %v2517 = vmul.f32 %v2516, %v800
        %v2518 = vmul.f32 %v2516, %v801
        %v2519 = vmul.f32 %v2516, %v802
        %v2523 = vrot.slane %v2517, 6
        %v2524 = vrot.slane %v2518, 6
        %v2525 = vsel %vm2425, %v2523, %v2524
        %v2526 = vrot.slane %v2519, 6
        %v2527 = vsel %vm2425, %v2524, %v2526
        %2528 = vrot.lane.b32.xlu0 %v2525, 126
        %v2529 = vpop.permute.xlu0 %2528
        %2530 = vrot.lane.b32.xlu0 %v2527, 126
        %v2531 = vpop.permute.xlu0 %2530
        %v2534 = vadd.f32 %v2513, %v2529
        %v2535 = vadd.f32 %v2514, %v2531
        %s2536 = sld [smem:[#allocation7 + $0x2d]]
        %v2537 = vstv %s2536
        %v2538 = vmul.f32 %v2537, %v774
        %v2539 = vmul.f32 %v2537, %v775
        %v2540 = vmul.f32 %v2537, %v776
        %v2544 = vrot.slane %v2538, 6
        %v2545 = vrot.slane %v2539, 6
        %v2546 = vsel %vm2425, %v2544, %v2545
        %v2547 = vrot.slane %v2540, 6
        %v2548 = vsel %vm2425, %v2545, %v2547
        %2549 = vrot.lane.b32.xlu0 %v2546, 125
        %v2550 = vpop.permute.xlu0 %2549
        %2551 = vrot.lane.b32.xlu0 %v2548, 125
        %v2552 = vpop.permute.xlu0 %2551
        %v2555 = vadd.f32 %v2534, %v2550
        %v2556 = vadd.f32 %v2535, %v2552
        %s2557 = sld [smem:[#allocation7 + $0x5e]]
        %v2558 = vstv %s2557
        %v2559 = vmul.f32 %v2558, %v800
        %v2560 = vmul.f32 %v2558, %v801
        %v2561 = vmul.f32 %v2558, %v802
        %v2565 = vrot.slane %v2559, 6
        %v2566 = vrot.slane %v2560, 6
        %v2567 = vsel %vm2425, %v2565, %v2566
        %v2568 = vrot.slane %v2561, 6
        %v2569 = vsel %vm2425, %v2566, %v2568
        %2570 = vrot.lane.b32.xlu0 %v2567, 125
        %v2571 = vpop.permute.xlu0 %2570
        %2572 = vrot.lane.b32.xlu0 %v2569, 125
        %v2573 = vpop.permute.xlu0 %2572
        %v2576 = vadd.f32 %v2555, %v2571
        %v2577 = vadd.f32 %v2556, %v2573
        %s2578 = sld [smem:[#allocation7 + $0x2e]]
        %v2579 = vstv %s2578
        %v2580 = vmul.f32 %v2579, %v774
        %v2581 = vmul.f32 %v2579, %v775
        %v2582 = vmul.f32 %v2579, %v776
        %v2586 = vrot.slane %v2580, 6
        %v2587 = vrot.slane %v2581, 6
        %v2588 = vsel %vm2425, %v2586, %v2587
        %v2589 = vrot.slane %v2582, 6
        %v2590 = vsel %vm2425, %v2587, %v2589
        %2591 = vrot.lane.b32.xlu0 %v2588, 124
        %v2592 = vpop.permute.xlu0 %2591
        %2593 = vrot.lane.b32.xlu0 %v2590, 124
        %v2594 = vpop.permute.xlu0 %2593
        %v2597 = vadd.f32 %v2576, %v2592
        %v2598 = vadd.f32 %v2577, %v2594
        %s2599 = sld [smem:[#allocation7 + $0x5f]]
        %v2600 = vstv %s2599
        %v2601 = vmul.f32 %v2600, %v800
        %v2602 = vmul.f32 %v2600, %v801
        %v2603 = vmul.f32 %v2600, %v802
        %v2607 = vrot.slane %v2601, 6
        %v2608 = vrot.slane %v2602, 6
        %v2609 = vsel %vm2425, %v2607, %v2608
        %v2610 = vrot.slane %v2603, 6
        %v2611 = vsel %vm2425, %v2608, %v2610
        %2612 = vrot.lane.b32.xlu0 %v2609, 124
        %v2613 = vpop.permute.xlu0 %2612
        %2614 = vrot.lane.b32.xlu0 %v2611, 124
        %v2615 = vpop.permute.xlu0 %2614
        %v2618 = vadd.f32 %v2597, %v2613
        %v2619 = vadd.f32 %v2598, %v2615
        %s2620 = sld [smem:[#allocation7 + $0x2f]]
        %v2621 = vstv %s2620
        %v2622 = vmul.f32 %v2621, %v774
        %v2623 = vmul.f32 %v2621, %v775
        %v2624 = vmul.f32 %v2621, %v776
        %v2628 = vrot.slane %v2622, 6
        %v2629 = vrot.slane %v2623, 6
        %v2630 = vsel %vm2425, %v2628, %v2629
        %v2631 = vrot.slane %v2624, 6
        %v2632 = vsel %vm2425, %v2629, %v2631
        %2633 = vrot.lane.b32.xlu0 %v2630, 123
        %v2634 = vpop.permute.xlu0 %2633
        %2635 = vrot.lane.b32.xlu0 %v2632, 123
        %v2636 = vpop.permute.xlu0 %2635
        %v2639 = vadd.f32 %v2618, %v2634
        %v2640 = vadd.f32 %v2619, %v2636
        %s2641 = sld [smem:[#allocation7 + $0x60]]
        %v2642 = vstv %s2641
        %v2643 = vmul.f32 %v2642, %v800
        %v2644 = vmul.f32 %v2642, %v801
        %v2645 = vmul.f32 %v2642, %v802
        %v2649 = vrot.slane %v2643, 6
        %v2650 = vrot.slane %v2644, 6
        %v2651 = vsel %vm2425, %v2649, %v2650
        %v2652 = vrot.slane %v2645, 6
        %v2653 = vsel %vm2425, %v2650, %v2652
        %2654 = vrot.lane.b32.xlu0 %v2651, 123
        %v2655 = vpop.permute.xlu0 %2654
        %2656 = vrot.lane.b32.xlu0 %v2653, 123
        %v2657 = vpop.permute.xlu0 %2656
        %v2660 = vadd.f32 %v2639, %v2655
        %v2661 = vadd.f32 %v2640, %v2657
        %s2662 = sld [smem:[#allocation7 + $0x30]]
        %v2663 = vstv %s2662
        %v2664 = vmul.f32 %v2663, %v774
        %v2665 = vmul.f32 %v2663, %v775
        %v2666 = vmul.f32 %v2663, %v776
        %v2670 = vrot.slane %v2664, 6
        %v2671 = vrot.slane %v2665, 6
        %v2672 = vsel %vm2425, %v2670, %v2671
        %v2673 = vrot.slane %v2666, 6
        %v2674 = vsel %vm2425, %v2671, %v2673
        %2675 = vrot.lane.b32.xlu0 %v2672, 122
        %v2676 = vpop.permute.xlu0 %2675
        %2677 = vrot.lane.b32.xlu0 %v2674, 122
        %v2678 = vpop.permute.xlu0 %2677
        %v2681 = vadd.f32 %v2660, %v2676
        %v2682 = vadd.f32 %v2661, %v2678
        %s2683 = sld [smem:[#allocation7 + $0x61]]
        %v2684 = vstv %s2683
        %v2685 = vmul.f32 %v2684, %v800
        %v2686 = vmul.f32 %v2684, %v801
        %v2687 = vmul.f32 %v2684, %v802
        %v2691 = vrot.slane %v2685, 6
        %v2692 = vrot.slane %v2686, 6
        %v2693 = vsel %vm2425, %v2691, %v2692
        %v2694 = vrot.slane %v2687, 6
        %v2695 = vsel %vm2425, %v2692, %v2694
        %2696 = vrot.lane.b32.xlu0 %v2693, 122
        %v2697 = vpop.permute.xlu0 %2696
        %2698 = vrot.lane.b32.xlu0 %v2695, 122
        %v2699 = vpop.permute.xlu0 %2698
        %v2702 = vadd.f32 %v2681, %v2697
        %v2703 = vadd.f32 %v2682, %v2699
        %s2704 = sld [smem:[#allocation2]]
        %v2705 = vstv %s2704
        %v2706 = vadd.f32 %v2702, %v2705
        %v2707 = vadd.f32 %v2703, %v2705
        %v2708 = vxor.u32 %v2706, 2147483648
        %v2709 = vxor.u32 %v2707, 2147483648
        %v2710 = vmul.f32 %v2708, 1.442695
        %v2711 = vpow.pop %v2710
        %v2712 = vmul.f32 %v2709, 1.442695
        %v2713 = vpow.pop %v2712
        %v2714 = vadd.f32 %v2711, 1.0
        %v2715 = vadd.f32 %v2713, 1.0
        %v2716 = vrcp.pop %v2714
        %v2717 = vmul.f32 1.0, %v2716
        %v2718 = vrcp.pop %v2715
        %v2719 = vmul.f32 1.0, %v2718
        %v2720 = vmul.f32 %v670, %v2717
        %v2721 = vmul.f32 %v671, %v2719
        %v2722 = vmul.f32 %v672, %v2717
        %v2723 = vmul.f32 %v673, %v2719
        %v2724 = vmul.f32 %v674, %v2717
        %v2725 = vmul.f32 %v675, %v2719
        %v2726 = vmul.f32 %v676, %v2717
        %v2727 = vmul.f32 %v677, %v2719
        %v2728 = vmul.f32 %v678, %v2717
        %v2729 = vmul.f32 %v679, %v2719
        %v2730 = vmul.f32 %v680, %v2717
        %v2731 = vmul.f32 %v681, %v2719
        %v2732 = vmul.f32 %v682, %v2717
        %v2733 = vmul.f32 %v683, %v2719
        %v2734 = vmul.f32 %v684, %v2717
        %v2735 = vmul.f32 %v685, %v2719
        %2736 = vst.msk [vmem:[%s243] sm:$0xff] %vm260, %v2720
        %2737 = vst.msk [vmem:[%s243 + $0x8] sm:$0xff] %vm260, %v2721
        %2738 = vst.msk [vmem:[%s243 + $0x10] sm:$0xff] %vm260, %v2722
        %2739 = vst.msk [vmem:[%s243 + $0x18] sm:$0xff] %vm260, %v2723
        %2740 = vst.msk [vmem:[%s243 + $0x20] sm:$0xff] %vm260, %v2724
        %2741 = vst.msk [vmem:[%s243 + $0x28] sm:$0xff] %vm260, %v2725
        %2742 = vst.msk [vmem:[%s243 + $0x30] sm:$0xff] %vm260, %v2726
        %2743 = vst.msk [vmem:[%s243 + $0x38] sm:$0xff] %vm260, %v2727
        %2744 = vst.msk [vmem:[%s243 + $0x40] sm:$0xff] %vm260, %v2728
        %2745 = vst.msk [vmem:[%s243 + $0x48] sm:$0xff] %vm260, %v2729
        %2746 = vst.msk [vmem:[%s243 + $0x50] sm:$0xff] %vm260, %v2730
        %2747 = vst.msk [vmem:[%s243 + $0x58] sm:$0xff] %vm260, %v2731
        %2748 = vst.msk [vmem:[%s243 + $0x60] sm:$0xff] %vm260, %v2732
        %2749 = vst.msk [vmem:[%s243 + $0x68] sm:$0xff] %vm260, %v2733
        %2750 = vst.msk [vmem:[%s243 + $0x70] sm:$0xff] %vm260, %v2734
        %2751 = vst.msk [vmem:[%s243 + $0x78] sm:$0xff] %vm260, %v2735
        %s2752 = sand.u32 %s121, 1
        %s2753 = scalar_lea.sflag [#allocation5], %s2752
        %s2754 = sand.u32 %s121, 1
        %s2755 = smul.addr %s2754, 128
        %s2756 = scalar_lea.vmem [#allocation10], %s2755
        // Predicated region
        $region49: #{tpu_custom_call.1} parent=35 // pred_check
          %p2757 = pneg %p131
        $region50: #{tpu_custom_call.1} parent=35 // pred_check_branch
          %2759 = sbr.rel (%p2757) target = $region52
        $region51: #{tpu_custom_call.1} parent=35 // pred_region
          %s2761 = ssub.s32 2048, 2048
          %2762 = vsyncadd %s2753, %s2761
          %s2763 = smul.addr %s24, 16
          %s2764 = smul.addr %s2763, 128
          %s2765 = scalar_lea.hbm %s4, %s2764
          %s2766 = sshll.u32 %s2756, 4
          %s2767 = int_to_ptr.vmem [resolvable:$true] %s2766
          %2772 = dma.vmem_to_hbm [thread:$0]  %s2767, 2048, %s2765, %s2753, 128, 128, 8
        $region52: #{tpu_custom_call.1} parent=35 // pred_fallthru
          _
      $region36: #{tpu_custom_call.1} parent=5 // pred_fallthru
        _
      %p2773 = scmp.le.s32.totalorder 2, %s19
      // Predicated region
      $region53: #{tpu_custom_call.1} parent=5 // pred_check
        %p2774 = pneg %p2773
      $region54: #{tpu_custom_call.1} parent=5 // pred_check_branch
        %2776 = sbr.rel (%p2774) target = $region56
      $region55: #{tpu_custom_call.1} parent=5 // pred_region
        %s2777 = ssub.s32 %s19, 2
        // Predicated region
        $region57: #{tpu_custom_call.1} parent=55 // pred_check
          %p2778 = pneg %p137
        $region58: #{tpu_custom_call.1} parent=55 // pred_check_branch
          %2780 = sbr.rel (%p2778) target = $region60
        $region59: #{tpu_custom_call.1} parent=55 // pred_region
          %s2781 = sand.u32 %s122, 1
          %s2782 = scalar_lea.sflag [#allocation5], %s2781
          %s2783 = sand.u32 %s122, 1
          %s2784 = smul.addr %s2783, 128
          %s2785 = scalar_lea.vmem [#allocation10], %s2784
          %2786 = dma.done %s2782, 2048
        $region60: #{tpu_custom_call.1} parent=55 // pred_fallthru
          _
      $region56: #{tpu_custom_call.1} parent=5 // pred_fallthru
        _
    $region6: #{tpu_custom_call.1} parent=1 // loop_footer
      %s23 = sadd.s32 1, %s19
    $region7: #{tpu_custom_call.1} parent=1 // loop_footer_branch
      %18 = sbr.rel target = $region3
    $region8: #{tpu_custom_call.1} parent=1 // loop_exit
      _
    %2787 = vsyncpa [#allocation4], 1
    %s2788 = scalar_lea.sflag [#allocation4], 1
    %2789 = vsyncpa %s2788, 1
    %2790 = vsyncpa [#allocation5], 1
    %s2791 = scalar_lea.sflag [#allocation5], 1
    %2792 = vsyncpa %s2791, 1
    %2793 = vsyncpa [#allocation6], 1
    %s2794 = scalar_lea.sflag [#allocation6], 1
    %2795 = vsyncpa %s2794, 1
    %2796 = vsyncpa [#allocation8], 1

</llo_original>
